<compile_context>
chip_gen: v6e
topology: v6e:2x2x1
jax: 0.10.0
libtpu: 0.0.40
codegen_flags: <defaults>
</compile_context>

<pallas_src>
import math
import jax
import jax.numpy as jnp
from jax.experimental import pallas as pl
from jax.experimental.pallas import tpu as pltpu


# ----------------------------- kernel ---------------------------------------

def _bid_encoder_kernel(x_ref,
                        wih_f_ref, whh_f_ref, bih_f_ref, bhh_f_ref,
                        wih_b_ref, whh_b_ref, bih_b_ref, bhh_b_ref,
                        wfc_ref, bfc_ref,
                        enc_ref, sent_ref):
    L, B, E = x_ref.shape
    H = whh_f_ref.shape[0]

    # Input projections for ALL timesteps & both directions: two big MXU
    # matmuls instead of 2*L tiny per-step ones.
    x_flat = x_ref[...].reshape(L * B, E)
    xg_f = (jnp.dot(x_flat, wih_f_ref[...], preferred_element_type=jnp.float32)
            + bih_f_ref[...]).reshape(L, B, 3 * H)
    xg_b = (jnp.dot(x_flat, wih_b_ref[...], preferred_element_type=jnp.float32)
            + bih_b_ref[...]).reshape(L, B, 3 * H)

    whh_f = whh_f_ref[...]
    bhh_f = bhh_f_ref[...]
    whh_b = whh_b_ref[...]
    bhh_b = bhh_b_ref[...]

    def gru_cell(xg_t, h_prev, whh, bhh):
        # xg_t = W_ih x_t + b_ih, precomputed.  Gate order [r, z, n] (PyTorch).
        hg = jnp.dot(h_prev, whh, preferred_element_type=jnp.float32) + bhh
        r = jax.nn.sigmoid(xg_t[:, 0:H] + hg[:, 0:H])
        z = jax.nn.sigmoid(xg_t[:, H:2 * H] + hg[:, H:2 * H])
        n = jnp.tanh(xg_t[:, 2 * H:3 * H] + r * hg[:, 2 * H:3 * H])
        return (1.0 - z) * n + z * h_prev

    # Forward recurrence t = 0 .. L-1 (static unrolled loop, L is static).
    h = jnp.zeros((B, H), jnp.float32)
    fwd_states = []
    for t in range(L):
        h = gru_cell(xg_f[t], h, whh_f, bhh_f)
        fwd_states.append(h)
    last_forward = h                       # == enc_hidden_states[-1, :, :H]

    # Backward recurrence t = L-1 .. 0.
    h = jnp.zeros((B, H), jnp.float32)
    bwd_states = [None] * L
    for t in range(L - 1, -1, -1):
        h = gru_cell(xg_b[t], h, whh_b, bhh_b)
        bwd_states[t] = h
    first_backward = h                     # == enc_hidden_states[0, :, H:]

    # Single full-width (lane-dense) store of the whole hidden-state slab.
    fwd = jnp.stack(fwd_states, axis=0)    # (L, B, H)
    bwd = jnp.stack(bwd_states, axis=0)    # (L, B, H)
    enc_ref[...] = jnp.concatenate([fwd, bwd], axis=-1)

    # sent = relu(fc(cat(last_forward, first_backward))) — fused in-kernel.
    ctx = jnp.concatenate([last_forward, first_backward], axis=-1)     # (B, 2H)
    sent = (jnp.dot(ctx, wfc_ref[...], preferred_element_type=jnp.float32)
            + bfc_ref[...])
    sent_ref[...] = jnp.maximum(sent, 0.0)


# ----------------------------- wrapper --------------------------------------

def bidirectional_encoder_pallas(embedded,
                                 wih_f, whh_f, bih_f, bhh_f,
                                 wih_b, whh_b, bih_b, bhh_b,
                                 wfc, bfc):
    L, B, E = embedded.shape
    H = whh_f.shape[0]
    D_dec = wfc.shape[1]

    def spec2(shape):
        return pl.BlockSpec(shape, lambda i: (0, 0))

    enc, sent = pl.pallas_call(
        _bid_encoder_kernel,
        out_shape=(jax.ShapeDtypeStruct((L, B, 2 * H), jnp.float32),
                   jax.ShapeDtypeStruct((B, D_dec), jnp.float32)),
        grid=(1,),
        in_specs=[
            pl.BlockSpec((L, B, E), lambda i: (0, 0, 0)),
            spec2(wih_f.shape), spec2(whh_f.shape),
            spec2(bih_f.shape), spec2(bhh_f.shape),
            spec2(wih_b.shape), spec2(whh_b.shape),
            spec2(bih_b.shape), spec2(bhh_b.shape),
            spec2(wfc.shape), spec2(bfc.shape),
        ],
        out_specs=(pl.BlockSpec((L, B, 2 * H), lambda i: (0, 0, 0)),
                   pl.BlockSpec((B, D_dec), lambda i: (0, 0))),
        compiler_params=pltpu.CompilerParams(
            dimension_semantics=("arbitrary",)),
    )(embedded, wih_f, whh_f, bih_f, bhh_f,
      wih_b, whh_b, bih_b, bhh_b, wfc, bfc)
    return enc, sent


# ----------------------------- module ---------------------------------------

class BidirectionalEncoder:
    """JAX/Pallas re-implementation of the PyTorch BidirectionalEncoder forward."""

    def __init__(self, src_vocab, emb_dim, enc_hid_dim, dec_hid_dim,
                 dropout=0.5, *, key):
        self.enc_hid_dim = enc_hid_dim
        self.dec_hid_dim = dec_hid_dim
        self.dropout_p = dropout

        H = enc_hid_dim
        k_gru = 1.0 / math.sqrt(H)
        k_fc = 1.0 / math.sqrt(2 * H)
        ks = jax.random.split(key, 11)

        def u(k, shape, bound):
            return jax.random.uniform(k, shape, jnp.float32, -bound, bound)

        # nn.Embedding default init: N(0, 1)
        self.emb = jax.random.normal(ks[0], (src_vocab, emb_dim), jnp.float32)
        # GRU weights stored transposed (in_dim, 3H); gate order [r, z, n].
        self.wih_f_t = u(ks[1], (emb_dim, 3 * H), k_gru)
        self.whh_f_t = u(ks[2], (H, 3 * H), k_gru)
        self.bih_f = u(ks[3], (1, 3 * H), k_gru)
        self.bhh_f = u(ks[4], (1, 3 * H), k_gru)
        self.wih_b_t = u(ks[5], (emb_dim, 3 * H), k_gru)
        self.whh_b_t = u(ks[6], (H, 3 * H), k_gru)
        self.bih_b = u(ks[7], (1, 3 * H), k_gru)
        self.bhh_b = u(ks[8], (1, 3 * H), k_gru)
        # fc: Linear(2H, dec_hid_dim), stored transposed.
        self.wfc_t = u(ks[9], (2 * H, dec_hid_dim), k_fc)
        self.bfc = u(ks[10], (1, dec_hid_dim), k_fc)

    def __call__(self, src):
        L, B = src.shape
        # Embedding row gather (data-dependent) done by XLA in the wrapper.
        embedded = jnp.take(self.emb, src, axis=0)          # (L, B, E)
        # TODO(synk): nn.Dropout(p=0.5) is eval-mode identity here; a training
        # variant would draw the mask in-kernel with pltpu.prng_seed/prng_random_bits.
        enc, sent = bidirectional_encoder_pallas(
            embedded,
            self.wih_f_t, self.whh_f_t, self.bih_f, self.bhh_f,
            self.wih_b_t, self.whh_b_t, self.bih_b, self.bhh_b,
            self.wfc_t, self.bfc)
        assert enc.shape == (L, B, 2 * self.enc_hid_dim)
        assert sent.shape == (B, self.dec_hid_dim)
        return enc, sent


# ----------------------------- reference ------------------------------------

def _gru_scan(x, wih_t, bih, whh_t, bhh):
    L, B, E = x.shape
    H = whh_t.shape[0]

    def cell(h, x_t):
        xg = x_t @ wih_t + bih
        hg = h @ whh_t + bhh
        xr, xz, xn = jnp.split(xg, 3, axis=-1)
        hr, hz, hn = jnp.split(hg, 3, axis=-1)
        r = jax.nn.sigmoid(xr + hr)
        z = jax.nn.sigmoid(xz + hz)
        n = jnp.tanh(xn + r * hn)
        h_new = (1.0 - z) * n + z * h
        return h_new, h_new

    _, hs = jax.lax.scan(cell, jnp.zeros((B, H), jnp.float32), x)
    return hs  # (L, B, H)


def _reference(src, m):
    emb = jnp.take(m.emb, src, axis=0)
    fwd = _gru_scan(emb, m.wih_f_t, m.bih_f, m.whh_f_t, m.bhh_f)
    bwd = _gru_scan(emb[::-1], m.wih_b_t, m.bih_b, m.whh_b_t, m.bhh_b)[::-1]
    enc = jnp.concatenate([fwd, bwd], axis=-1)
    H = m.enc_hid_dim
    last_forward = enc[-1, :, :H]
    first_backward = enc[0, :, H:]
    sent = jax.nn.relu(
        jnp.concatenate([last_forward, first_backward], axis=1) @ m.wfc_t + m.bfc)
    return enc, sent


# ----------------------------- main -----------------------------------------

if __name__ == "__main__":
    src_vocab, emb_dim, enc_hid_dim, dec_hid_dim = 100, 32, 32, 32
    L, B = 8, 2

    root = jax.random.PRNGKey(0)
    k_params, k_src = jax.random.split(root)

    module = BidirectionalEncoder(src_vocab, emb_dim, enc_hid_dim, dec_hid_dim,
                                  key=k_params)
    src = jax.random.randint(k_src, (L, B), 0, src_vocab, dtype=jnp.int32)

    enc_hidden_states, sent = module(src)
    enc_hidden_states = jax.block_until_ready(enc_hidden_states)
    sent = jax.block_until_ready(sent)

    ref_enc, ref_sent = _reference(src, module)
    assert enc_hidden_states.shape == (L, B, 2 * enc_hid_dim)
    assert sent.shape == (B, dec_hid_dim)
    # Loose-ish tolerance: MXU-vs-XLA f32 matmuls plus 8-step recurrent amplification.
    assert jnp.allclose(enc_hidden_states, ref_enc, rtol=1e-3, atol=1e-3)
    assert jnp.allclose(sent, ref_sent, rtol=1e-3, atol=1e-3)

    print("KERNEL_OK")
</pallas_src>

<mosaic_0001>
module attributes {stable_mosaic.version = 11 : i64} {
  func.func @_bid_encoder_kernel(%arg0: i32, %arg1: memref<8x2x32xf32, #tpu.memory_space<vmem>>, %arg2: memref<32x96xf32, #tpu.memory_space<vmem>>, %arg3: memref<32x96xf32, #tpu.memory_space<vmem>>, %arg4: memref<1x96xf32, #tpu.memory_space<vmem>>, %arg5: memref<1x96xf32, #tpu.memory_space<vmem>>, %arg6: memref<32x96xf32, #tpu.memory_space<vmem>>, %arg7: memref<32x96xf32, #tpu.memory_space<vmem>>, %arg8: memref<1x96xf32, #tpu.memory_space<vmem>>, %arg9: memref<1x96xf32, #tpu.memory_space<vmem>>, %arg10: memref<64x32xf32, #tpu.memory_space<vmem>>, %arg11: memref<1x32xf32, #tpu.memory_space<vmem>>, %arg12: memref<8x2x64xf32, #tpu.memory_space<vmem>>, %arg13: memref<2x32xf32, #tpu.memory_space<vmem>>) attributes {dimension_semantics = [#tpu.dimension_semantics<arbitrary>], iteration_bounds = array<i64: 1>, scalar_prefetch = 0 : i64, scratch_operands = 0 : i64, tpu.core_type = #tpu.core_type<tc>, window_params = [{pipeline_mode = #tpu.pipeline_mode<synchronous>, transform_indices = @transform_0, window_bounds = array<i64: 8, 2, 32>}, {pipeline_mode = #tpu.pipeline_mode<synchronous>, transform_indices = @transform_1, window_bounds = array<i64: 32, 96>}, {pipeline_mode = #tpu.pipeline_mode<synchronous>, transform_indices = @transform_2, window_bounds = array<i64: 32, 96>}, {pipeline_mode = #tpu.pipeline_mode<synchronous>, transform_indices = @transform_3, window_bounds = array<i64: 1, 96>}, {pipeline_mode = #tpu.pipeline_mode<synchronous>, transform_indices = @transform_4, window_bounds = array<i64: 1, 96>}, {pipeline_mode = #tpu.pipeline_mode<synchronous>, transform_indices = @transform_5, window_bounds = array<i64: 32, 96>}, {pipeline_mode = #tpu.pipeline_mode<synchronous>, transform_indices = @transform_6, window_bounds = array<i64: 32, 96>}, {pipeline_mode = #tpu.pipeline_mode<synchronous>, transform_indices = @transform_7, window_bounds = array<i64: 1, 96>}, {pipeline_mode = #tpu.pipeline_mode<synchronous>, transform_indices = @transform_8, window_bounds = array<i64: 1, 96>}, {pipeline_mode = #tpu.pipeline_mode<synchronous>, transform_indices = @transform_9, window_bounds = array<i64: 64, 32>}, {pipeline_mode = #tpu.pipeline_mode<synchronous>, transform_indices = @transform_10, window_bounds = array<i64: 1, 32>}, {pipeline_mode = #tpu.pipeline_mode<synchronous>, transform_indices = @transform_11, window_bounds = array<i64: 8, 2, 64>}, {pipeline_mode = #tpu.pipeline_mode<synchronous>, transform_indices = @transform_12, window_bounds = array<i64: 2, 32>}]} {
    %c0 = arith.constant 0 : index
    %c0_0 = arith.constant 0 : index
    %c0_1 = arith.constant 0 : index
    %0 = vector.load %arg1[%c0, %c0_0, %c0_1] : memref<8x2x32xf32, #tpu.memory_space<vmem>>, vector<8x2x32xf32>
    %1 = vector.shape_cast %0 : vector<8x2x32xf32> to vector<16x32xf32>
    %c0_2 = arith.constant 0 : index
    %c0_3 = arith.constant 0 : index
    %2 = vector.load %arg2[%c0_2, %c0_3] : memref<32x96xf32, #tpu.memory_space<vmem>>, vector<32x96xf32>
    %cst = arith.constant dense<0.000000e+00> : vector<16x96xf32>
    %3 = tpu.matmul %1, %2, %cst {dimension_numbers = #tpu.dot_dimension_numbers<[1], [0], [0], [1], [0, 0, 1, 1], [], []>} : vector<16x32xf32>, vector<32x96xf32>, vector<16x96xf32> -> vector<16x96xf32>
    %c0_4 = arith.constant 0 : index
    %c0_5 = arith.constant 0 : index
    %4 = vector.load %arg4[%c0_4, %c0_5] : memref<1x96xf32, #tpu.memory_space<vmem>>, vector<1x96xf32>
    %5 = vector.broadcast %4 : vector<1x96xf32> to vector<16x96xf32>
    %6 = arith.addf %3, %5 : vector<16x96xf32>
    %7 = vector.shape_cast %6 : vector<16x96xf32> to vector<8x2x96xf32>
    %c0_6 = arith.constant 0 : index
    %c0_7 = arith.constant 0 : index
    %8 = vector.load %arg6[%c0_6, %c0_7] : memref<32x96xf32, #tpu.memory_space<vmem>>, vector<32x96xf32>
    %cst_8 = arith.constant dense<0.000000e+00> : vector<16x96xf32>
    %9 = tpu.matmul %1, %8, %cst_8 {dimension_numbers = #tpu.dot_dimension_numbers<[1], [0], [0], [1], [0, 0, 1, 1], [], []>} : vector<16x32xf32>, vector<32x96xf32>, vector<16x96xf32> -> vector<16x96xf32>
    %c0_9 = arith.constant 0 : index
    %c0_10 = arith.constant 0 : index
    %10 = vector.load %arg8[%c0_9, %c0_10] : memref<1x96xf32, #tpu.memory_space<vmem>>, vector<1x96xf32>
    %11 = vector.broadcast %10 : vector<1x96xf32> to vector<16x96xf32>
    %12 = arith.addf %9, %11 : vector<16x96xf32>
    %13 = vector.shape_cast %12 : vector<16x96xf32> to vector<8x2x96xf32>
    %c0_11 = arith.constant 0 : index
    %c0_12 = arith.constant 0 : index
    %14 = vector.load %arg3[%c0_11, %c0_12] : memref<32x96xf32, #tpu.memory_space<vmem>>, vector<32x96xf32>
    %c0_13 = arith.constant 0 : index
    %c0_14 = arith.constant 0 : index
    %15 = vector.load %arg5[%c0_13, %c0_14] : memref<1x96xf32, #tpu.memory_space<vmem>>, vector<1x96xf32>
    %c0_15 = arith.constant 0 : index
    %c0_16 = arith.constant 0 : index
    %16 = vector.load %arg7[%c0_15, %c0_16] : memref<32x96xf32, #tpu.memory_space<vmem>>, vector<32x96xf32>
    %c0_17 = arith.constant 0 : index
    %c0_18 = arith.constant 0 : index
    %17 = vector.load %arg9[%c0_17, %c0_18] : memref<1x96xf32, #tpu.memory_space<vmem>>, vector<1x96xf32>
    %cst_19 = arith.constant 0.000000e+00 : f32
    %18 = vector.broadcast %cst_19 : f32 to vector<2x32xf32>
    %19 = vector.extract_strided_slice %7 {offsets = [0, 0, 0], sizes = [1, 2, 96], strides = [1, 1, 1]} : vector<8x2x96xf32> to vector<1x2x96xf32>
    %20 = vector.shape_cast %19 : vector<1x2x96xf32> to vector<2x96xf32>
    %cst_20 = arith.constant dense<0.000000e+00> : vector<2x96xf32>
    %21 = tpu.matmul %18, %14, %cst_20 {dimension_numbers = #tpu.dot_dimension_numbers<[1], [0], [0], [1], [0, 0, 1, 1], [], []>} : vector<2x32xf32>, vector<32x96xf32>, vector<2x96xf32> -> vector<2x96xf32>
    %22 = vector.broadcast %15 : vector<1x96xf32> to vector<2x96xf32>
    %23 = arith.addf %21, %22 : vector<2x96xf32>
    %24 = vector.extract_strided_slice %20 {offsets = [0, 0], sizes = [2, 32], strides = [1, 1]} : vector<2x96xf32> to vector<2x32xf32>
    %25 = vector.extract_strided_slice %23 {offsets = [0, 0], sizes = [2, 32], strides = [1, 1]} : vector<2x96xf32> to vector<2x32xf32>
    %26 = arith.addf %24, %25 : vector<2x32xf32>
    %27 = arith.negf %26 : vector<2x32xf32>
    %28 = math.exp %27 : vector<2x32xf32>
    %cst_21 = arith.constant 1.000000e+00 : f32
    %29 = vector.broadcast %cst_21 : f32 to vector<2x32xf32>
    %30 = arith.addf %29, %28 : vector<2x32xf32>
    %31 = arith.divf %29, %30 : vector<2x32xf32>
    %32 = vector.extract_strided_slice %20 {offsets = [0, 32], sizes = [2, 32], strides = [1, 1]} : vector<2x96xf32> to vector<2x32xf32>
    %33 = vector.extract_strided_slice %23 {offsets = [0, 32], sizes = [2, 32], strides = [1, 1]} : vector<2x96xf32> to vector<2x32xf32>
    %34 = arith.addf %32, %33 : vector<2x32xf32>
    %35 = arith.negf %34 : vector<2x32xf32>
    %36 = math.exp %35 : vector<2x32xf32>
    %cst_22 = arith.constant 1.000000e+00 : f32
    %37 = vector.broadcast %cst_22 : f32 to vector<2x32xf32>
    %38 = arith.addf %37, %36 : vector<2x32xf32>
    %39 = arith.divf %37, %38 : vector<2x32xf32>
    %40 = vector.extract_strided_slice %20 {offsets = [0, 64], sizes = [2, 32], strides = [1, 1]} : vector<2x96xf32> to vector<2x32xf32>
    %41 = vector.extract_strided_slice %23 {offsets = [0, 64], sizes = [2, 32], strides = [1, 1]} : vector<2x96xf32> to vector<2x32xf32>
    %42 = arith.mulf %31, %41 : vector<2x32xf32>
    %43 = arith.addf %40, %42 : vector<2x32xf32>
    %44 = math.tanh %43 : vector<2x32xf32>
    %cst_23 = arith.constant 1.000000e+00 : f32
    %45 = vector.broadcast %cst_23 : f32 to vector<2x32xf32>
    %46 = arith.subf %45, %39 : vector<2x32xf32>
    %47 = arith.mulf %46, %44 : vector<2x32xf32>
    %48 = arith.mulf %39, %18 : vector<2x32xf32>
    %49 = arith.addf %47, %48 : vector<2x32xf32>
    %50 = vector.extract_strided_slice %7 {offsets = [1, 0, 0], sizes = [1, 2, 96], strides = [1, 1, 1]} : vector<8x2x96xf32> to vector<1x2x96xf32>
    %51 = vector.shape_cast %50 : vector<1x2x96xf32> to vector<2x96xf32>
    %cst_24 = arith.constant dense<0.000000e+00> : vector<2x96xf32>
    %52 = tpu.matmul %49, %14, %cst_24 {dimension_numbers = #tpu.dot_dimension_numbers<[1], [0], [0], [1], [0, 0, 1, 1], [], []>} : vector<2x32xf32>, vector<32x96xf32>, vector<2x96xf32> -> vector<2x96xf32>
    %53 = vector.broadcast %15 : vector<1x96xf32> to vector<2x96xf32>
    %54 = arith.addf %52, %53 : vector<2x96xf32>
    %55 = vector.extract_strided_slice %51 {offsets = [0, 0], sizes = [2, 32], strides = [1, 1]} : vector<2x96xf32> to vector<2x32xf32>
    %56 = vector.extract_strided_slice %54 {offsets = [0, 0], sizes = [2, 32], strides = [1, 1]} : vector<2x96xf32> to vector<2x32xf32>
    %57 = arith.addf %55, %56 : vector<2x32xf32>
    %58 = arith.negf %57 : vector<2x32xf32>
    %59 = math.exp %58 : vector<2x32xf32>
    %cst_25 = arith.constant 1.000000e+00 : f32
    %60 = vector.broadcast %cst_25 : f32 to vector<2x32xf32>
    %61 = arith.addf %60, %59 : vector<2x32xf32>
    %62 = arith.divf %60, %61 : vector<2x32xf32>
    %63 = vector.extract_strided_slice %51 {offsets = [0, 32], sizes = [2, 32], strides = [1, 1]} : vector<2x96xf32> to vector<2x32xf32>
    %64 = vector.extract_strided_slice %54 {offsets = [0, 32], sizes = [2, 32], strides = [1, 1]} : vector<2x96xf32> to vector<2x32xf32>
    %65 = arith.addf %63, %64 : vector<2x32xf32>
    %66 = arith.negf %65 : vector<2x32xf32>
    %67 = math.exp %66 : vector<2x32xf32>
    %cst_26 = arith.constant 1.000000e+00 : f32
    %68 = vector.broadcast %cst_26 : f32 to vector<2x32xf32>
    %69 = arith.addf %68, %67 : vector<2x32xf32>
    %70 = arith.divf %68, %69 : vector<2x32xf32>
    %71 = vector.extract_strided_slice %51 {offsets = [0, 64], sizes = [2, 32], strides = [1, 1]} : vector<2x96xf32> to vector<2x32xf32>
    %72 = vector.extract_strided_slice %54 {offsets = [0, 64], sizes = [2, 32], strides = [1, 1]} : vector<2x96xf32> to vector<2x32xf32>
    %73 = arith.mulf %62, %72 : vector<2x32xf32>
    %74 = arith.addf %71, %73 : vector<2x32xf32>
    %75 = math.tanh %74 : vector<2x32xf32>
    %cst_27 = arith.constant 1.000000e+00 : f32
    %76 = vector.broadcast %cst_27 : f32 to vector<2x32xf32>
    %77 = arith.subf %76, %70 : vector<2x32xf32>
    %78 = arith.mulf %77, %75 : vector<2x32xf32>
    %79 = arith.mulf %70, %49 : vector<2x32xf32>
    %80 = arith.addf %78, %79 : vector<2x32xf32>
    %81 = vector.extract_strided_slice %7 {offsets = [2, 0, 0], sizes = [1, 2, 96], strides = [1, 1, 1]} : vector<8x2x96xf32> to vector<1x2x96xf32>
    %82 = vector.shape_cast %81 : vector<1x2x96xf32> to vector<2x96xf32>
    %cst_28 = arith.constant dense<0.000000e+00> : vector<2x96xf32>
    %83 = tpu.matmul %80, %14, %cst_28 {dimension_numbers = #tpu.dot_dimension_numbers<[1], [0], [0], [1], [0, 0, 1, 1], [], []>} : vector<2x32xf32>, vector<32x96xf32>, vector<2x96xf32> -> vector<2x96xf32>
    %84 = vector.broadcast %15 : vector<1x96xf32> to vector<2x96xf32>
    %85 = arith.addf %83, %84 : vector<2x96xf32>
    %86 = vector.extract_strided_slice %82 {offsets = [0, 0], sizes = [2, 32], strides = [1, 1]} : vector<2x96xf32> to vector<2x32xf32>
    %87 = vector.extract_strided_slice %85 {offsets = [0, 0], sizes = [2, 32], strides = [1, 1]} : vector<2x96xf32> to vector<2x32xf32>
    %88 = arith.addf %86, %87 : vector<2x32xf32>
    %89 = arith.negf %88 : vector<2x32xf32>
    %90 = math.exp %89 : vector<2x32xf32>
    %cst_29 = arith.constant 1.000000e+00 : f32
    %91 = vector.broadcast %cst_29 : f32 to vector<2x32xf32>
    %92 = arith.addf %91, %90 : vector<2x32xf32>
    %93 = arith.divf %91, %92 : vector<2x32xf32>
    %94 = vector.extract_strided_slice %82 {offsets = [0, 32], sizes = [2, 32], strides = [1, 1]} : vector<2x96xf32> to vector<2x32xf32>
    %95 = vector.extract_strided_slice %85 {offsets = [0, 32], sizes = [2, 32], strides = [1, 1]} : vector<2x96xf32> to vector<2x32xf32>
    %96 = arith.addf %94, %95 : vector<2x32xf32>
    %97 = arith.negf %96 : vector<2x32xf32>
    %98 = math.exp %97 : vector<2x32xf32>
    %cst_30 = arith.constant 1.000000e+00 : f32
    %99 = vector.broadcast %cst_30 : f32 to vector<2x32xf32>
    %100 = arith.addf %99, %98 : vector<2x32xf32>
    %101 = arith.divf %99, %100 : vector<2x32xf32>
    %102 = vector.extract_strided_slice %82 {offsets = [0, 64], sizes = [2, 32], strides = [1, 1]} : vector<2x96xf32> to vector<2x32xf32>
    %103 = vector.extract_strided_slice %85 {offsets = [0, 64], sizes = [2, 32], strides = [1, 1]} : vector<2x96xf32> to vector<2x32xf32>
    %104 = arith.mulf %93, %103 : vector<2x32xf32>
    %105 = arith.addf %102, %104 : vector<2x32xf32>
    %106 = math.tanh %105 : vector<2x32xf32>
    %cst_31 = arith.constant 1.000000e+00 : f32
    %107 = vector.broadcast %cst_31 : f32 to vector<2x32xf32>
    %108 = arith.subf %107, %101 : vector<2x32xf32>
    %109 = arith.mulf %108, %106 : vector<2x32xf32>
    %110 = arith.mulf %101, %80 : vector<2x32xf32>
    %111 = arith.addf %109, %110 : vector<2x32xf32>
    %112 = vector.extract_strided_slice %7 {offsets = [3, 0, 0], sizes = [1, 2, 96], strides = [1, 1, 1]} : vector<8x2x96xf32> to vector<1x2x96xf32>
    %113 = vector.shape_cast %112 : vector<1x2x96xf32> to vector<2x96xf32>
    %cst_32 = arith.constant dense<0.000000e+00> : vector<2x96xf32>
    %114 = tpu.matmul %111, %14, %cst_32 {dimension_numbers = #tpu.dot_dimension_numbers<[1], [0], [0], [1], [0, 0, 1, 1], [], []>} : vector<2x32xf32>, vector<32x96xf32>, vector<2x96xf32> -> vector<2x96xf32>
    %115 = vector.broadcast %15 : vector<1x96xf32> to vector<2x96xf32>
    %116 = arith.addf %114, %115 : vector<2x96xf32>
    %117 = vector.extract_strided_slice %113 {offsets = [0, 0], sizes = [2, 32], strides = [1, 1]} : vector<2x96xf32> to vector<2x32xf32>
    %118 = vector.extract_strided_slice %116 {offsets = [0, 0], sizes = [2, 32], strides = [1, 1]} : vector<2x96xf32> to vector<2x32xf32>
    %119 = arith.addf %117, %118 : vector<2x32xf32>
    %120 = arith.negf %119 : vector<2x32xf32>
    %121 = math.exp %120 : vector<2x32xf32>
    %cst_33 = arith.constant 1.000000e+00 : f32
    %122 = vector.broadcast %cst_33 : f32 to vector<2x32xf32>
    %123 = arith.addf %122, %121 : vector<2x32xf32>
    %124 = arith.divf %122, %123 : vector<2x32xf32>
    %125 = vector.extract_strided_slice %113 {offsets = [0, 32], sizes = [2, 32], strides = [1, 1]} : vector<2x96xf32> to vector<2x32xf32>
    %126 = vector.extract_strided_slice %116 {offsets = [0, 32], sizes = [2, 32], strides = [1, 1]} : vector<2x96xf32> to vector<2x32xf32>
    %127 = arith.addf %125, %126 : vector<2x32xf32>
    %128 = arith.negf %127 : vector<2x32xf32>
    %129 = math.exp %128 : vector<2x32xf32>
    %cst_34 = arith.constant 1.000000e+00 : f32
    %130 = vector.broadcast %cst_34 : f32 to vector<2x32xf32>
    %131 = arith.addf %130, %129 : vector<2x32xf32>
    %132 = arith.divf %130, %131 : vector<2x32xf32>
    %133 = vector.extract_strided_slice %113 {offsets = [0, 64], sizes = [2, 32], strides = [1, 1]} : vector<2x96xf32> to vector<2x32xf32>
    %134 = vector.extract_strided_slice %116 {offsets = [0, 64], sizes = [2, 32], strides = [1, 1]} : vector<2x96xf32> to vector<2x32xf32>
    %135 = arith.mulf %124, %134 : vector<2x32xf32>
    %136 = arith.addf %133, %135 : vector<2x32xf32>
    %137 = math.tanh %136 : vector<2x32xf32>
    %cst_35 = arith.constant 1.000000e+00 : f32
    %138 = vector.broadcast %cst_35 : f32 to vector<2x32xf32>
    %139 = arith.subf %138, %132 : vector<2x32xf32>
    %140 = arith.mulf %139, %137 : vector<2x32xf32>
    %141 = arith.mulf %132, %111 : vector<2x32xf32>
    %142 = arith.addf %140, %141 : vector<2x32xf32>
    %143 = vector.extract_strided_slice %7 {offsets = [4, 0, 0], sizes = [1, 2, 96], strides = [1, 1, 1]} : vector<8x2x96xf32> to vector<1x2x96xf32>
    %144 = vector.shape_cast %143 : vector<1x2x96xf32> to vector<2x96xf32>
    %cst_36 = arith.constant dense<0.000000e+00> : vector<2x96xf32>
    %145 = tpu.matmul %142, %14, %cst_36 {dimension_numbers = #tpu.dot_dimension_numbers<[1], [0], [0], [1], [0, 0, 1, 1], [], []>} : vector<2x32xf32>, vector<32x96xf32>, vector<2x96xf32> -> vector<2x96xf32>
    %146 = vector.broadcast %15 : vector<1x96xf32> to vector<2x96xf32>
    %147 = arith.addf %145, %146 : vector<2x96xf32>
    %148 = vector.extract_strided_slice %144 {offsets = [0, 0], sizes = [2, 32], strides = [1, 1]} : vector<2x96xf32> to vector<2x32xf32>
    %149 = vector.extract_strided_slice %147 {offsets = [0, 0], sizes = [2, 32], strides = [1, 1]} : vector<2x96xf32> to vector<2x32xf32>
    %150 = arith.addf %148, %149 : vector<2x32xf32>
    %151 = arith.negf %150 : vector<2x32xf32>
    %152 = math.exp %151 : vector<2x32xf32>
    %cst_37 = arith.constant 1.000000e+00 : f32
    %153 = vector.broadcast %cst_37 : f32 to vector<2x32xf32>
    %154 = arith.addf %153, %152 : vector<2x32xf32>
    %155 = arith.divf %153, %154 : vector<2x32xf32>
    %156 = vector.extract_strided_slice %144 {offsets = [0, 32], sizes = [2, 32], strides = [1, 1]} : vector<2x96xf32> to vector<2x32xf32>
    %157 = vector.extract_strided_slice %147 {offsets = [0, 32], sizes = [2, 32], strides = [1, 1]} : vector<2x96xf32> to vector<2x32xf32>
    %158 = arith.addf %156, %157 : vector<2x32xf32>
    %159 = arith.negf %158 : vector<2x32xf32>
    %160 = math.exp %159 : vector<2x32xf32>
    %cst_38 = arith.constant 1.000000e+00 : f32
    %161 = vector.broadcast %cst_38 : f32 to vector<2x32xf32>
    %162 = arith.addf %161, %160 : vector<2x32xf32>
    %163 = arith.divf %161, %162 : vector<2x32xf32>
    %164 = vector.extract_strided_slice %144 {offsets = [0, 64], sizes = [2, 32], strides = [1, 1]} : vector<2x96xf32> to vector<2x32xf32>
    %165 = vector.extract_strided_slice %147 {offsets = [0, 64], sizes = [2, 32], strides = [1, 1]} : vector<2x96xf32> to vector<2x32xf32>
    %166 = arith.mulf %155, %165 : vector<2x32xf32>
    %167 = arith.addf %164, %166 : vector<2x32xf32>
    %168 = math.tanh %167 : vector<2x32xf32>
    %cst_39 = arith.constant 1.000000e+00 : f32
    %169 = vector.broadcast %cst_39 : f32 to vector<2x32xf32>
    %170 = arith.subf %169, %163 : vector<2x32xf32>
    %171 = arith.mulf %170, %168 : vector<2x32xf32>
    %172 = arith.mulf %163, %142 : vector<2x32xf32>
    %173 = arith.addf %171, %172 : vector<2x32xf32>
    %174 = vector.extract_strided_slice %7 {offsets = [5, 0, 0], sizes = [1, 2, 96], strides = [1, 1, 1]} : vector<8x2x96xf32> to vector<1x2x96xf32>
    %175 = vector.shape_cast %174 : vector<1x2x96xf32> to vector<2x96xf32>
    %cst_40 = arith.constant dense<0.000000e+00> : vector<2x96xf32>
    %176 = tpu.matmul %173, %14, %cst_40 {dimension_numbers = #tpu.dot_dimension_numbers<[1], [0], [0], [1], [0, 0, 1, 1], [], []>} : vector<2x32xf32>, vector<32x96xf32>, vector<2x96xf32> -> vector<2x96xf32>
    %177 = vector.broadcast %15 : vector<1x96xf32> to vector<2x96xf32>
    %178 = arith.addf %176, %177 : vector<2x96xf32>
    %179 = vector.extract_strided_slice %175 {offsets = [0, 0], sizes = [2, 32], strides = [1, 1]} : vector<2x96xf32> to vector<2x32xf32>
    %180 = vector.extract_strided_slice %178 {offsets = [0, 0], sizes = [2, 32], strides = [1, 1]} : vector<2x96xf32> to vector<2x32xf32>
    %181 = arith.addf %179, %180 : vector<2x32xf32>
    %182 = arith.negf %181 : vector<2x32xf32>
    %183 = math.exp %182 : vector<2x32xf32>
    %cst_41 = arith.constant 1.000000e+00 : f32
    %184 = vector.broadcast %cst_41 : f32 to vector<2x32xf32>
    %185 = arith.addf %184, %183 : vector<2x32xf32>
    %186 = arith.divf %184, %185 : vector<2x32xf32>
    %187 = vector.extract_strided_slice %175 {offsets = [0, 32], sizes = [2, 32], strides = [1, 1]} : vector<2x96xf32> to vector<2x32xf32>
    %188 = vector.extract_strided_slice %178 {offsets = [0, 32], sizes = [2, 32], strides = [1, 1]} : vector<2x96xf32> to vector<2x32xf32>
    %189 = arith.addf %187, %188 : vector<2x32xf32>
    %190 = arith.negf %189 : vector<2x32xf32>
    %191 = math.exp %190 : vector<2x32xf32>
    %cst_42 = arith.constant 1.000000e+00 : f32
    %192 = vector.broadcast %cst_42 : f32 to vector<2x32xf32>
    %193 = arith.addf %192, %191 : vector<2x32xf32>
    %194 = arith.divf %192, %193 : vector<2x32xf32>
    %195 = vector.extract_strided_slice %175 {offsets = [0, 64], sizes = [2, 32], strides = [1, 1]} : vector<2x96xf32> to vector<2x32xf32>
    %196 = vector.extract_strided_slice %178 {offsets = [0, 64], sizes = [2, 32], strides = [1, 1]} : vector<2x96xf32> to vector<2x32xf32>
    %197 = arith.mulf %186, %196 : vector<2x32xf32>
    %198 = arith.addf %195, %197 : vector<2x32xf32>
    %199 = math.tanh %198 : vector<2x32xf32>
    %cst_43 = arith.constant 1.000000e+00 : f32
    %200 = vector.broadcast %cst_43 : f32 to vector<2x32xf32>
    %201 = arith.subf %200, %194 : vector<2x32xf32>
    %202 = arith.mulf %201, %199 : vector<2x32xf32>
    %203 = arith.mulf %194, %173 : vector<2x32xf32>
    %204 = arith.addf %202, %203 : vector<2x32xf32>
    %205 = vector.extract_strided_slice %7 {offsets = [6, 0, 0], sizes = [1, 2, 96], strides = [1, 1, 1]} : vector<8x2x96xf32> to vector<1x2x96xf32>
    %206 = vector.shape_cast %205 : vector<1x2x96xf32> to vector<2x96xf32>
    %cst_44 = arith.constant dense<0.000000e+00> : vector<2x96xf32>
    %207 = tpu.matmul %204, %14, %cst_44 {dimension_numbers = #tpu.dot_dimension_numbers<[1], [0], [0], [1], [0, 0, 1, 1], [], []>} : vector<2x32xf32>, vector<32x96xf32>, vector<2x96xf32> -> vector<2x96xf32>
    %208 = vector.broadcast %15 : vector<1x96xf32> to vector<2x96xf32>
    %209 = arith.addf %207, %208 : vector<2x96xf32>
    %210 = vector.extract_strided_slice %206 {offsets = [0, 0], sizes = [2, 32], strides = [1, 1]} : vector<2x96xf32> to vector<2x32xf32>
    %211 = vector.extract_strided_slice %209 {offsets = [0, 0], sizes = [2, 32], strides = [1, 1]} : vector<2x96xf32> to vector<2x32xf32>
    %212 = arith.addf %210, %211 : vector<2x32xf32>
    %213 = arith.negf %212 : vector<2x32xf32>
    %214 = math.exp %213 : vector<2x32xf32>
    %cst_45 = arith.constant 1.000000e+00 : f32
    %215 = vector.broadcast %cst_45 : f32 to vector<2x32xf32>
    %216 = arith.addf %215, %214 : vector<2x32xf32>
    %217 = arith.divf %215, %216 : vector<2x32xf32>
    %218 = vector.extract_strided_slice %206 {offsets = [0, 32], sizes = [2, 32], strides = [1, 1]} : vector<2x96xf32> to vector<2x32xf32>
    %219 = vector.extract_strided_slice %209 {offsets = [0, 32], sizes = [2, 32], strides = [1, 1]} : vector<2x96xf32> to vector<2x32xf32>
    %220 = arith.addf %218, %219 : vector<2x32xf32>
    %221 = arith.negf %220 : vector<2x32xf32>
    %222 = math.exp %221 : vector<2x32xf32>
    %cst_46 = arith.constant 1.000000e+00 : f32
    %223 = vector.broadcast %cst_46 : f32 to vector<2x32xf32>
    %224 = arith.addf %223, %222 : vector<2x32xf32>
    %225 = arith.divf %223, %224 : vector<2x32xf32>
    %226 = vector.extract_strided_slice %206 {offsets = [0, 64], sizes = [2, 32], strides = [1, 1]} : vector<2x96xf32> to vector<2x32xf32>
    %227 = vector.extract_strided_slice %209 {offsets = [0, 64], sizes = [2, 32], strides = [1, 1]} : vector<2x96xf32> to vector<2x32xf32>
    %228 = arith.mulf %217, %227 : vector<2x32xf32>
    %229 = arith.addf %226, %228 : vector<2x32xf32>
    %230 = math.tanh %229 : vector<2x32xf32>
    %cst_47 = arith.constant 1.000000e+00 : f32
    %231 = vector.broadcast %cst_47 : f32 to vector<2x32xf32>
    %232 = arith.subf %231, %225 : vector<2x32xf32>
    %233 = arith.mulf %232, %230 : vector<2x32xf32>
    %234 = arith.mulf %225, %204 : vector<2x32xf32>
    %235 = arith.addf %233, %234 : vector<2x32xf32>
    %236 = vector.extract_strided_slice %7 {offsets = [7, 0, 0], sizes = [1, 2, 96], strides = [1, 1, 1]} : vector<8x2x96xf32> to vector<1x2x96xf32>
    %237 = vector.shape_cast %236 : vector<1x2x96xf32> to vector<2x96xf32>
    %cst_48 = arith.constant dense<0.000000e+00> : vector<2x96xf32>
    %238 = tpu.matmul %235, %14, %cst_48 {dimension_numbers = #tpu.dot_dimension_numbers<[1], [0], [0], [1], [0, 0, 1, 1], [], []>} : vector<2x32xf32>, vector<32x96xf32>, vector<2x96xf32> -> vector<2x96xf32>
    %239 = vector.broadcast %15 : vector<1x96xf32> to vector<2x96xf32>
    %240 = arith.addf %238, %239 : vector<2x96xf32>
    %241 = vector.extract_strided_slice %237 {offsets = [0, 0], sizes = [2, 32], strides = [1, 1]} : vector<2x96xf32> to vector<2x32xf32>
    %242 = vector.extract_strided_slice %240 {offsets = [0, 0], sizes = [2, 32], strides = [1, 1]} : vector<2x96xf32> to vector<2x32xf32>
    %243 = arith.addf %241, %242 : vector<2x32xf32>
    %244 = arith.negf %243 : vector<2x32xf32>
    %245 = math.exp %244 : vector<2x32xf32>
    %cst_49 = arith.constant 1.000000e+00 : f32
    %246 = vector.broadcast %cst_49 : f32 to vector<2x32xf32>
    %247 = arith.addf %246, %245 : vector<2x32xf32>
    %248 = arith.divf %246, %247 : vector<2x32xf32>
    %249 = vector.extract_strided_slice %237 {offsets = [0, 32], sizes = [2, 32], strides = [1, 1]} : vector<2x96xf32> to vector<2x32xf32>
    %250 = vector.extract_strided_slice %240 {offsets = [0, 32], sizes = [2, 32], strides = [1, 1]} : vector<2x96xf32> to vector<2x32xf32>
    %251 = arith.addf %249, %250 : vector<2x32xf32>
    %252 = arith.negf %251 : vector<2x32xf32>
    %253 = math.exp %252 : vector<2x32xf32>
    %cst_50 = arith.constant 1.000000e+00 : f32
    %254 = vector.broadcast %cst_50 : f32 to vector<2x32xf32>
    %255 = arith.addf %254, %253 : vector<2x32xf32>
    %256 = arith.divf %254, %255 : vector<2x32xf32>
    %257 = vector.extract_strided_slice %237 {offsets = [0, 64], sizes = [2, 32], strides = [1, 1]} : vector<2x96xf32> to vector<2x32xf32>
    %258 = vector.extract_strided_slice %240 {offsets = [0, 64], sizes = [2, 32], strides = [1, 1]} : vector<2x96xf32> to vector<2x32xf32>
    %259 = arith.mulf %248, %258 : vector<2x32xf32>
    %260 = arith.addf %257, %259 : vector<2x32xf32>
    %261 = math.tanh %260 : vector<2x32xf32>
    %cst_51 = arith.constant 1.000000e+00 : f32
    %262 = vector.broadcast %cst_51 : f32 to vector<2x32xf32>
    %263 = arith.subf %262, %256 : vector<2x32xf32>
    %264 = arith.mulf %263, %261 : vector<2x32xf32>
    %265 = arith.mulf %256, %235 : vector<2x32xf32>
    %266 = arith.addf %264, %265 : vector<2x32xf32>
    %cst_52 = arith.constant 0.000000e+00 : f32
    %267 = vector.broadcast %cst_52 : f32 to vector<2x32xf32>
    %268 = vector.extract_strided_slice %13 {offsets = [7, 0, 0], sizes = [1, 2, 96], strides = [1, 1, 1]} : vector<8x2x96xf32> to vector<1x2x96xf32>
    %269 = vector.shape_cast %268 : vector<1x2x96xf32> to vector<2x96xf32>
    %cst_53 = arith.constant dense<0.000000e+00> : vector<2x96xf32>
    %270 = tpu.matmul %267, %16, %cst_53 {dimension_numbers = #tpu.dot_dimension_numbers<[1], [0], [0], [1], [0, 0, 1, 1], [], []>} : vector<2x32xf32>, vector<32x96xf32>, vector<2x96xf32> -> vector<2x96xf32>
    %271 = vector.broadcast %17 : vector<1x96xf32> to vector<2x96xf32>
    %272 = arith.addf %270, %271 : vector<2x96xf32>
    %273 = vector.extract_strided_slice %269 {offsets = [0, 0], sizes = [2, 32], strides = [1, 1]} : vector<2x96xf32> to vector<2x32xf32>
    %274 = vector.extract_strided_slice %272 {offsets = [0, 0], sizes = [2, 32], strides = [1, 1]} : vector<2x96xf32> to vector<2x32xf32>
    %275 = arith.addf %273, %274 : vector<2x32xf32>
    %276 = arith.negf %275 : vector<2x32xf32>
    %277 = math.exp %276 : vector<2x32xf32>
    %cst_54 = arith.constant 1.000000e+00 : f32
    %278 = vector.broadcast %cst_54 : f32 to vector<2x32xf32>
    %279 = arith.addf %278, %277 : vector<2x32xf32>
    %280 = arith.divf %278, %279 : vector<2x32xf32>
    %281 = vector.extract_strided_slice %269 {offsets = [0, 32], sizes = [2, 32], strides = [1, 1]} : vector<2x96xf32> to vector<2x32xf32>
    %282 = vector.extract_strided_slice %272 {offsets = [0, 32], sizes = [2, 32], strides = [1, 1]} : vector<2x96xf32> to vector<2x32xf32>
    %283 = arith.addf %281, %282 : vector<2x32xf32>
    %284 = arith.negf %283 : vector<2x32xf32>
    %285 = math.exp %284 : vector<2x32xf32>
    %cst_55 = arith.constant 1.000000e+00 : f32
    %286 = vector.broadcast %cst_55 : f32 to vector<2x32xf32>
    %287 = arith.addf %286, %285 : vector<2x32xf32>
    %288 = arith.divf %286, %287 : vector<2x32xf32>
    %289 = vector.extract_strided_slice %269 {offsets = [0, 64], sizes = [2, 32], strides = [1, 1]} : vector<2x96xf32> to vector<2x32xf32>
    %290 = vector.extract_strided_slice %272 {offsets = [0, 64], sizes = [2, 32], strides = [1, 1]} : vector<2x96xf32> to vector<2x32xf32>
    %291 = arith.mulf %280, %290 : vector<2x32xf32>
    %292 = arith.addf %289, %291 : vector<2x32xf32>
    %293 = math.tanh %292 : vector<2x32xf32>
    %cst_56 = arith.constant 1.000000e+00 : f32
    %294 = vector.broadcast %cst_56 : f32 to vector<2x32xf32>
    %295 = arith.subf %294, %288 : vector<2x32xf32>
    %296 = arith.mulf %295, %293 : vector<2x32xf32>
    %297 = arith.mulf %288, %267 : vector<2x32xf32>
    %298 = arith.addf %296, %297 : vector<2x32xf32>
    %299 = vector.extract_strided_slice %13 {offsets = [6, 0, 0], sizes = [1, 2, 96], strides = [1, 1, 1]} : vector<8x2x96xf32> to vector<1x2x96xf32>
    %300 = vector.shape_cast %299 : vector<1x2x96xf32> to vector<2x96xf32>
    %cst_57 = arith.constant dense<0.000000e+00> : vector<2x96xf32>
    %301 = tpu.matmul %298, %16, %cst_57 {dimension_numbers = #tpu.dot_dimension_numbers<[1], [0], [0], [1], [0, 0, 1, 1], [], []>} : vector<2x32xf32>, vector<32x96xf32>, vector<2x96xf32> -> vector<2x96xf32>
    %302 = vector.broadcast %17 : vector<1x96xf32> to vector<2x96xf32>
    %303 = arith.addf %301, %302 : vector<2x96xf32>
    %304 = vector.extract_strided_slice %300 {offsets = [0, 0], sizes = [2, 32], strides = [1, 1]} : vector<2x96xf32> to vector<2x32xf32>
    %305 = vector.extract_strided_slice %303 {offsets = [0, 0], sizes = [2, 32], strides = [1, 1]} : vector<2x96xf32> to vector<2x32xf32>
    %306 = arith.addf %304, %305 : vector<2x32xf32>
    %307 = arith.negf %306 : vector<2x32xf32>
    %308 = math.exp %307 : vector<2x32xf32>
    %cst_58 = arith.constant 1.000000e+00 : f32
    %309 = vector.broadcast %cst_58 : f32 to vector<2x32xf32>
    %310 = arith.addf %309, %308 : vector<2x32xf32>
    %311 = arith.divf %309, %310 : vector<2x32xf32>
    %312 = vector.extract_strided_slice %300 {offsets = [0, 32], sizes = [2, 32], strides = [1, 1]} : vector<2x96xf32> to vector<2x32xf32>
    %313 = vector.extract_strided_slice %303 {offsets = [0, 32], sizes = [2, 32], strides = [1, 1]} : vector<2x96xf32> to vector<2x32xf32>
    %314 = arith.addf %312, %313 : vector<2x32xf32>
    %315 = arith.negf %314 : vector<2x32xf32>
    %316 = math.exp %315 : vector<2x32xf32>
    %cst_59 = arith.constant 1.000000e+00 : f32
    %317 = vector.broadcast %cst_59 : f32 to vector<2x32xf32>
    %318 = arith.addf %317, %316 : vector<2x32xf32>
    %319 = arith.divf %317, %318 : vector<2x32xf32>
    %320 = vector.extract_strided_slice %300 {offsets = [0, 64], sizes = [2, 32], strides = [1, 1]} : vector<2x96xf32> to vector<2x32xf32>
    %321 = vector.extract_strided_slice %303 {offsets = [0, 64], sizes = [2, 32], strides = [1, 1]} : vector<2x96xf32> to vector<2x32xf32>
    %322 = arith.mulf %311, %321 : vector<2x32xf32>
    %323 = arith.addf %320, %322 : vector<2x32xf32>
    %324 = math.tanh %323 : vector<2x32xf32>
    %cst_60 = arith.constant 1.000000e+00 : f32
    %325 = vector.broadcast %cst_60 : f32 to vector<2x32xf32>
    %326 = arith.subf %325, %319 : vector<2x32xf32>
    %327 = arith.mulf %326, %324 : vector<2x32xf32>
    %328 = arith.mulf %319, %298 : vector<2x32xf32>
    %329 = arith.addf %327, %328 : vector<2x32xf32>
    %330 = vector.extract_strided_slice %13 {offsets = [5, 0, 0], sizes = [1, 2, 96], strides = [1, 1, 1]} : vector<8x2x96xf32> to vector<1x2x96xf32>
    %331 = vector.shape_cast %330 : vector<1x2x96xf32> to vector<2x96xf32>
    %cst_61 = arith.constant dense<0.000000e+00> : vector<2x96xf32>
    %332 = tpu.matmul %329, %16, %cst_61 {dimension_numbers = #tpu.dot_dimension_numbers<[1], [0], [0], [1], [0, 0, 1, 1], [], []>} : vector<2x32xf32>, vector<32x96xf32>, vector<2x96xf32> -> vector<2x96xf32>
    %333 = vector.broadcast %17 : vector<1x96xf32> to vector<2x96xf32>
    %334 = arith.addf %332, %333 : vector<2x96xf32>
    %335 = vector.extract_strided_slice %331 {offsets = [0, 0], sizes = [2, 32], strides = [1, 1]} : vector<2x96xf32> to vector<2x32xf32>
    %336 = vector.extract_strided_slice %334 {offsets = [0, 0], sizes = [2, 32], strides = [1, 1]} : vector<2x96xf32> to vector<2x32xf32>
    %337 = arith.addf %335, %336 : vector<2x32xf32>
    %338 = arith.negf %337 : vector<2x32xf32>
    %339 = math.exp %338 : vector<2x32xf32>
    %cst_62 = arith.constant 1.000000e+00 : f32
    %340 = vector.broadcast %cst_62 : f32 to vector<2x32xf32>
    %341 = arith.addf %340, %339 : vector<2x32xf32>
    %342 = arith.divf %340, %341 : vector<2x32xf32>
    %343 = vector.extract_strided_slice %331 {offsets = [0, 32], sizes = [2, 32], strides = [1, 1]} : vector<2x96xf32> to vector<2x32xf32>
    %344 = vector.extract_strided_slice %334 {offsets = [0, 32], sizes = [2, 32], strides = [1, 1]} : vector<2x96xf32> to vector<2x32xf32>
    %345 = arith.addf %343, %344 : vector<2x32xf32>
    %346 = arith.negf %345 : vector<2x32xf32>
    %347 = math.exp %346 : vector<2x32xf32>
    %cst_63 = arith.constant 1.000000e+00 : f32
    %348 = vector.broadcast %cst_63 : f32 to vector<2x32xf32>
    %349 = arith.addf %348, %347 : vector<2x32xf32>
    %350 = arith.divf %348, %349 : vector<2x32xf32>
    %351 = vector.extract_strided_slice %331 {offsets = [0, 64], sizes = [2, 32], strides = [1, 1]} : vector<2x96xf32> to vector<2x32xf32>
    %352 = vector.extract_strided_slice %334 {offsets = [0, 64], sizes = [2, 32], strides = [1, 1]} : vector<2x96xf32> to vector<2x32xf32>
    %353 = arith.mulf %342, %352 : vector<2x32xf32>
    %354 = arith.addf %351, %353 : vector<2x32xf32>
    %355 = math.tanh %354 : vector<2x32xf32>
    %cst_64 = arith.constant 1.000000e+00 : f32
    %356 = vector.broadcast %cst_64 : f32 to vector<2x32xf32>
    %357 = arith.subf %356, %350 : vector<2x32xf32>
    %358 = arith.mulf %357, %355 : vector<2x32xf32>
    %359 = arith.mulf %350, %329 : vector<2x32xf32>
    %360 = arith.addf %358, %359 : vector<2x32xf32>
    %361 = vector.extract_strided_slice %13 {offsets = [4, 0, 0], sizes = [1, 2, 96], strides = [1, 1, 1]} : vector<8x2x96xf32> to vector<1x2x96xf32>
    %362 = vector.shape_cast %361 : vector<1x2x96xf32> to vector<2x96xf32>
    %cst_65 = arith.constant dense<0.000000e+00> : vector<2x96xf32>
    %363 = tpu.matmul %360, %16, %cst_65 {dimension_numbers = #tpu.dot_dimension_numbers<[1], [0], [0], [1], [0, 0, 1, 1], [], []>} : vector<2x32xf32>, vector<32x96xf32>, vector<2x96xf32> -> vector<2x96xf32>
    %364 = vector.broadcast %17 : vector<1x96xf32> to vector<2x96xf32>
    %365 = arith.addf %363, %364 : vector<2x96xf32>
    %366 = vector.extract_strided_slice %362 {offsets = [0, 0], sizes = [2, 32], strides = [1, 1]} : vector<2x96xf32> to vector<2x32xf32>
    %367 = vector.extract_strided_slice %365 {offsets = [0, 0], sizes = [2, 32], strides = [1, 1]} : vector<2x96xf32> to vector<2x32xf32>
    %368 = arith.addf %366, %367 : vector<2x32xf32>
    %369 = arith.negf %368 : vector<2x32xf32>
    %370 = math.exp %369 : vector<2x32xf32>
    %cst_66 = arith.constant 1.000000e+00 : f32
    %371 = vector.broadcast %cst_66 : f32 to vector<2x32xf32>
    %372 = arith.addf %371, %370 : vector<2x32xf32>
    %373 = arith.divf %371, %372 : vector<2x32xf32>
    %374 = vector.extract_strided_slice %362 {offsets = [0, 32], sizes = [2, 32], strides = [1, 1]} : vector<2x96xf32> to vector<2x32xf32>
    %375 = vector.extract_strided_slice %365 {offsets = [0, 32], sizes = [2, 32], strides = [1, 1]} : vector<2x96xf32> to vector<2x32xf32>
    %376 = arith.addf %374, %375 : vector<2x32xf32>
    %377 = arith.negf %376 : vector<2x32xf32>
    %378 = math.exp %377 : vector<2x32xf32>
    %cst_67 = arith.constant 1.000000e+00 : f32
    %379 = vector.broadcast %cst_67 : f32 to vector<2x32xf32>
    %380 = arith.addf %379, %378 : vector<2x32xf32>
    %381 = arith.divf %379, %380 : vector<2x32xf32>
    %382 = vector.extract_strided_slice %362 {offsets = [0, 64], sizes = [2, 32], strides = [1, 1]} : vector<2x96xf32> to vector<2x32xf32>
    %383 = vector.extract_strided_slice %365 {offsets = [0, 64], sizes = [2, 32], strides = [1, 1]} : vector<2x96xf32> to vector<2x32xf32>
    %384 = arith.mulf %373, %383 : vector<2x32xf32>
    %385 = arith.addf %382, %384 : vector<2x32xf32>
    %386 = math.tanh %385 : vector<2x32xf32>
    %cst_68 = arith.constant 1.000000e+00 : f32
    %387 = vector.broadcast %cst_68 : f32 to vector<2x32xf32>
    %388 = arith.subf %387, %381 : vector<2x32xf32>
    %389 = arith.mulf %388, %386 : vector<2x32xf32>
    %390 = arith.mulf %381, %360 : vector<2x32xf32>
    %391 = arith.addf %389, %390 : vector<2x32xf32>
    %392 = vector.extract_strided_slice %13 {offsets = [3, 0, 0], sizes = [1, 2, 96], strides = [1, 1, 1]} : vector<8x2x96xf32> to vector<1x2x96xf32>
    %393 = vector.shape_cast %392 : vector<1x2x96xf32> to vector<2x96xf32>
    %cst_69 = arith.constant dense<0.000000e+00> : vector<2x96xf32>
    %394 = tpu.matmul %391, %16, %cst_69 {dimension_numbers = #tpu.dot_dimension_numbers<[1], [0], [0], [1], [0, 0, 1, 1], [], []>} : vector<2x32xf32>, vector<32x96xf32>, vector<2x96xf32> -> vector<2x96xf32>
    %395 = vector.broadcast %17 : vector<1x96xf32> to vector<2x96xf32>
    %396 = arith.addf %394, %395 : vector<2x96xf32>
    %397 = vector.extract_strided_slice %393 {offsets = [0, 0], sizes = [2, 32], strides = [1, 1]} : vector<2x96xf32> to vector<2x32xf32>
    %398 = vector.extract_strided_slice %396 {offsets = [0, 0], sizes = [2, 32], strides = [1, 1]} : vector<2x96xf32> to vector<2x32xf32>
    %399 = arith.addf %397, %398 : vector<2x32xf32>
    %400 = arith.negf %399 : vector<2x32xf32>
    %401 = math.exp %400 : vector<2x32xf32>
    %cst_70 = arith.constant 1.000000e+00 : f32
    %402 = vector.broadcast %cst_70 : f32 to vector<2x32xf32>
    %403 = arith.addf %402, %401 : vector<2x32xf32>
    %404 = arith.divf %402, %403 : vector<2x32xf32>
    %405 = vector.extract_strided_slice %393 {offsets = [0, 32], sizes = [2, 32], strides = [1, 1]} : vector<2x96xf32> to vector<2x32xf32>
    %406 = vector.extract_strided_slice %396 {offsets = [0, 32], sizes = [2, 32], strides = [1, 1]} : vector<2x96xf32> to vector<2x32xf32>
    %407 = arith.addf %405, %406 : vector<2x32xf32>
    %408 = arith.negf %407 : vector<2x32xf32>
    %409 = math.exp %408 : vector<2x32xf32>
    %cst_71 = arith.constant 1.000000e+00 : f32
    %410 = vector.broadcast %cst_71 : f32 to vector<2x32xf32>
    %411 = arith.addf %410, %409 : vector<2x32xf32>
    %412 = arith.divf %410, %411 : vector<2x32xf32>
    %413 = vector.extract_strided_slice %393 {offsets = [0, 64], sizes = [2, 32], strides = [1, 1]} : vector<2x96xf32> to vector<2x32xf32>
    %414 = vector.extract_strided_slice %396 {offsets = [0, 64], sizes = [2, 32], strides = [1, 1]} : vector<2x96xf32> to vector<2x32xf32>
    %415 = arith.mulf %404, %414 : vector<2x32xf32>
    %416 = arith.addf %413, %415 : vector<2x32xf32>
    %417 = math.tanh %416 : vector<2x32xf32>
    %cst_72 = arith.constant 1.000000e+00 : f32
    %418 = vector.broadcast %cst_72 : f32 to vector<2x32xf32>
    %419 = arith.subf %418, %412 : vector<2x32xf32>
    %420 = arith.mulf %419, %417 : vector<2x32xf32>
    %421 = arith.mulf %412, %391 : vector<2x32xf32>
    %422 = arith.addf %420, %421 : vector<2x32xf32>
    %423 = vector.extract_strided_slice %13 {offsets = [2, 0, 0], sizes = [1, 2, 96], strides = [1, 1, 1]} : vector<8x2x96xf32> to vector<1x2x96xf32>
    %424 = vector.shape_cast %423 : vector<1x2x96xf32> to vector<2x96xf32>
    %cst_73 = arith.constant dense<0.000000e+00> : vector<2x96xf32>
    %425 = tpu.matmul %422, %16, %cst_73 {dimension_numbers = #tpu.dot_dimension_numbers<[1], [0], [0], [1], [0, 0, 1, 1], [], []>} : vector<2x32xf32>, vector<32x96xf32>, vector<2x96xf32> -> vector<2x96xf32>
    %426 = vector.broadcast %17 : vector<1x96xf32> to vector<2x96xf32>
    %427 = arith.addf %425, %426 : vector<2x96xf32>
    %428 = vector.extract_strided_slice %424 {offsets = [0, 0], sizes = [2, 32], strides = [1, 1]} : vector<2x96xf32> to vector<2x32xf32>
    %429 = vector.extract_strided_slice %427 {offsets = [0, 0], sizes = [2, 32], strides = [1, 1]} : vector<2x96xf32> to vector<2x32xf32>
    %430 = arith.addf %428, %429 : vector<2x32xf32>
    %431 = arith.negf %430 : vector<2x32xf32>
    %432 = math.exp %431 : vector<2x32xf32>
    %cst_74 = arith.constant 1.000000e+00 : f32
    %433 = vector.broadcast %cst_74 : f32 to vector<2x32xf32>
    %434 = arith.addf %433, %432 : vector<2x32xf32>
    %435 = arith.divf %433, %434 : vector<2x32xf32>
    %436 = vector.extract_strided_slice %424 {offsets = [0, 32], sizes = [2, 32], strides = [1, 1]} : vector<2x96xf32> to vector<2x32xf32>
    %437 = vector.extract_strided_slice %427 {offsets = [0, 32], sizes = [2, 32], strides = [1, 1]} : vector<2x96xf32> to vector<2x32xf32>
    %438 = arith.addf %436, %437 : vector<2x32xf32>
    %439 = arith.negf %438 : vector<2x32xf32>
    %440 = math.exp %439 : vector<2x32xf32>
    %cst_75 = arith.constant 1.000000e+00 : f32
    %441 = vector.broadcast %cst_75 : f32 to vector<2x32xf32>
    %442 = arith.addf %441, %440 : vector<2x32xf32>
    %443 = arith.divf %441, %442 : vector<2x32xf32>
    %444 = vector.extract_strided_slice %424 {offsets = [0, 64], sizes = [2, 32], strides = [1, 1]} : vector<2x96xf32> to vector<2x32xf32>
    %445 = vector.extract_strided_slice %427 {offsets = [0, 64], sizes = [2, 32], strides = [1, 1]} : vector<2x96xf32> to vector<2x32xf32>
    %446 = arith.mulf %435, %445 : vector<2x32xf32>
    %447 = arith.addf %444, %446 : vector<2x32xf32>
    %448 = math.tanh %447 : vector<2x32xf32>
    %cst_76 = arith.constant 1.000000e+00 : f32
    %449 = vector.broadcast %cst_76 : f32 to vector<2x32xf32>
    %450 = arith.subf %449, %443 : vector<2x32xf32>
    %451 = arith.mulf %450, %448 : vector<2x32xf32>
    %452 = arith.mulf %443, %422 : vector<2x32xf32>
    %453 = arith.addf %451, %452 : vector<2x32xf32>
    %454 = vector.extract_strided_slice %13 {offsets = [1, 0, 0], sizes = [1, 2, 96], strides = [1, 1, 1]} : vector<8x2x96xf32> to vector<1x2x96xf32>
    %455 = vector.shape_cast %454 : vector<1x2x96xf32> to vector<2x96xf32>
    %cst_77 = arith.constant dense<0.000000e+00> : vector<2x96xf32>
    %456 = tpu.matmul %453, %16, %cst_77 {dimension_numbers = #tpu.dot_dimension_numbers<[1], [0], [0], [1], [0, 0, 1, 1], [], []>} : vector<2x32xf32>, vector<32x96xf32>, vector<2x96xf32> -> vector<2x96xf32>
    %457 = vector.broadcast %17 : vector<1x96xf32> to vector<2x96xf32>
    %458 = arith.addf %456, %457 : vector<2x96xf32>
    %459 = vector.extract_strided_slice %455 {offsets = [0, 0], sizes = [2, 32], strides = [1, 1]} : vector<2x96xf32> to vector<2x32xf32>
    %460 = vector.extract_strided_slice %458 {offsets = [0, 0], sizes = [2, 32], strides = [1, 1]} : vector<2x96xf32> to vector<2x32xf32>
    %461 = arith.addf %459, %460 : vector<2x32xf32>
    %462 = arith.negf %461 : vector<2x32xf32>
    %463 = math.exp %462 : vector<2x32xf32>
    %cst_78 = arith.constant 1.000000e+00 : f32
    %464 = vector.broadcast %cst_78 : f32 to vector<2x32xf32>
    %465 = arith.addf %464, %463 : vector<2x32xf32>
    %466 = arith.divf %464, %465 : vector<2x32xf32>
    %467 = vector.extract_strided_slice %455 {offsets = [0, 32], sizes = [2, 32], strides = [1, 1]} : vector<2x96xf32> to vector<2x32xf32>
    %468 = vector.extract_strided_slice %458 {offsets = [0, 32], sizes = [2, 32], strides = [1, 1]} : vector<2x96xf32> to vector<2x32xf32>
    %469 = arith.addf %467, %468 : vector<2x32xf32>
    %470 = arith.negf %469 : vector<2x32xf32>
    %471 = math.exp %470 : vector<2x32xf32>
    %cst_79 = arith.constant 1.000000e+00 : f32
    %472 = vector.broadcast %cst_79 : f32 to vector<2x32xf32>
    %473 = arith.addf %472, %471 : vector<2x32xf32>
    %474 = arith.divf %472, %473 : vector<2x32xf32>
    %475 = vector.extract_strided_slice %455 {offsets = [0, 64], sizes = [2, 32], strides = [1, 1]} : vector<2x96xf32> to vector<2x32xf32>
    %476 = vector.extract_strided_slice %458 {offsets = [0, 64], sizes = [2, 32], strides = [1, 1]} : vector<2x96xf32> to vector<2x32xf32>
    %477 = arith.mulf %466, %476 : vector<2x32xf32>
    %478 = arith.addf %475, %477 : vector<2x32xf32>
    %479 = math.tanh %478 : vector<2x32xf32>
    %cst_80 = arith.constant 1.000000e+00 : f32
    %480 = vector.broadcast %cst_80 : f32 to vector<2x32xf32>
    %481 = arith.subf %480, %474 : vector<2x32xf32>
    %482 = arith.mulf %481, %479 : vector<2x32xf32>
    %483 = arith.mulf %474, %453 : vector<2x32xf32>
    %484 = arith.addf %482, %483 : vector<2x32xf32>
    %485 = vector.extract_strided_slice %13 {offsets = [0, 0, 0], sizes = [1, 2, 96], strides = [1, 1, 1]} : vector<8x2x96xf32> to vector<1x2x96xf32>
    %486 = vector.shape_cast %485 : vector<1x2x96xf32> to vector<2x96xf32>
    %cst_81 = arith.constant dense<0.000000e+00> : vector<2x96xf32>
    %487 = tpu.matmul %484, %16, %cst_81 {dimension_numbers = #tpu.dot_dimension_numbers<[1], [0], [0], [1], [0, 0, 1, 1], [], []>} : vector<2x32xf32>, vector<32x96xf32>, vector<2x96xf32> -> vector<2x96xf32>
    %488 = vector.broadcast %17 : vector<1x96xf32> to vector<2x96xf32>
    %489 = arith.addf %487, %488 : vector<2x96xf32>
    %490 = vector.extract_strided_slice %486 {offsets = [0, 0], sizes = [2, 32], strides = [1, 1]} : vector<2x96xf32> to vector<2x32xf32>
    %491 = vector.extract_strided_slice %489 {offsets = [0, 0], sizes = [2, 32], strides = [1, 1]} : vector<2x96xf32> to vector<2x32xf32>
    %492 = arith.addf %490, %491 : vector<2x32xf32>
    %493 = arith.negf %492 : vector<2x32xf32>
    %494 = math.exp %493 : vector<2x32xf32>
    %cst_82 = arith.constant 1.000000e+00 : f32
    %495 = vector.broadcast %cst_82 : f32 to vector<2x32xf32>
    %496 = arith.addf %495, %494 : vector<2x32xf32>
    %497 = arith.divf %495, %496 : vector<2x32xf32>
    %498 = vector.extract_strided_slice %486 {offsets = [0, 32], sizes = [2, 32], strides = [1, 1]} : vector<2x96xf32> to vector<2x32xf32>
    %499 = vector.extract_strided_slice %489 {offsets = [0, 32], sizes = [2, 32], strides = [1, 1]} : vector<2x96xf32> to vector<2x32xf32>
    %500 = arith.addf %498, %499 : vector<2x32xf32>
    %501 = arith.negf %500 : vector<2x32xf32>
    %502 = math.exp %501 : vector<2x32xf32>
    %cst_83 = arith.constant 1.000000e+00 : f32
    %503 = vector.broadcast %cst_83 : f32 to vector<2x32xf32>
    %504 = arith.addf %503, %502 : vector<2x32xf32>
    %505 = arith.divf %503, %504 : vector<2x32xf32>
    %506 = vector.extract_strided_slice %486 {offsets = [0, 64], sizes = [2, 32], strides = [1, 1]} : vector<2x96xf32> to vector<2x32xf32>
    %507 = vector.extract_strided_slice %489 {offsets = [0, 64], sizes = [2, 32], strides = [1, 1]} : vector<2x96xf32> to vector<2x32xf32>
    %508 = arith.mulf %497, %507 : vector<2x32xf32>
    %509 = arith.addf %506, %508 : vector<2x32xf32>
    %510 = math.tanh %509 : vector<2x32xf32>
    %cst_84 = arith.constant 1.000000e+00 : f32
    %511 = vector.broadcast %cst_84 : f32 to vector<2x32xf32>
    %512 = arith.subf %511, %505 : vector<2x32xf32>
    %513 = arith.mulf %512, %510 : vector<2x32xf32>
    %514 = arith.mulf %505, %484 : vector<2x32xf32>
    %515 = arith.addf %513, %514 : vector<2x32xf32>
    %516 = vector.shape_cast %49 : vector<2x32xf32> to vector<1x2x32xf32>
    %517 = vector.shape_cast %80 : vector<2x32xf32> to vector<1x2x32xf32>
    %518 = vector.shape_cast %111 : vector<2x32xf32> to vector<1x2x32xf32>
    %519 = vector.shape_cast %142 : vector<2x32xf32> to vector<1x2x32xf32>
    %520 = vector.shape_cast %173 : vector<2x32xf32> to vector<1x2x32xf32>
    %521 = vector.shape_cast %204 : vector<2x32xf32> to vector<1x2x32xf32>
    %522 = vector.shape_cast %235 : vector<2x32xf32> to vector<1x2x32xf32>
    %523 = vector.shape_cast %266 : vector<2x32xf32> to vector<1x2x32xf32>
    %524 = tpu.concatenate %516, %517, %518, %519, %520, %521, %522, %523 in 0 : vector<1x2x32xf32>, vector<1x2x32xf32>, vector<1x2x32xf32>, vector<1x2x32xf32>, vector<1x2x32xf32>, vector<1x2x32xf32>, vector<1x2x32xf32>, vector<1x2x32xf32> -> vector<8x2x32xf32>
    %525 = vector.shape_cast %515 : vector<2x32xf32> to vector<1x2x32xf32>
    %526 = vector.shape_cast %484 : vector<2x32xf32> to vector<1x2x32xf32>
    %527 = vector.shape_cast %453 : vector<2x32xf32> to vector<1x2x32xf32>
    %528 = vector.shape_cast %422 : vector<2x32xf32> to vector<1x2x32xf32>
    %529 = vector.shape_cast %391 : vector<2x32xf32> to vector<1x2x32xf32>
    %530 = vector.shape_cast %360 : vector<2x32xf32> to vector<1x2x32xf32>
    %531 = vector.shape_cast %329 : vector<2x32xf32> to vector<1x2x32xf32>
    %532 = vector.shape_cast %298 : vector<2x32xf32> to vector<1x2x32xf32>
    %533 = tpu.concatenate %525, %526, %527, %528, %529, %530, %531, %532 in 0 : vector<1x2x32xf32>, vector<1x2x32xf32>, vector<1x2x32xf32>, vector<1x2x32xf32>, vector<1x2x32xf32>, vector<1x2x32xf32>, vector<1x2x32xf32>, vector<1x2x32xf32> -> vector<8x2x32xf32>
    %534 = tpu.concatenate %524, %533 in 2 : vector<8x2x32xf32>, vector<8x2x32xf32> -> vector<8x2x64xf32>
    %c0_85 = arith.constant 0 : index
    %c0_86 = arith.constant 0 : index
    %c0_87 = arith.constant 0 : index
    %535 = vector.load %arg12[%c0_85, %c0_86, %c0_87] : memref<8x2x64xf32, #tpu.memory_space<vmem>>, vector<8x2x64xf32>
    tpu.vector_store %arg12[%c0_85, %c0_86, %c0_87], %534 {strides = array<i32>} : memref<8x2x64xf32, #tpu.memory_space<vmem>>, vector<8x2x64xf32>,
    %536 = tpu.concatenate %266, %515 in 1 : vector<2x32xf32>, vector<2x32xf32> -> vector<2x64xf32>
    %c0_88 = arith.constant 0 : index
    %c0_89 = arith.constant 0 : index
    %537 = vector.load %arg10[%c0_88, %c0_89] : memref<64x32xf32, #tpu.memory_space<vmem>>, vector<64x32xf32>
    %cst_90 = arith.constant dense<0.000000e+00> : vector<2x32xf32>
    %538 = tpu.matmul %536, %537, %cst_90 {dimension_numbers = #tpu.dot_dimension_numbers<[1], [0], [0], [1], [0, 0, 1, 1], [], []>} : vector<2x64xf32>, vector<64x32xf32>, vector<2x32xf32> -> vector<2x32xf32>
    %c0_91 = arith.constant 0 : index
    %c0_92 = arith.constant 0 : index
    %539 = vector.load %arg11[%c0_91, %c0_92] : memref<1x32xf32, #tpu.memory_space<vmem>>, vector<1x32xf32>
    %540 = vector.broadcast %539 : vector<1x32xf32> to vector<2x32xf32>
    %541 = arith.addf %538, %540 : vector<2x32xf32>
    %cst_93 = arith.constant 0.000000e+00 : f32
    %542 = vector.broadcast %cst_93 : f32 to vector<2x32xf32>
    %543 = arith.maximumf %541, %542 : vector<2x32xf32>
    %c0_94 = arith.constant 0 : index
    %c0_95 = arith.constant 0 : index
    %544 = vector.load %arg13[%c0_94, %c0_95] : memref<2x32xf32, #tpu.memory_space<vmem>>, vector<2x32xf32>
    tpu.vector_store %arg13[%c0_94, %c0_95], %543 {strides = array<i32>} : memref<2x32xf32, #tpu.memory_space<vmem>>, vector<2x32xf32>,
    return
  }
  func.func @transform_0(%arg0: i32) -> (i32, i32, i32) {
    %c0_i32 = arith.constant 0 : i32
    %c0_i32_0 = arith.constant 0 : i32
    %c0_i32_1 = arith.constant 0 : i32
    %c0_i32_2 = arith.constant 0 : i32
    return %c0_i32, %c0_i32_0, %c0_i32_1 : i32, i32, i32
  }
  func.func @transform_1(%arg0: i32) -> (i32, i32) {
    %c0_i32 = arith.constant 0 : i32
    %c0_i32_0 = arith.constant 0 : i32
    %c0_i32_1 = arith.constant 0 : i32
    return %c0_i32, %c0_i32_0 : i32, i32
  }
  func.func @transform_2(%arg0: i32) -> (i32, i32) {
    %c0_i32 = arith.constant 0 : i32
    %c0_i32_0 = arith.constant 0 : i32
    %c0_i32_1 = arith.constant 0 : i32
    return %c0_i32, %c0_i32_0 : i32, i32
  }
  func.func @transform_3(%arg0: i32) -> (i32, i32) {
    %c0_i32 = arith.constant 0 : i32
    %c0_i32_0 = arith.constant 0 : i32
    %c0_i32_1 = arith.constant 0 : i32
    return %c0_i32, %c0_i32_0 : i32, i32
  }
  func.func @transform_4(%arg0: i32) -> (i32, i32) {
    %c0_i32 = arith.constant 0 : i32
    %c0_i32_0 = arith.constant 0 : i32
    %c0_i32_1 = arith.constant 0 : i32
    return %c0_i32, %c0_i32_0 : i32, i32
  }
  func.func @transform_5(%arg0: i32) -> (i32, i32) {
    %c0_i32 = arith.constant 0 : i32
    %c0_i32_0 = arith.constant 0 : i32
    %c0_i32_1 = arith.constant 0 : i32
    return %c0_i32, %c0_i32_0 : i32, i32
  }
  func.func @transform_6(%arg0: i32) -> (i32, i32) {
    %c0_i32 = arith.constant 0 : i32
    %c0_i32_0 = arith.constant 0 : i32
    %c0_i32_1 = arith.constant 0 : i32
    return %c0_i32, %c0_i32_0 : i32, i32
  }
  func.func @transform_7(%arg0: i32) -> (i32, i32) {
    %c0_i32 = arith.constant 0 : i32
    %c0_i32_0 = arith.constant 0 : i32
    %c0_i32_1 = arith.constant 0 : i32
    return %c0_i32, %c0_i32_0 : i32, i32
  }
  func.func @transform_8(%arg0: i32) -> (i32, i32) {
    %c0_i32 = arith.constant 0 : i32
    %c0_i32_0 = arith.constant 0 : i32
    %c0_i32_1 = arith.constant 0 : i32
    return %c0_i32, %c0_i32_0 : i32, i32
  }
  func.func @transform_9(%arg0: i32) -> (i32, i32) {
    %c0_i32 = arith.constant 0 : i32
    %c0_i32_0 = arith.constant 0 : i32
    %c0_i32_1 = arith.constant 0 : i32
    return %c0_i32, %c0_i32_0 : i32, i32
  }
  func.func @transform_10(%arg0: i32) -> (i32, i32) {
    %c0_i32 = arith.constant 0 : i32
    %c0_i32_0 = arith.constant 0 : i32
    %c0_i32_1 = arith.constant 0 : i32
    return %c0_i32, %c0_i32_0 : i32, i32
  }
  func.func @transform_11(%arg0: i32) -> (i32, i32, i32) {
    %c0_i32 = arith.constant 0 : i32
    %c0_i32_0 = arith.constant 0 : i32
    %c0_i32_1 = arith.constant 0 : i32
    %c0_i32_2 = arith.constant 0 : i32
    return %c0_i32, %c0_i32_0, %c0_i32_1 : i32, i32, i32
  }
  func.func @transform_12(%arg0: i32) -> (i32, i32) {
    %c0_i32 = arith.constant 0 : i32
    %c0_i32_0 = arith.constant 0 : i32
    %c0_i32_1 = arith.constant 0 : i32
    return %c0_i32, %c0_i32_0 : i32, i32
  }
}

</mosaic_0001>

<llo_original>
// kernel: tpu_custom_call.1
$region0: #{tpu_custom_call.1}
  #allocation0 [shape = 'u32[]', space=smem, size = 0x4, offset = 0x4, fixed_abs, tag = 'smem constant byte address 0x4 - core index']
  #allocation1 [shape = 'u32[144,128]{1,0:T(1,128)}', space=vmem, size = 0x12000, scoped, tag = 'internal scratch']
  %s0 = inlined_call_operand.hbm [shape: f32[8,2,32], index: 0, kind: input, shape index: {}]
  %s1 = inlined_call_operand.vmem [shape: f32[32,96], index: 1, kind: input, shape index: {}]
  %s2 = inlined_call_operand.vmem [shape: f32[32,96], index: 2, kind: input, shape index: {}]
  %s3 = inlined_call_operand.vmem [shape: f32[1,96], index: 3, kind: input, shape index: {}]
  %s4 = inlined_call_operand.vmem [shape: f32[1,96], index: 4, kind: input, shape index: {}]
  %s5 = inlined_call_operand.vmem [shape: f32[32,96], index: 5, kind: input, shape index: {}]
  %s6 = inlined_call_operand.hbm [shape: f32[32,96], index: 6, kind: input, shape index: {}]
  %s7 = inlined_call_operand.vmem [shape: f32[1,96], index: 7, kind: input, shape index: {}]
  %s8 = inlined_call_operand.vmem [shape: f32[1,96], index: 8, kind: input, shape index: {}]
  %s9 = inlined_call_operand.vmem [shape: f32[64,32], index: 9, kind: input, shape index: {}]
  %s10 = inlined_call_operand.vmem [shape: f32[1,32], index: 10, kind: input, shape index: {}]
  %s11 = inlined_call_operand.hbm [shape: f32[8,2,64], index: 11, kind: output, shape index: {0}]
  %s12 = inlined_call_operand.hbm [shape: f32[2,32], index: 12, kind: output, shape index: {1}]
  %13 = xla_tuple %s11, %s12
  %s14 = sld [smem:[#allocation0]]
  $region70: #{tpu_custom_call.1} parent=0
    _
  %s16 = ssub.s32 1, %s14
  %s17 = scalar_select 0, %s16, %s14
  $region1: #{tpu_custom_call.1} parent=0
    #allocation2 [shape = 'u8[8192]{0}', space=vmem, size = 0x2000, scoped, tag = 'input window, operand 0, single buffered']
    #allocation3 [shape = 's32[1]{0}', space=sflag, size = 0x4, scoped, tag = 'scoped memory for tpu_custom_call.1']
    #allocation4 [shape = 's32[1]{0}', space=sflag, size = 0x4, scoped, tag = 'scoped memory for tpu_custom_call.1']
    #allocation5 [shape = 'u8[16384]{0}', space=vmem, size = 0x4000, scoped, tag = 'input window, operand 6, single buffered']
    #allocation6 [shape = 's32[1]{0}', space=sflag, size = 0x4, scoped, tag = 'scoped memory for tpu_custom_call.1']
    #allocation7 [shape = 'u8[8192]{0}', space=vmem, size = 0x2000, scoped, tag = 'output window, operand 0, single buffered']
    #allocation8 [shape = 'u8[1024]{0}', space=vmem, size = 0x400, scoped, tag = 'output window, operand 1, single buffered']
    #allocation9 [shape = 's32[1]{0}', space=sflag, size = 0x4, scoped, tag = 'scoped memory for tpu_custom_call.1']
    %18 = vsyncpa [#allocation3], 0
    %19 = vsyncpa [#allocation6], 0
    %20 = vsyncpa [#allocation4], 0
    %21 = vsyncpa [#allocation9], 0
    // Predicated region
    $region2: #{tpu_custom_call.1} parent=1 // pred_check
      _
    $region3: #{tpu_custom_call.1} parent=1 // pred_check_branch
      %23 = sbr.rel (0) target = $region5
    $region4: #{tpu_custom_call.1} parent=1 // pred_region
      %s25 = ssub.s32 256, 256
      %26 = vsyncadd [#allocation3], %s25
      %s27 = sshll.u32 [#allocation2], 4
      %s28 = int_to_ptr.vmem [resolvable:$true] %s27
      %33 = dma.hbm_to_vmem [thread:$0]  %s0, 256, %s28, [#allocation3], 32, 32, 2
    $region5: #{tpu_custom_call.1} parent=1 // pred_fallthru
      _
    // Predicated region
    $region6: #{tpu_custom_call.1} parent=1 // pred_check
      _
    $region7: #{tpu_custom_call.1} parent=1 // pred_check_branch
      %35 = sbr.rel (0) target = $region9
    $region8: #{tpu_custom_call.1} parent=1 // pred_region
      _
    $region9: #{tpu_custom_call.1} parent=1 // pred_fallthru
      _
    // Predicated region
    $region10: #{tpu_custom_call.1} parent=1 // pred_check
      _
    $region11: #{tpu_custom_call.1} parent=1 // pred_check_branch
      %37 = sbr.rel (0) target = $region13
    $region12: #{tpu_custom_call.1} parent=1 // pred_region
      _
    $region13: #{tpu_custom_call.1} parent=1 // pred_fallthru
      _
    // Predicated region
    $region14: #{tpu_custom_call.1} parent=1 // pred_check
      _
    $region15: #{tpu_custom_call.1} parent=1 // pred_check_branch
      %39 = sbr.rel (0) target = $region17
    $region16: #{tpu_custom_call.1} parent=1 // pred_region
      _
    $region17: #{tpu_custom_call.1} parent=1 // pred_fallthru
      _
    // Predicated region
    $region18: #{tpu_custom_call.1} parent=1 // pred_check
      _
    $region19: #{tpu_custom_call.1} parent=1 // pred_check_branch
      %41 = sbr.rel (0) target = $region21
    $region20: #{tpu_custom_call.1} parent=1 // pred_region
      _
    $region21: #{tpu_custom_call.1} parent=1 // pred_fallthru
      _
    // Predicated region
    $region22: #{tpu_custom_call.1} parent=1 // pred_check
      _
    $region23: #{tpu_custom_call.1} parent=1 // pred_check_branch
      %43 = sbr.rel (0) target = $region25
    $region24: #{tpu_custom_call.1} parent=1 // pred_region
      _
    $region25: #{tpu_custom_call.1} parent=1 // pred_fallthru
      _
    // Predicated region
    $region26: #{tpu_custom_call.1} parent=1 // pred_check
      _
    $region27: #{tpu_custom_call.1} parent=1 // pred_check_branch
      %45 = sbr.rel (0) target = $region29
    $region28: #{tpu_custom_call.1} parent=1 // pred_region
      %s47 = ssub.s32 512, 512
      %48 = vsyncadd [#allocation6], %s47
      %s49 = sshll.u32 [#allocation5], 4
      %s50 = int_to_ptr.vmem [resolvable:$true] %s49
      %55 = dma.hbm_to_vmem [thread:$0]  %s6, 512, %s50, [#allocation6], 128, 128, 8
    $region29: #{tpu_custom_call.1} parent=1 // pred_fallthru
      _
    // Predicated region
    $region30: #{tpu_custom_call.1} parent=1 // pred_check
      _
    $region31: #{tpu_custom_call.1} parent=1 // pred_check_branch
      %57 = sbr.rel (0) target = $region33
    $region32: #{tpu_custom_call.1} parent=1 // pred_region
      _
    $region33: #{tpu_custom_call.1} parent=1 // pred_fallthru
      _
    // Predicated region
    $region34: #{tpu_custom_call.1} parent=1 // pred_check
      _
    $region35: #{tpu_custom_call.1} parent=1 // pred_check_branch
      %59 = sbr.rel (0) target = $region37
    $region36: #{tpu_custom_call.1} parent=1 // pred_region
      _
    $region37: #{tpu_custom_call.1} parent=1 // pred_fallthru
      _
    // Predicated region
    $region38: #{tpu_custom_call.1} parent=1 // pred_check
      _
    $region39: #{tpu_custom_call.1} parent=1 // pred_check_branch
      %61 = sbr.rel (0) target = $region41
    $region40: #{tpu_custom_call.1} parent=1 // pred_region
      _
    $region41: #{tpu_custom_call.1} parent=1 // pred_fallthru
      _
    // Predicated region
    $region42: #{tpu_custom_call.1} parent=1 // pred_check
      _
    $region43: #{tpu_custom_call.1} parent=1 // pred_check_branch
      %63 = sbr.rel (0) target = $region45
    $region44: #{tpu_custom_call.1} parent=1 // pred_region
      _
    $region45: #{tpu_custom_call.1} parent=1 // pred_fallthru
      _
    // Predicated region
    $region46: #{tpu_custom_call.1} parent=1 // pred_check
      _
    $region47: #{tpu_custom_call.1} parent=1 // pred_check_branch
      %65 = sbr.rel (0) target = $region49
    $region48: #{tpu_custom_call.1} parent=1 // pred_region
      %66 = dma.done [#allocation3], 256
    $region49: #{tpu_custom_call.1} parent=1 // pred_fallthru
      _
    // Predicated region
    $region50: #{tpu_custom_call.1} parent=1 // pred_check
      _
    $region51: #{tpu_custom_call.1} parent=1 // pred_check_branch
      %68 = sbr.rel (0) target = $region53
    $region52: #{tpu_custom_call.1} parent=1 // pred_region
      %69 = dma.done [#allocation6], 512
    $region53: #{tpu_custom_call.1} parent=1 // pred_fallthru
      _
    %v70 = vld [vmem:[#allocation2] sm:$0x3]
    %v71 = vld [vmem:[#allocation2 + $0x2] sm:$0x3]
    %v72 = vld [vmem:[#allocation2 + $0x4] sm:$0x3]
    %v73 = vld [vmem:[#allocation2 + $0x6] sm:$0x3]
    %v74 = vld [vmem:[#allocation2 + $0x8] sm:$0x3]
    %v75 = vld [vmem:[#allocation2 + $0xa] sm:$0x3]
    %v76 = vld [vmem:[#allocation2 + $0xc] sm:$0x3]
    %v77 = vld [vmem:[#allocation2 + $0xe] sm:$0x3]
    %v78 = vld [vmem:[%s1] sm:$0xff]
    %v79 = vld [vmem:[%s1 + $0x8] sm:$0xff]
    %v80 = vld [vmem:[%s1 + $0x10] sm:$0xff]
    %v81 = vld [vmem:[%s1 + $0x18] sm:$0xff]
    %v82 = vld [vmem:[%s3] sm:$0x1]
    %v84 = vlaneseq
    %v85 = vshrl.u32 %v84, 7
    %v86 = vsub.s32 0, %v85
    %v87 = vrot.slane %v82, %v86
    %v97 = vcombine.low %v70, %v71
    %v98 = vcombine.low %v72, %v73
    %v100 = vunpack.c.l.s4 1983009808
    %v101 = vunpack.c.0.s8 %v100
    %v102 = vlaneseq
    %v103 = vshrl.u32 %v102, 7
    %v104 = vsub.s32 %v101, %v103
    %v105 = vrot.slane %v97, %v104
    %v107 = vunpack.c.l.s4 1983009808
    %v108 = vunpack.c.0.s8 %v107
    %v109 = vlaneseq
    %v110 = vshrl.u32 %v109, 7
    %v111 = vsub.s32 %v108, %v110
    %v112 = vrot.slane %v98, %v111
    %v113 = vcombine.low %v105, %v112
    %v114 = vcombine.low %v74, %v75
    %v115 = vcombine.low %v76, %v77
    %v117 = vunpack.c.l.s4 1983009808
    %v118 = vunpack.c.0.s8 %v117
    %v119 = vlaneseq
    %v120 = vshrl.u32 %v119, 7
    %v121 = vsub.s32 %v118, %v120
    %v122 = vrot.slane %v114, %v121
    %v124 = vunpack.c.l.s4 1983009808
    %v125 = vunpack.c.0.s8 %v124
    %v126 = vlaneseq
    %v127 = vshrl.u32 %v126, 7
    %v128 = vsub.s32 %v125, %v127
    %v129 = vrot.slane %v115, %v128
    %v130 = vcombine.low %v122, %v129
    %vm131 = vcmask 261120
    %v132 = vsel %vm131, %v113, 0
    %v134 = vsel %vm131, %v130, 0
    %136 = vmatprep.subr.mxu0 0.0
    %137 = vmatpush1.msra.mxu0 0.0
    %138 = vmatprep.subr.mxu0 0.0
    %139 = vmatpush1.msra.mxu0 0.0
    %140 = vmatprep.subr.mxu0 0.0
    %141 = vmatpush1.msra.mxu0 0.0
    %142 = vmatprep.subr.mxu0 0.0
    %143 = vmatpush1.msra.mxu0 0.0
    %144 = vmatprep.subr.mxu0 0.0
    %145 = vmatpush1.msra.mxu0 0.0
    %146 = vmatprep.subr.mxu0 0.0
    %147 = vmatpush1.msra.mxu0 0.0
    %148 = vmatprep.subr.mxu0 0.0
    %149 = vmatpush1.msra.mxu0 0.0
    %150 = vmatprep.subr.mxu0 0.0
    %151 = vmatpush1.msra.mxu0 0.0
    %152 = vmatprep.subr.mxu0 0.0
    %153 = vmatpush1.msra.mxu0 0.0
    %154 = vmatprep.subr.mxu0 0.0
    %155 = vmatpush1.msra.mxu0 0.0
    %156 = vmatprep.subr.mxu0 0.0
    %157 = vmatpush1.msra.mxu0 0.0
    %158 = vmatprep.subr.mxu0 0.0
    %159 = vmatpush1.msra.mxu0 0.0
    %160 = vmatprep.subr.mxu0 0.0
    %161 = vmatpush1.msra.mxu0 %v81
    %162 = vmatprep.subr.mxu0 0.0
    %163 = vmatpush1.msra.mxu0 %v80
    %164 = vmatprep.subr.mxu0 0.0
    %165 = vmatpush1.msra.mxu0 %v79
    %166 = vmatprep.subr.mxu0 0.0
    %167 = vmatpush1.msra.mxu0 %v78
    %168 = vmatprep.subr.mxu0 0.0
    %169 = vmatpush2.msra.mxu0 0.0
    %170 = vmatprep.subr.mxu0 0.0
    %171 = vmatpush2.msra.mxu0 0.0
    %172 = vmatprep.subr.mxu0 0.0
    %173 = vmatpush2.msra.mxu0 0.0
    %174 = vmatprep.subr.mxu0 0.0
    %175 = vmatpush2.msra.mxu0 0.0
    %176 = vmatprep.subr.mxu0 0.0
    %177 = vmatpush2.msra.mxu0 0.0
    %178 = vmatprep.subr.mxu0 0.0
    %179 = vmatpush2.msra.mxu0 0.0
    %180 = vmatprep.subr.mxu0 0.0
    %181 = vmatpush2.msra.mxu0 0.0
    %182 = vmatprep.subr.mxu0 0.0
    %183 = vmatpush2.msra.mxu0 0.0
    %184 = vmatprep.subr.mxu0 0.0
    %185 = vmatpush2.msra.mxu0 0.0
    %186 = vmatprep.subr.mxu0 0.0
    %187 = vmatpush2.msra.mxu0 0.0
    %188 = vmatprep.subr.mxu0 0.0
    %189 = vmatpush2.msra.mxu0 0.0
    %190 = vmatprep.subr.mxu0 0.0
    %191 = vmatpush2.msra.mxu0 0.0
    %192 = vmatprep.subr.mxu0 0.0
    %193 = vmatpush2.msra.mxu0 0.0
    %194 = vmatprep.subr.mxu0 0.0
    %195 = vmatpush2.msra.mxu0 0.0
    %196 = vmatprep.subr.mxu0 0.0
    %197 = vmatpush2.msra.mxu0 0.0
    %198 = vmatprep.subr.mxu0 0.0
    %199 = vmatpush2.msra.mxu0 0.0
    %200 = vmatprep.mubr.f32.mxu0 0.0
    %201 = vmatmul.mubr.f32.gmra.mxu0 %v132
    %v202 = vpop.f32.mrf.mxu0
    %v203 = vadd.f32 %v87, %v202
    %v204 = vpop.f32.mrf.mxu0
    %205 = vmatprep.mubr.f32.mxu0 0.0
    %206 = vmatmul.mubr.f32.gmra.mxu0 %v134
    %v207 = vpop.f32.mrf.mxu0
    %v208 = vadd.f32 %v87, %v207
    %v209 = vpop.f32.mrf.mxu0
    %210 = vdwg.mxu0
    %v213 = vcombine.high %v203, %v203
    %v215 = vunpack.c.l.s4 1983009808
    %v216 = vunpack.c.0.s8 %v215
    %v217 = vlaneseq
    %v218 = vshrl.u32 %v217, 7
    %v219 = vsub.s32 %v216, %v218
    %v220 = vrot.slane %v203, %v219
    %v222 = vunpack.c.l.s4 1983009808
    %v223 = vunpack.c.0.s8 %v222
    %v224 = vlaneseq
    %v225 = vshrl.u32 %v224, 7
    %v226 = vsub.s32 %v223, %v225
    %v227 = vrot.slane %v213, %v226
    %v228 = vcombine.high %v220, %v220
    %v229 = vcombine.high %v227, %v227
    %v230 = vcombine.high %v208, %v208
    %v232 = vunpack.c.l.s4 1983009808
    %v233 = vunpack.c.0.s8 %v232
    %v234 = vlaneseq
    %v235 = vshrl.u32 %v234, 7
    %v236 = vsub.s32 %v233, %v235
    %v237 = vrot.slane %v208, %v236
    %v239 = vunpack.c.l.s4 1983009808
    %v240 = vunpack.c.0.s8 %v239
    %v241 = vlaneseq
    %v242 = vshrl.u32 %v241, 7
    %v243 = vsub.s32 %v240, %v242
    %v244 = vrot.slane %v230, %v243
    %v245 = vcombine.high %v237, %v237
    %v246 = vcombine.high %v244, %v244
    %v255 = vld [vmem:[%s5] sm:$0xff]
    %v256 = vld [vmem:[%s5 + $0x8] sm:$0xff]
    %v257 = vld [vmem:[%s5 + $0x10] sm:$0xff]
    %v258 = vld [vmem:[%s5 + $0x18] sm:$0xff]
    %v259 = vld [vmem:[%s7] sm:$0x1]
    %v261 = vlaneseq
    %v262 = vshrl.u32 %v261, 7
    %v263 = vsub.s32 0, %v262
    %v264 = vrot.slane %v259, %v263
    %266 = vmatprep.subr.mxu0 0.0
    %267 = vmatpush1.msra.mxu0 0.0
    %268 = vmatprep.subr.mxu0 0.0
    %269 = vmatpush1.msra.mxu0 0.0
    %270 = vmatprep.subr.mxu0 0.0
    %271 = vmatpush1.msra.mxu0 0.0
    %272 = vmatprep.subr.mxu0 0.0
    %273 = vmatpush1.msra.mxu0 0.0
    %274 = vmatprep.subr.mxu0 0.0
    %275 = vmatpush1.msra.mxu0 0.0
    %276 = vmatprep.subr.mxu0 0.0
    %277 = vmatpush1.msra.mxu0 0.0
    %278 = vmatprep.subr.mxu0 0.0
    %279 = vmatpush1.msra.mxu0 0.0
    %280 = vmatprep.subr.mxu0 0.0
    %281 = vmatpush1.msra.mxu0 0.0
    %282 = vmatprep.subr.mxu0 0.0
    %283 = vmatpush1.msra.mxu0 0.0
    %284 = vmatprep.subr.mxu0 0.0
    %285 = vmatpush1.msra.mxu0 0.0
    %286 = vmatprep.subr.mxu0 0.0
    %287 = vmatpush1.msra.mxu0 0.0
    %288 = vmatprep.subr.mxu0 0.0
    %289 = vmatpush1.msra.mxu0 0.0
    %290 = vmatprep.subr.mxu0 0.0
    %291 = vmatpush1.msra.mxu0 %v258
    %292 = vmatprep.subr.mxu0 0.0
    %293 = vmatpush1.msra.mxu0 %v257
    %294 = vmatprep.subr.mxu0 0.0
    %295 = vmatpush1.msra.mxu0 %v256
    %296 = vmatprep.subr.mxu0 0.0
    %297 = vmatpush1.msra.mxu0 %v255
    %298 = vmatprep.subr.mxu0 0.0
    %299 = vmatpush2.msra.mxu0 0.0
    %300 = vmatprep.subr.mxu0 0.0
    %301 = vmatpush2.msra.mxu0 0.0
    %302 = vmatprep.subr.mxu0 0.0
    %303 = vmatpush2.msra.mxu0 0.0
    %304 = vmatprep.subr.mxu0 0.0
    %305 = vmatpush2.msra.mxu0 0.0
    %306 = vmatprep.subr.mxu0 0.0
    %307 = vmatpush2.msra.mxu0 0.0
    %308 = vmatprep.subr.mxu0 0.0
    %309 = vmatpush2.msra.mxu0 0.0
    %310 = vmatprep.subr.mxu0 0.0
    %311 = vmatpush2.msra.mxu0 0.0
    %312 = vmatprep.subr.mxu0 0.0
    %313 = vmatpush2.msra.mxu0 0.0
    %314 = vmatprep.subr.mxu0 0.0
    %315 = vmatpush2.msra.mxu0 0.0
    %316 = vmatprep.subr.mxu0 0.0
    %317 = vmatpush2.msra.mxu0 0.0
    %318 = vmatprep.subr.mxu0 0.0
    %319 = vmatpush2.msra.mxu0 0.0
    %320 = vmatprep.subr.mxu0 0.0
    %321 = vmatpush2.msra.mxu0 0.0
    %322 = vmatprep.subr.mxu0 0.0
    %323 = vmatpush2.msra.mxu0 0.0
    %324 = vmatprep.subr.mxu0 0.0
    %325 = vmatpush2.msra.mxu0 0.0
    %326 = vmatprep.subr.mxu0 0.0
    %327 = vmatpush2.msra.mxu0 0.0
    %328 = vmatprep.subr.mxu0 0.0
    %329 = vmatpush2.msra.mxu0 0.0
    %330 = vmatprep.mubr.f32.mxu0 0.0
    %331 = vmatmul.mubr.f32.gmra.mxu0 %v132
    %v332 = vpop.f32.mrf.mxu0
    %v333 = vadd.f32 %v264, %v332
    %v334 = vpop.f32.mrf.mxu0
    %335 = vmatprep.mubr.f32.mxu0 0.0
    %336 = vmatmul.mubr.f32.gmra.mxu0 %v134
    %v337 = vpop.f32.mrf.mxu0
    %v338 = vadd.f32 %v264, %v337
    %v339 = vpop.f32.mrf.mxu0
    %340 = vdwg.mxu0
    %v343 = vcombine.high %v333, %v333
    %v345 = vunpack.c.l.s4 1983009808
    %v346 = vunpack.c.0.s8 %v345
    %v347 = vlaneseq
    %v348 = vshrl.u32 %v347, 7
    %v349 = vsub.s32 %v346, %v348
    %v350 = vrot.slane %v333, %v349
    %v352 = vunpack.c.l.s4 1983009808
    %v353 = vunpack.c.0.s8 %v352
    %v354 = vlaneseq
    %v355 = vshrl.u32 %v354, 7
    %v356 = vsub.s32 %v353, %v355
    %v357 = vrot.slane %v343, %v356
    %v358 = vcombine.high %v350, %v350
    %v359 = vcombine.high %v357, %v357
    %v360 = vcombine.high %v338, %v338
    %v362 = vunpack.c.l.s4 1983009808
    %v363 = vunpack.c.0.s8 %v362
    %v364 = vlaneseq
    %v365 = vshrl.u32 %v364, 7
    %v366 = vsub.s32 %v363, %v365
    %v367 = vrot.slane %v338, %v366
    %v369 = vunpack.c.l.s4 1983009808
    %v370 = vunpack.c.0.s8 %v369
    %v371 = vlaneseq
    %v372 = vshrl.u32 %v371, 7
    %v373 = vsub.s32 %v370, %v372
    %v374 = vrot.slane %v360, %v373
    %v375 = vcombine.high %v367, %v367
    %v376 = vcombine.high %v374, %v374
    %v385 = vld [vmem:[%s2] sm:$0xff]
    %v386 = vld [vmem:[%s2 + $0x8] sm:$0xff]
    %v387 = vld [vmem:[%s2 + $0x10] sm:$0xff]
    %v388 = vld [vmem:[%s2 + $0x18] sm:$0xff]
    %v389 = vld [vmem:[%s4] sm:$0x1]
    %v390 = vld [vmem:[#allocation5] sm:$0xff]
    %v391 = vld [vmem:[#allocation5 + $0x8] sm:$0xff]
    %v392 = vld [vmem:[#allocation5 + $0x10] sm:$0xff]
    %v393 = vld [vmem:[#allocation5 + $0x18] sm:$0xff]
    %v394 = vld [vmem:[%s8] sm:$0x1]
    %v396 = vlaneseq
    %v397 = vshrl.u32 %v396, 7
    %v398 = vsub.s32 0, %v397
    %v399 = vrot.slane %v389, %v398
    %v402 = vsel %vm131, 0.0, 0
    %404 = vmatprep.subr.mxu0 0.0
    %405 = vmatpush1.msra.mxu0 0.0
    %406 = vmatprep.subr.mxu0 0.0
    %407 = vmatpush1.msra.mxu0 0.0
    %408 = vmatprep.subr.mxu0 0.0
    %409 = vmatpush1.msra.mxu0 0.0
    %410 = vmatprep.subr.mxu0 0.0
    %411 = vmatpush1.msra.mxu0 0.0
    %412 = vmatprep.subr.mxu0 0.0
    %413 = vmatpush1.msra.mxu0 0.0
    %414 = vmatprep.subr.mxu0 0.0
    %415 = vmatpush1.msra.mxu0 0.0
    %416 = vmatprep.subr.mxu0 0.0
    %417 = vmatpush1.msra.mxu0 0.0
    %418 = vmatprep.subr.mxu0 0.0
    %419 = vmatpush1.msra.mxu0 0.0
    %420 = vmatprep.subr.mxu0 0.0
    %421 = vmatpush1.msra.mxu0 0.0
    %422 = vmatprep.subr.mxu0 0.0
    %423 = vmatpush1.msra.mxu0 0.0
    %424 = vmatprep.subr.mxu0 0.0
    %425 = vmatpush1.msra.mxu0 0.0
    %426 = vmatprep.subr.mxu0 0.0
    %427 = vmatpush1.msra.mxu0 0.0
    %428 = vmatprep.subr.mxu0 0.0
    %429 = vmatpush1.msra.mxu0 %v388
    %430 = vmatprep.subr.mxu0 0.0
    %431 = vmatpush1.msra.mxu0 %v387
    %432 = vmatprep.subr.mxu0 0.0
    %433 = vmatpush1.msra.mxu0 %v386
    %434 = vmatprep.subr.mxu0 0.0
    %435 = vmatpush1.msra.mxu0 %v385
    %436 = vmatprep.subr.mxu0 0.0
    %437 = vmatpush2.msra.mxu0 0.0
    %438 = vmatprep.subr.mxu0 0.0
    %439 = vmatpush2.msra.mxu0 0.0
    %440 = vmatprep.subr.mxu0 0.0
    %441 = vmatpush2.msra.mxu0 0.0
    %442 = vmatprep.subr.mxu0 0.0
    %443 = vmatpush2.msra.mxu0 0.0
    %444 = vmatprep.subr.mxu0 0.0
    %445 = vmatpush2.msra.mxu0 0.0
    %446 = vmatprep.subr.mxu0 0.0
    %447 = vmatpush2.msra.mxu0 0.0
    %448 = vmatprep.subr.mxu0 0.0
    %449 = vmatpush2.msra.mxu0 0.0
    %450 = vmatprep.subr.mxu0 0.0
    %451 = vmatpush2.msra.mxu0 0.0
    %452 = vmatprep.subr.mxu0 0.0
    %453 = vmatpush2.msra.mxu0 0.0
    %454 = vmatprep.subr.mxu0 0.0
    %455 = vmatpush2.msra.mxu0 0.0
    %456 = vmatprep.subr.mxu0 0.0
    %457 = vmatpush2.msra.mxu0 0.0
    %458 = vmatprep.subr.mxu0 0.0
    %459 = vmatpush2.msra.mxu0 0.0
    %460 = vmatprep.subr.mxu0 0.0
    %461 = vmatpush2.msra.mxu0 0.0
    %462 = vmatprep.subr.mxu0 0.0
    %463 = vmatpush2.msra.mxu0 0.0
    %464 = vmatprep.subr.mxu0 0.0
    %465 = vmatpush2.msra.mxu0 0.0
    %466 = vmatprep.subr.mxu0 0.0
    %467 = vmatpush2.msra.mxu0 0.0
    %468 = vmatprep.mubr.f32.mxu0 0.0
    %469 = vmatmul.mubr.f32.gmra.mxu0 %v402
    %v470 = vpop.f32.mrf.mxu0
    %v471 = vadd.f32 %v399, %v470
    %v472 = vpop.f32.mrf.mxu0
    %473 = vdwg.mxu0
    %v474 = vadd.f32 %v220, %v471
    %v475 = vxor.u32 %v474, 2147483648
    %v476 = vmul.f32 %v475, 1.442695
    %v477 = vpow.pop %v476
    %v478 = vadd.f32 %v477, 1.0
    %v479 = vrcp.pop %v478
    %v480 = vmul.f32 1.0, %v479
    %v483 = vunpack.c.l.s4 1983009808
    %v484 = vunpack.c.0.s8 %v483
    %v485 = vlaneseq
    %v486 = vshrl.u32 %v485, 7
    %v487 = vsub.s32 %v484, %v486
    %v488 = vrot.slane %v471, %v487
    %489 = vrot.lane.b32.xlu0 %v488, 64
    %v490 = vpop.permute.xlu0 %489
    %v492 = vmul.f32 %v480, %v490
    %494 = vrot.lane.b32.xlu0 %v492, 64
    %v495 = vpop.permute.xlu0 %494
    %v497 = vadd.f32 %v220, %v495
    %v498 = vtanh.pop %v497
    %v499 = vsub.f32 1.0, %v480
    %501 = vrot.lane.b32.xlu0 %v498, 96
    %v502 = vpop.permute.xlu0 %501
    %v504 = vmul.f32 %v499, %v502
    %v505 = vmul.f32 %v480, 0.0
    %v506 = vadd.f32 %v504, %v505
    %v509 = vunpack.c.l.s4 1983009808
    %v510 = vunpack.c.0.s8 %v509
    %v511 = vlaneseq
    %v512 = vshrl.u32 %v511, 7
    %v513 = vsub.s32 %v510, %v512
    %v514 = vrot.slane %v506, %v513
    %515 = vrot.lane.b32.xlu0 %v514, 96
    %v516 = vpop.permute.xlu0 %515
    %v517 = vsel %vm131, %v516, 0
    %519 = vmatprep.subr.mxu0 0.0
    %520 = vmatpush1.msra.mxu0 0.0
    %521 = vmatprep.subr.mxu0 0.0
    %522 = vmatpush1.msra.mxu0 0.0
    %523 = vmatprep.subr.mxu0 0.0
    %524 = vmatpush1.msra.mxu0 0.0
    %525 = vmatprep.subr.mxu0 0.0
    %526 = vmatpush1.msra.mxu0 0.0
    %527 = vmatprep.subr.mxu0 0.0
    %528 = vmatpush1.msra.mxu0 0.0
    %529 = vmatprep.subr.mxu0 0.0
    %530 = vmatpush1.msra.mxu0 0.0
    %531 = vmatprep.subr.mxu0 0.0
    %532 = vmatpush1.msra.mxu0 0.0
    %533 = vmatprep.subr.mxu0 0.0
    %534 = vmatpush1.msra.mxu0 0.0
    %535 = vmatprep.subr.mxu0 0.0
    %536 = vmatpush1.msra.mxu0 0.0
    %537 = vmatprep.subr.mxu0 0.0
    %538 = vmatpush1.msra.mxu0 0.0
    %539 = vmatprep.subr.mxu0 0.0
    %540 = vmatpush1.msra.mxu0 0.0
    %541 = vmatprep.subr.mxu0 0.0
    %542 = vmatpush1.msra.mxu0 0.0
    %543 = vmatprep.subr.mxu0 0.0
    %544 = vmatpush1.msra.mxu0 %v388
    %545 = vmatprep.subr.mxu0 0.0
    %546 = vmatpush1.msra.mxu0 %v387
    %547 = vmatprep.subr.mxu0 0.0
    %548 = vmatpush1.msra.mxu0 %v386
    %549 = vmatprep.subr.mxu0 0.0
    %550 = vmatpush1.msra.mxu0 %v385
    %551 = vmatprep.subr.mxu0 0.0
    %552 = vmatpush2.msra.mxu0 0.0
    %553 = vmatprep.subr.mxu0 0.0
    %554 = vmatpush2.msra.mxu0 0.0
    %555 = vmatprep.subr.mxu0 0.0
    %556 = vmatpush2.msra.mxu0 0.0
    %557 = vmatprep.subr.mxu0 0.0
    %558 = vmatpush2.msra.mxu0 0.0
    %559 = vmatprep.subr.mxu0 0.0
    %560 = vmatpush2.msra.mxu0 0.0
    %561 = vmatprep.subr.mxu0 0.0
    %562 = vmatpush2.msra.mxu0 0.0
    %563 = vmatprep.subr.mxu0 0.0
    %564 = vmatpush2.msra.mxu0 0.0
    %565 = vmatprep.subr.mxu0 0.0
    %566 = vmatpush2.msra.mxu0 0.0
    %567 = vmatprep.subr.mxu0 0.0
    %568 = vmatpush2.msra.mxu0 0.0
    %569 = vmatprep.subr.mxu0 0.0
    %570 = vmatpush2.msra.mxu0 0.0
    %571 = vmatprep.subr.mxu0 0.0
    %572 = vmatpush2.msra.mxu0 0.0
    %573 = vmatprep.subr.mxu0 0.0
    %574 = vmatpush2.msra.mxu0 0.0
    %575 = vmatprep.subr.mxu0 0.0
    %576 = vmatpush2.msra.mxu0 0.0
    %577 = vmatprep.subr.mxu0 0.0
    %578 = vmatpush2.msra.mxu0 0.0
    %579 = vmatprep.subr.mxu0 0.0
    %580 = vmatpush2.msra.mxu0 0.0
    %581 = vmatprep.subr.mxu0 0.0
    %582 = vmatpush2.msra.mxu0 0.0
    %583 = vmatprep.mubr.f32.mxu0 0.0
    %584 = vmatmul.mubr.f32.gmra.mxu0 %v517
    %v585 = vpop.f32.mrf.mxu0
    %v586 = vadd.f32 %v399, %v585
    %v587 = vpop.f32.mrf.mxu0
    %588 = vdwg.mxu0
    %v589 = vadd.f32 %v228, %v586
    %v590 = vxor.u32 %v589, 2147483648
    %v591 = vmul.f32 %v590, 1.442695
    %v592 = vpow.pop %v591
    %v593 = vadd.f32 %v592, 1.0
    %v594 = vrcp.pop %v593
    %v595 = vmul.f32 1.0, %v594
    %v598 = vunpack.c.l.s4 1983009808
    %v599 = vunpack.c.0.s8 %v598
    %v600 = vlaneseq
    %v601 = vshrl.u32 %v600, 7
    %v602 = vsub.s32 %v599, %v601
    %v603 = vrot.slane %v586, %v602
    %604 = vrot.lane.b32.xlu0 %v603, 64
    %v605 = vpop.permute.xlu0 %604
    %v607 = vmul.f32 %v595, %v605
    %609 = vrot.lane.b32.xlu0 %v607, 64
    %v610 = vpop.permute.xlu0 %609
    %v612 = vadd.f32 %v228, %v610
    %v613 = vtanh.pop %v612
    %v614 = vsub.f32 1.0, %v595
    %616 = vrot.lane.b32.xlu0 %v613, 96
    %v617 = vpop.permute.xlu0 %616
    %v619 = vmul.f32 %v614, %v617
    %v620 = vmul.f32 %v595, %v506
    %v621 = vadd.f32 %v619, %v620
    %v624 = vunpack.c.l.s4 1983009808
    %v625 = vunpack.c.0.s8 %v624
    %v626 = vlaneseq
    %v627 = vshrl.u32 %v626, 7
    %v628 = vsub.s32 %v625, %v627
    %v629 = vrot.slane %v621, %v628
    %630 = vrot.lane.b32.xlu0 %v629, 96
    %v631 = vpop.permute.xlu0 %630
    %v632 = vsel %vm131, %v631, 0
    %634 = vmatprep.subr.mxu0 0.0
    %635 = vmatpush1.msra.mxu0 0.0
    %636 = vmatprep.subr.mxu0 0.0
    %637 = vmatpush1.msra.mxu0 0.0
    %638 = vmatprep.subr.mxu0 0.0
    %639 = vmatpush1.msra.mxu0 0.0
    %640 = vmatprep.subr.mxu0 0.0
    %641 = vmatpush1.msra.mxu0 0.0
    %642 = vmatprep.subr.mxu0 0.0
    %643 = vmatpush1.msra.mxu0 0.0
    %644 = vmatprep.subr.mxu0 0.0
    %645 = vmatpush1.msra.mxu0 0.0
    %646 = vmatprep.subr.mxu0 0.0
    %647 = vmatpush1.msra.mxu0 0.0
    %648 = vmatprep.subr.mxu0 0.0
    %649 = vmatpush1.msra.mxu0 0.0
    %650 = vmatprep.subr.mxu0 0.0
    %651 = vmatpush1.msra.mxu0 0.0
    %652 = vmatprep.subr.mxu0 0.0
    %653 = vmatpush1.msra.mxu0 0.0
    %654 = vmatprep.subr.mxu0 0.0
    %655 = vmatpush1.msra.mxu0 0.0
    %656 = vmatprep.subr.mxu0 0.0
    %657 = vmatpush1.msra.mxu0 0.0
    %658 = vmatprep.subr.mxu0 0.0
    %659 = vmatpush1.msra.mxu0 %v388
    %660 = vmatprep.subr.mxu0 0.0
    %661 = vmatpush1.msra.mxu0 %v387
    %662 = vmatprep.subr.mxu0 0.0
    %663 = vmatpush1.msra.mxu0 %v386
    %664 = vmatprep.subr.mxu0 0.0
    %665 = vmatpush1.msra.mxu0 %v385
    %666 = vmatprep.subr.mxu0 0.0
    %667 = vmatpush2.msra.mxu0 0.0
    %668 = vmatprep.subr.mxu0 0.0
    %669 = vmatpush2.msra.mxu0 0.0
    %670 = vmatprep.subr.mxu0 0.0
    %671 = vmatpush2.msra.mxu0 0.0
    %672 = vmatprep.subr.mxu0 0.0
    %673 = vmatpush2.msra.mxu0 0.0
    %674 = vmatprep.subr.mxu0 0.0
    %675 = vmatpush2.msra.mxu0 0.0
    %676 = vmatprep.subr.mxu0 0.0
    %677 = vmatpush2.msra.mxu0 0.0
    %678 = vmatprep.subr.mxu0 0.0
    %679 = vmatpush2.msra.mxu0 0.0
    %680 = vmatprep.subr.mxu0 0.0
    %681 = vmatpush2.msra.mxu0 0.0
    %682 = vmatprep.subr.mxu0 0.0
    %683 = vmatpush2.msra.mxu0 0.0
    %684 = vmatprep.subr.mxu0 0.0
    %685 = vmatpush2.msra.mxu0 0.0
    %686 = vmatprep.subr.mxu0 0.0
    %687 = vmatpush2.msra.mxu0 0.0
    %688 = vmatprep.subr.mxu0 0.0
    %689 = vmatpush2.msra.mxu0 0.0
    %690 = vmatprep.subr.mxu0 0.0
    %691 = vmatpush2.msra.mxu0 0.0
    %692 = vmatprep.subr.mxu0 0.0
    %693 = vmatpush2.msra.mxu0 0.0
    %694 = vmatprep.subr.mxu0 0.0
    %695 = vmatpush2.msra.mxu0 0.0
    %696 = vmatprep.subr.mxu0 0.0
    %697 = vmatpush2.msra.mxu0 0.0
    %698 = vmatprep.mubr.f32.mxu0 0.0
    %699 = vmatmul.mubr.f32.gmra.mxu0 %v632
    %v700 = vpop.f32.mrf.mxu0
    %v701 = vadd.f32 %v399, %v700
    %v702 = vpop.f32.mrf.mxu0
    %703 = vdwg.mxu0
    %v704 = vadd.f32 %v227, %v701
    %v705 = vxor.u32 %v704, 2147483648
    %v706 = vmul.f32 %v705, 1.442695
    %v707 = vpow.pop %v706
    %v708 = vadd.f32 %v707, 1.0
    %v709 = vrcp.pop %v708
    %v710 = vmul.f32 1.0, %v709
    %v713 = vunpack.c.l.s4 1983009808
    %v714 = vunpack.c.0.s8 %v713
    %v715 = vlaneseq
    %v716 = vshrl.u32 %v715, 7
    %v717 = vsub.s32 %v714, %v716
    %v718 = vrot.slane %v701, %v717
    %719 = vrot.lane.b32.xlu0 %v718, 64
    %v720 = vpop.permute.xlu0 %719
    %v722 = vmul.f32 %v710, %v720
    %724 = vrot.lane.b32.xlu0 %v722, 64
    %v725 = vpop.permute.xlu0 %724
    %v727 = vadd.f32 %v227, %v725
    %v728 = vtanh.pop %v727
    %v729 = vsub.f32 1.0, %v710
    %731 = vrot.lane.b32.xlu0 %v728, 96
    %v732 = vpop.permute.xlu0 %731
    %v734 = vmul.f32 %v729, %v732
    %v735 = vmul.f32 %v710, %v621
    %v736 = vadd.f32 %v734, %v735
    %v739 = vunpack.c.l.s4 1983009808
    %v740 = vunpack.c.0.s8 %v739
    %v741 = vlaneseq
    %v742 = vshrl.u32 %v741, 7
    %v743 = vsub.s32 %v740, %v742
    %v744 = vrot.slane %v736, %v743
    %745 = vrot.lane.b32.xlu0 %v744, 96
    %v746 = vpop.permute.xlu0 %745
    %v747 = vsel %vm131, %v746, 0
    %749 = vmatprep.subr.mxu0 0.0
    %750 = vmatpush1.msra.mxu0 0.0
    %751 = vmatprep.subr.mxu0 0.0
    %752 = vmatpush1.msra.mxu0 0.0
    %753 = vmatprep.subr.mxu0 0.0
    %754 = vmatpush1.msra.mxu0 0.0
    %755 = vmatprep.subr.mxu0 0.0
    %756 = vmatpush1.msra.mxu0 0.0
    %757 = vmatprep.subr.mxu0 0.0
    %758 = vmatpush1.msra.mxu0 0.0
    %759 = vmatprep.subr.mxu0 0.0
    %760 = vmatpush1.msra.mxu0 0.0
    %761 = vmatprep.subr.mxu0 0.0
    %762 = vmatpush1.msra.mxu0 0.0
    %763 = vmatprep.subr.mxu0 0.0
    %764 = vmatpush1.msra.mxu0 0.0
    %765 = vmatprep.subr.mxu0 0.0
    %766 = vmatpush1.msra.mxu0 0.0
    %767 = vmatprep.subr.mxu0 0.0
    %768 = vmatpush1.msra.mxu0 0.0
    %769 = vmatprep.subr.mxu0 0.0
    %770 = vmatpush1.msra.mxu0 0.0
    %771 = vmatprep.subr.mxu0 0.0
    %772 = vmatpush1.msra.mxu0 0.0
    %773 = vmatprep.subr.mxu0 0.0
    %774 = vmatpush1.msra.mxu0 %v388
    %775 = vmatprep.subr.mxu0 0.0
    %776 = vmatpush1.msra.mxu0 %v387
    %777 = vmatprep.subr.mxu0 0.0
    %778 = vmatpush1.msra.mxu0 %v386
    %779 = vmatprep.subr.mxu0 0.0
    %780 = vmatpush1.msra.mxu0 %v385
    %781 = vmatprep.subr.mxu0 0.0
    %782 = vmatpush2.msra.mxu0 0.0
    %783 = vmatprep.subr.mxu0 0.0
    %784 = vmatpush2.msra.mxu0 0.0
    %785 = vmatprep.subr.mxu0 0.0
    %786 = vmatpush2.msra.mxu0 0.0
    %787 = vmatprep.subr.mxu0 0.0
    %788 = vmatpush2.msra.mxu0 0.0
    %789 = vmatprep.subr.mxu0 0.0
    %790 = vmatpush2.msra.mxu0 0.0
    %791 = vmatprep.subr.mxu0 0.0
    %792 = vmatpush2.msra.mxu0 0.0
    %793 = vmatprep.subr.mxu0 0.0
    %794 = vmatpush2.msra.mxu0 0.0
    %795 = vmatprep.subr.mxu0 0.0
    %796 = vmatpush2.msra.mxu0 0.0
    %797 = vmatprep.subr.mxu0 0.0
    %798 = vmatpush2.msra.mxu0 0.0
    %799 = vmatprep.subr.mxu0 0.0
    %800 = vmatpush2.msra.mxu0 0.0
    %801 = vmatprep.subr.mxu0 0.0
    %802 = vmatpush2.msra.mxu0 0.0
    %803 = vmatprep.subr.mxu0 0.0
    %804 = vmatpush2.msra.mxu0 0.0
    %805 = vmatprep.subr.mxu0 0.0
    %806 = vmatpush2.msra.mxu0 0.0
    %807 = vmatprep.subr.mxu0 0.0
    %808 = vmatpush2.msra.mxu0 0.0
    %809 = vmatprep.subr.mxu0 0.0
    %810 = vmatpush2.msra.mxu0 0.0
    %811 = vmatprep.subr.mxu0 0.0
    %812 = vmatpush2.msra.mxu0 0.0
    %813 = vmatprep.mubr.f32.mxu0 0.0
    %814 = vmatmul.mubr.f32.gmra.mxu0 %v747
    %v815 = vpop.f32.mrf.mxu0
    %v816 = vadd.f32 %v399, %v815
    %v817 = vpop.f32.mrf.mxu0
    %818 = vdwg.mxu0
    %v819 = vadd.f32 %v229, %v816
    %v820 = vxor.u32 %v819, 2147483648
    %v821 = vmul.f32 %v820, 1.442695
    %v822 = vpow.pop %v821
    %v823 = vadd.f32 %v822, 1.0
    %v824 = vrcp.pop %v823
    %v825 = vmul.f32 1.0, %v824
    %v828 = vunpack.c.l.s4 1983009808
    %v829 = vunpack.c.0.s8 %v828
    %v830 = vlaneseq
    %v831 = vshrl.u32 %v830, 7
    %v832 = vsub.s32 %v829, %v831
    %v833 = vrot.slane %v816, %v832
    %834 = vrot.lane.b32.xlu0 %v833, 64
    %v835 = vpop.permute.xlu0 %834
    %v837 = vmul.f32 %v825, %v835
    %839 = vrot.lane.b32.xlu0 %v837, 64
    %v840 = vpop.permute.xlu0 %839
    %v842 = vadd.f32 %v229, %v840
    %v843 = vtanh.pop %v842
    %v844 = vsub.f32 1.0, %v825
    %846 = vrot.lane.b32.xlu0 %v843, 96
    %v847 = vpop.permute.xlu0 %846
    %v849 = vmul.f32 %v844, %v847
    %v850 = vmul.f32 %v825, %v736
    %v851 = vadd.f32 %v849, %v850
    %v854 = vunpack.c.l.s4 1983009808
    %v855 = vunpack.c.0.s8 %v854
    %v856 = vlaneseq
    %v857 = vshrl.u32 %v856, 7
    %v858 = vsub.s32 %v855, %v857
    %v859 = vrot.slane %v851, %v858
    %860 = vrot.lane.b32.xlu0 %v859, 96
    %v861 = vpop.permute.xlu0 %860
    %v862 = vsel %vm131, %v861, 0
    %864 = vmatprep.subr.mxu0 0.0
    %865 = vmatpush1.msra.mxu0 0.0
    %866 = vmatprep.subr.mxu0 0.0
    %867 = vmatpush1.msra.mxu0 0.0
    %868 = vmatprep.subr.mxu0 0.0
    %869 = vmatpush1.msra.mxu0 0.0
    %870 = vmatprep.subr.mxu0 0.0
    %871 = vmatpush1.msra.mxu0 0.0
    %872 = vmatprep.subr.mxu0 0.0
    %873 = vmatpush1.msra.mxu0 0.0
    %874 = vmatprep.subr.mxu0 0.0
    %875 = vmatpush1.msra.mxu0 0.0
    %876 = vmatprep.subr.mxu0 0.0
    %877 = vmatpush1.msra.mxu0 0.0
    %878 = vmatprep.subr.mxu0 0.0
    %879 = vmatpush1.msra.mxu0 0.0
    %880 = vmatprep.subr.mxu0 0.0
    %881 = vmatpush1.msra.mxu0 0.0
    %882 = vmatprep.subr.mxu0 0.0
    %883 = vmatpush1.msra.mxu0 0.0
    %884 = vmatprep.subr.mxu0 0.0
    %885 = vmatpush1.msra.mxu0 0.0
    %886 = vmatprep.subr.mxu0 0.0
    %887 = vmatpush1.msra.mxu0 0.0
    %888 = vmatprep.subr.mxu0 0.0
    %889 = vmatpush1.msra.mxu0 %v388
    %890 = vmatprep.subr.mxu0 0.0
    %891 = vmatpush1.msra.mxu0 %v387
    %892 = vmatprep.subr.mxu0 0.0
    %893 = vmatpush1.msra.mxu0 %v386
    %894 = vmatprep.subr.mxu0 0.0
    %895 = vmatpush1.msra.mxu0 %v385
    %896 = vmatprep.subr.mxu0 0.0
    %897 = vmatpush2.msra.mxu0 0.0
    %898 = vmatprep.subr.mxu0 0.0
    %899 = vmatpush2.msra.mxu0 0.0
    %900 = vmatprep.subr.mxu0 0.0
    %901 = vmatpush2.msra.mxu0 0.0
    %902 = vmatprep.subr.mxu0 0.0
    %903 = vmatpush2.msra.mxu0 0.0
    %904 = vmatprep.subr.mxu0 0.0
    %905 = vmatpush2.msra.mxu0 0.0
    %906 = vmatprep.subr.mxu0 0.0
    %907 = vmatpush2.msra.mxu0 0.0
    %908 = vmatprep.subr.mxu0 0.0
    %909 = vmatpush2.msra.mxu0 0.0
    %910 = vmatprep.subr.mxu0 0.0
    %911 = vmatpush2.msra.mxu0 0.0
    %912 = vmatprep.subr.mxu0 0.0
    %913 = vmatpush2.msra.mxu0 0.0
    %914 = vmatprep.subr.mxu0 0.0
    %915 = vmatpush2.msra.mxu0 0.0
    %916 = vmatprep.subr.mxu0 0.0
    %917 = vmatpush2.msra.mxu0 0.0
    %918 = vmatprep.subr.mxu0 0.0
    %919 = vmatpush2.msra.mxu0 0.0
    %920 = vmatprep.subr.mxu0 0.0
    %921 = vmatpush2.msra.mxu0 0.0
    %922 = vmatprep.subr.mxu0 0.0
    %923 = vmatpush2.msra.mxu0 0.0
    %924 = vmatprep.subr.mxu0 0.0
    %925 = vmatpush2.msra.mxu0 0.0
    %926 = vmatprep.subr.mxu0 0.0
    %927 = vmatpush2.msra.mxu0 0.0
    %928 = vmatprep.mubr.f32.mxu0 0.0
    %929 = vmatmul.mubr.f32.gmra.mxu0 %v862
    %v930 = vpop.f32.mrf.mxu0
    %v931 = vadd.f32 %v399, %v930
    %v932 = vpop.f32.mrf.mxu0
    %933 = vdwg.mxu0
    %v934 = vadd.f32 %v237, %v931
    %v935 = vxor.u32 %v934, 2147483648
    %v936 = vmul.f32 %v935, 1.442695
    %v937 = vpow.pop %v936
    %v938 = vadd.f32 %v937, 1.0
    %v939 = vrcp.pop %v938
    %v940 = vmul.f32 1.0, %v939
    %v943 = vunpack.c.l.s4 1983009808
    %v944 = vunpack.c.0.s8 %v943
    %v945 = vlaneseq
    %v946 = vshrl.u32 %v945, 7
    %v947 = vsub.s32 %v944, %v946
    %v948 = vrot.slane %v931, %v947
    %949 = vrot.lane.b32.xlu0 %v948, 64
    %v950 = vpop.permute.xlu0 %949
    %v952 = vmul.f32 %v940, %v950
    %954 = vrot.lane.b32.xlu0 %v952, 64
    %v955 = vpop.permute.xlu0 %954
    %v957 = vadd.f32 %v237, %v955
    %v958 = vtanh.pop %v957
    %v959 = vsub.f32 1.0, %v940
    %961 = vrot.lane.b32.xlu0 %v958, 96
    %v962 = vpop.permute.xlu0 %961
    %v964 = vmul.f32 %v959, %v962
    %v965 = vmul.f32 %v940, %v851
    %v966 = vadd.f32 %v964, %v965
    %v969 = vunpack.c.l.s4 1983009808
    %v970 = vunpack.c.0.s8 %v969
    %v971 = vlaneseq
    %v972 = vshrl.u32 %v971, 7
    %v973 = vsub.s32 %v970, %v972
    %v974 = vrot.slane %v966, %v973
    %975 = vrot.lane.b32.xlu0 %v974, 96
    %v976 = vpop.permute.xlu0 %975
    %v977 = vsel %vm131, %v976, 0
    %979 = vmatprep.subr.mxu0 0.0
    %980 = vmatpush1.msra.mxu0 0.0
    %981 = vmatprep.subr.mxu0 0.0
    %982 = vmatpush1.msra.mxu0 0.0
    %983 = vmatprep.subr.mxu0 0.0
    %984 = vmatpush1.msra.mxu0 0.0
    %985 = vmatprep.subr.mxu0 0.0
    %986 = vmatpush1.msra.mxu0 0.0
    %987 = vmatprep.subr.mxu0 0.0
    %988 = vmatpush1.msra.mxu0 0.0
    %989 = vmatprep.subr.mxu0 0.0
    %990 = vmatpush1.msra.mxu0 0.0
    %991 = vmatprep.subr.mxu0 0.0
    %992 = vmatpush1.msra.mxu0 0.0
    %993 = vmatprep.subr.mxu0 0.0
    %994 = vmatpush1.msra.mxu0 0.0
    %995 = vmatprep.subr.mxu0 0.0
    %996 = vmatpush1.msra.mxu0 0.0
    %997 = vmatprep.subr.mxu0 0.0
    %998 = vmatpush1.msra.mxu0 0.0
    %999 = vmatprep.subr.mxu0 0.0
    %1000 = vmatpush1.msra.mxu0 0.0
    %1001 = vmatprep.subr.mxu0 0.0
    %1002 = vmatpush1.msra.mxu0 0.0
    %1003 = vmatprep.subr.mxu0 0.0
    %1004 = vmatpush1.msra.mxu0 %v388
    %1005 = vmatprep.subr.mxu0 0.0
    %1006 = vmatpush1.msra.mxu0 %v387
    %1007 = vmatprep.subr.mxu0 0.0
    %1008 = vmatpush1.msra.mxu0 %v386
    %1009 = vmatprep.subr.mxu0 0.0
    %1010 = vmatpush1.msra.mxu0 %v385
    %1011 = vmatprep.subr.mxu0 0.0
    %1012 = vmatpush2.msra.mxu0 0.0
    %1013 = vmatprep.subr.mxu0 0.0
    %1014 = vmatpush2.msra.mxu0 0.0
    %1015 = vmatprep.subr.mxu0 0.0
    %1016 = vmatpush2.msra.mxu0 0.0
    %1017 = vmatprep.subr.mxu0 0.0
    %1018 = vmatpush2.msra.mxu0 0.0
    %1019 = vmatprep.subr.mxu0 0.0
    %1020 = vmatpush2.msra.mxu0 0.0
    %1021 = vmatprep.subr.mxu0 0.0
    %1022 = vmatpush2.msra.mxu0 0.0
    %1023 = vmatprep.subr.mxu0 0.0
    %1024 = vmatpush2.msra.mxu0 0.0
    %1025 = vmatprep.subr.mxu0 0.0
    %1026 = vmatpush2.msra.mxu0 0.0
    %1027 = vmatprep.subr.mxu0 0.0
    %1028 = vmatpush2.msra.mxu0 0.0
    %1029 = vmatprep.subr.mxu0 0.0
    %1030 = vmatpush2.msra.mxu0 0.0
    %1031 = vmatprep.subr.mxu0 0.0
    %1032 = vmatpush2.msra.mxu0 0.0
    %1033 = vmatprep.subr.mxu0 0.0
    %1034 = vmatpush2.msra.mxu0 0.0
    %1035 = vmatprep.subr.mxu0 0.0
    %1036 = vmatpush2.msra.mxu0 0.0
    %1037 = vmatprep.subr.mxu0 0.0
    %1038 = vmatpush2.msra.mxu0 0.0
    %1039 = vmatprep.subr.mxu0 0.0
    %1040 = vmatpush2.msra.mxu0 0.0
    %1041 = vmatprep.subr.mxu0 0.0
    %1042 = vmatpush2.msra.mxu0 0.0
    %1043 = vmatprep.mubr.f32.mxu0 0.0
    %1044 = vmatmul.mubr.f32.gmra.mxu0 %v977
    %v1045 = vpop.f32.mrf.mxu0
    %v1046 = vadd.f32 %v399, %v1045
    %v1047 = vpop.f32.mrf.mxu0
    %1048 = vdwg.mxu0
    %v1049 = vadd.f32 %v245, %v1046
    %v1050 = vxor.u32 %v1049, 2147483648
    %v1051 = vmul.f32 %v1050, 1.442695
    %v1052 = vpow.pop %v1051
    %v1053 = vadd.f32 %v1052, 1.0
    %v1054 = vrcp.pop %v1053
    %v1055 = vmul.f32 1.0, %v1054
    %v1058 = vunpack.c.l.s4 1983009808
    %v1059 = vunpack.c.0.s8 %v1058
    %v1060 = vlaneseq
    %v1061 = vshrl.u32 %v1060, 7
    %v1062 = vsub.s32 %v1059, %v1061
    %v1063 = vrot.slane %v1046, %v1062
    %1064 = vrot.lane.b32.xlu0 %v1063, 64
    %v1065 = vpop.permute.xlu0 %1064
    %v1067 = vmul.f32 %v1055, %v1065
    %1069 = vrot.lane.b32.xlu0 %v1067, 64
    %v1070 = vpop.permute.xlu0 %1069
    %v1072 = vadd.f32 %v245, %v1070
    %v1073 = vtanh.pop %v1072
    %v1074 = vsub.f32 1.0, %v1055
    %1076 = vrot.lane.b32.xlu0 %v1073, 96
    %v1077 = vpop.permute.xlu0 %1076
    %v1079 = vmul.f32 %v1074, %v1077
    %v1080 = vmul.f32 %v1055, %v966
    %v1081 = vadd.f32 %v1079, %v1080
    %v1084 = vunpack.c.l.s4 1983009808
    %v1085 = vunpack.c.0.s8 %v1084
    %v1086 = vlaneseq
    %v1087 = vshrl.u32 %v1086, 7
    %v1088 = vsub.s32 %v1085, %v1087
    %v1089 = vrot.slane %v1081, %v1088
    %1090 = vrot.lane.b32.xlu0 %v1089, 96
    %v1091 = vpop.permute.xlu0 %1090
    %v1092 = vsel %vm131, %v1091, 0
    %1094 = vmatprep.subr.mxu0 0.0
    %1095 = vmatpush1.msra.mxu0 0.0
    %1096 = vmatprep.subr.mxu0 0.0
    %1097 = vmatpush1.msra.mxu0 0.0
    %1098 = vmatprep.subr.mxu0 0.0
    %1099 = vmatpush1.msra.mxu0 0.0
    %1100 = vmatprep.subr.mxu0 0.0
    %1101 = vmatpush1.msra.mxu0 0.0
    %1102 = vmatprep.subr.mxu0 0.0
    %1103 = vmatpush1.msra.mxu0 0.0
    %1104 = vmatprep.subr.mxu0 0.0
    %1105 = vmatpush1.msra.mxu0 0.0
    %1106 = vmatprep.subr.mxu0 0.0
    %1107 = vmatpush1.msra.mxu0 0.0
    %1108 = vmatprep.subr.mxu0 0.0
    %1109 = vmatpush1.msra.mxu0 0.0
    %1110 = vmatprep.subr.mxu0 0.0
    %1111 = vmatpush1.msra.mxu0 0.0
    %1112 = vmatprep.subr.mxu0 0.0
    %1113 = vmatpush1.msra.mxu0 0.0
    %1114 = vmatprep.subr.mxu0 0.0
    %1115 = vmatpush1.msra.mxu0 0.0
    %1116 = vmatprep.subr.mxu0 0.0
    %1117 = vmatpush1.msra.mxu0 0.0
    %1118 = vmatprep.subr.mxu0 0.0
    %1119 = vmatpush1.msra.mxu0 %v388
    %1120 = vmatprep.subr.mxu0 0.0
    %1121 = vmatpush1.msra.mxu0 %v387
    %1122 = vmatprep.subr.mxu0 0.0
    %1123 = vmatpush1.msra.mxu0 %v386
    %1124 = vmatprep.subr.mxu0 0.0
    %1125 = vmatpush1.msra.mxu0 %v385
    %1126 = vmatprep.subr.mxu0 0.0
    %1127 = vmatpush2.msra.mxu0 0.0
    %1128 = vmatprep.subr.mxu0 0.0
    %1129 = vmatpush2.msra.mxu0 0.0
    %1130 = vmatprep.subr.mxu0 0.0
    %1131 = vmatpush2.msra.mxu0 0.0
    %1132 = vmatprep.subr.mxu0 0.0
    %1133 = vmatpush2.msra.mxu0 0.0
    %1134 = vmatprep.subr.mxu0 0.0
    %1135 = vmatpush2.msra.mxu0 0.0
    %1136 = vmatprep.subr.mxu0 0.0
    %1137 = vmatpush2.msra.mxu0 0.0
    %1138 = vmatprep.subr.mxu0 0.0
    %1139 = vmatpush2.msra.mxu0 0.0
    %1140 = vmatprep.subr.mxu0 0.0
    %1141 = vmatpush2.msra.mxu0 0.0
    %1142 = vmatprep.subr.mxu0 0.0
    %1143 = vmatpush2.msra.mxu0 0.0
    %1144 = vmatprep.subr.mxu0 0.0
    %1145 = vmatpush2.msra.mxu0 0.0
    %1146 = vmatprep.subr.mxu0 0.0
    %1147 = vmatpush2.msra.mxu0 0.0
    %1148 = vmatprep.subr.mxu0 0.0
    %1149 = vmatpush2.msra.mxu0 0.0
    %1150 = vmatprep.subr.mxu0 0.0
    %1151 = vmatpush2.msra.mxu0 0.0
    %1152 = vmatprep.subr.mxu0 0.0
    %1153 = vmatpush2.msra.mxu0 0.0
    %1154 = vmatprep.subr.mxu0 0.0
    %1155 = vmatpush2.msra.mxu0 0.0
    %1156 = vmatprep.subr.mxu0 0.0
    %1157 = vmatpush2.msra.mxu0 0.0
    %1158 = vmatprep.mubr.f32.mxu0 0.0
    %1159 = vmatmul.mubr.f32.gmra.mxu0 %v1092
    %v1160 = vpop.f32.mrf.mxu0
    %v1161 = vadd.f32 %v399, %v1160
    %v1162 = vpop.f32.mrf.mxu0
    %1163 = vdwg.mxu0
    %v1164 = vadd.f32 %v244, %v1161
    %v1165 = vxor.u32 %v1164, 2147483648
    %v1166 = vmul.f32 %v1165, 1.442695
    %v1167 = vpow.pop %v1166
    %v1168 = vadd.f32 %v1167, 1.0
    %v1169 = vrcp.pop %v1168
    %v1170 = vmul.f32 1.0, %v1169
    %v1173 = vunpack.c.l.s4 1983009808
    %v1174 = vunpack.c.0.s8 %v1173
    %v1175 = vlaneseq
    %v1176 = vshrl.u32 %v1175, 7
    %v1177 = vsub.s32 %v1174, %v1176
    %v1178 = vrot.slane %v1161, %v1177
    %1179 = vrot.lane.b32.xlu0 %v1178, 64
    %v1180 = vpop.permute.xlu0 %1179
    %v1182 = vmul.f32 %v1170, %v1180
    %1184 = vrot.lane.b32.xlu0 %v1182, 64
    %v1185 = vpop.permute.xlu0 %1184
    %v1187 = vadd.f32 %v244, %v1185
    %v1188 = vtanh.pop %v1187
    %v1189 = vsub.f32 1.0, %v1170
    %1191 = vrot.lane.b32.xlu0 %v1188, 96
    %v1192 = vpop.permute.xlu0 %1191
    %v1194 = vmul.f32 %v1189, %v1192
    %v1195 = vmul.f32 %v1170, %v1081
    %v1196 = vadd.f32 %v1194, %v1195
    %v1199 = vunpack.c.l.s4 1983009808
    %v1200 = vunpack.c.0.s8 %v1199
    %v1201 = vlaneseq
    %v1202 = vshrl.u32 %v1201, 7
    %v1203 = vsub.s32 %v1200, %v1202
    %v1204 = vrot.slane %v1196, %v1203
    %1205 = vrot.lane.b32.xlu0 %v1204, 96
    %v1206 = vpop.permute.xlu0 %1205
    %v1207 = vsel %vm131, %v1206, 0
    %1209 = vmatprep.subr.mxu0 0.0
    %1210 = vmatpush1.msra.mxu0 0.0
    %1211 = vmatprep.subr.mxu0 0.0
    %1212 = vmatpush1.msra.mxu0 0.0
    %1213 = vmatprep.subr.mxu0 0.0
    %1214 = vmatpush1.msra.mxu0 0.0
    %1215 = vmatprep.subr.mxu0 0.0
    %1216 = vmatpush1.msra.mxu0 0.0
    %1217 = vmatprep.subr.mxu0 0.0
    %1218 = vmatpush1.msra.mxu0 0.0
    %1219 = vmatprep.subr.mxu0 0.0
    %1220 = vmatpush1.msra.mxu0 0.0
    %1221 = vmatprep.subr.mxu0 0.0
    %1222 = vmatpush1.msra.mxu0 0.0
    %1223 = vmatprep.subr.mxu0 0.0
    %1224 = vmatpush1.msra.mxu0 0.0
    %1225 = vmatprep.subr.mxu0 0.0
    %1226 = vmatpush1.msra.mxu0 0.0
    %1227 = vmatprep.subr.mxu0 0.0
    %1228 = vmatpush1.msra.mxu0 0.0
    %1229 = vmatprep.subr.mxu0 0.0
    %1230 = vmatpush1.msra.mxu0 0.0
    %1231 = vmatprep.subr.mxu0 0.0
    %1232 = vmatpush1.msra.mxu0 0.0
    %1233 = vmatprep.subr.mxu0 0.0
    %1234 = vmatpush1.msra.mxu0 %v388
    %1235 = vmatprep.subr.mxu0 0.0
    %1236 = vmatpush1.msra.mxu0 %v387
    %1237 = vmatprep.subr.mxu0 0.0
    %1238 = vmatpush1.msra.mxu0 %v386
    %1239 = vmatprep.subr.mxu0 0.0
    %1240 = vmatpush1.msra.mxu0 %v385
    %1241 = vmatprep.subr.mxu0 0.0
    %1242 = vmatpush2.msra.mxu0 0.0
    %1243 = vmatprep.subr.mxu0 0.0
    %1244 = vmatpush2.msra.mxu0 0.0
    %1245 = vmatprep.subr.mxu0 0.0
    %1246 = vmatpush2.msra.mxu0 0.0
    %1247 = vmatprep.subr.mxu0 0.0
    %1248 = vmatpush2.msra.mxu0 0.0
    %1249 = vmatprep.subr.mxu0 0.0
    %1250 = vmatpush2.msra.mxu0 0.0
    %1251 = vmatprep.subr.mxu0 0.0
    %1252 = vmatpush2.msra.mxu0 0.0
    %1253 = vmatprep.subr.mxu0 0.0
    %1254 = vmatpush2.msra.mxu0 0.0
    %1255 = vmatprep.subr.mxu0 0.0
    %1256 = vmatpush2.msra.mxu0 0.0
    %1257 = vmatprep.subr.mxu0 0.0
    %1258 = vmatpush2.msra.mxu0 0.0
    %1259 = vmatprep.subr.mxu0 0.0
    %1260 = vmatpush2.msra.mxu0 0.0
    %1261 = vmatprep.subr.mxu0 0.0
    %1262 = vmatpush2.msra.mxu0 0.0
    %1263 = vmatprep.subr.mxu0 0.0
    %1264 = vmatpush2.msra.mxu0 0.0
    %1265 = vmatprep.subr.mxu0 0.0
    %1266 = vmatpush2.msra.mxu0 0.0
    %1267 = vmatprep.subr.mxu0 0.0
    %1268 = vmatpush2.msra.mxu0 0.0
    %1269 = vmatprep.subr.mxu0 0.0
    %1270 = vmatpush2.msra.mxu0 0.0
    %1271 = vmatprep.subr.mxu0 0.0
    %1272 = vmatpush2.msra.mxu0 0.0
    %1273 = vmatprep.mubr.f32.mxu0 0.0
    %1274 = vmatmul.mubr.f32.gmra.mxu0 %v1207
    %v1275 = vpop.f32.mrf.mxu0
    %v1276 = vadd.f32 %v399, %v1275
    %v1277 = vpop.f32.mrf.mxu0
    %1278 = vdwg.mxu0
    %v1279 = vadd.f32 %v246, %v1276
    %v1280 = vxor.u32 %v1279, 2147483648
    %v1281 = vmul.f32 %v1280, 1.442695
    %v1282 = vpow.pop %v1281
    %v1283 = vadd.f32 %v1282, 1.0
    %v1284 = vrcp.pop %v1283
    %v1285 = vmul.f32 1.0, %v1284
    %v1288 = vunpack.c.l.s4 1983009808
    %v1289 = vunpack.c.0.s8 %v1288
    %v1290 = vlaneseq
    %v1291 = vshrl.u32 %v1290, 7
    %v1292 = vsub.s32 %v1289, %v1291
    %v1293 = vrot.slane %v1276, %v1292
    %1294 = vrot.lane.b32.xlu0 %v1293, 64
    %v1295 = vpop.permute.xlu0 %1294
    %v1297 = vmul.f32 %v1285, %v1295
    %1299 = vrot.lane.b32.xlu0 %v1297, 64
    %v1300 = vpop.permute.xlu0 %1299
    %v1302 = vadd.f32 %v246, %v1300
    %v1303 = vtanh.pop %v1302
    %v1304 = vsub.f32 1.0, %v1285
    %1306 = vrot.lane.b32.xlu0 %v1303, 96
    %v1307 = vpop.permute.xlu0 %1306
    %v1309 = vmul.f32 %v1304, %v1307
    %v1310 = vmul.f32 %v1285, %v1196
    %v1311 = vadd.f32 %v1309, %v1310
    %v1313 = vlaneseq
    %v1314 = vshrl.u32 %v1313, 7
    %v1315 = vsub.s32 0, %v1314
    %v1316 = vrot.slane %v394, %v1315
    %1318 = vmatprep.subr.mxu0 0.0
    %1319 = vmatpush1.msra.mxu0 0.0
    %1320 = vmatprep.subr.mxu0 0.0
    %1321 = vmatpush1.msra.mxu0 0.0
    %1322 = vmatprep.subr.mxu0 0.0
    %1323 = vmatpush1.msra.mxu0 0.0
    %1324 = vmatprep.subr.mxu0 0.0
    %1325 = vmatpush1.msra.mxu0 0.0
    %1326 = vmatprep.subr.mxu0 0.0
    %1327 = vmatpush1.msra.mxu0 0.0
    %1328 = vmatprep.subr.mxu0 0.0
    %1329 = vmatpush1.msra.mxu0 0.0
    %1330 = vmatprep.subr.mxu0 0.0
    %1331 = vmatpush1.msra.mxu0 0.0
    %1332 = vmatprep.subr.mxu0 0.0
    %1333 = vmatpush1.msra.mxu0 0.0
    %1334 = vmatprep.subr.mxu0 0.0
    %1335 = vmatpush1.msra.mxu0 0.0
    %1336 = vmatprep.subr.mxu0 0.0
    %1337 = vmatpush1.msra.mxu0 0.0
    %1338 = vmatprep.subr.mxu0 0.0
    %1339 = vmatpush1.msra.mxu0 0.0
    %1340 = vmatprep.subr.mxu0 0.0
    %1341 = vmatpush1.msra.mxu0 0.0
    %1342 = vmatprep.subr.mxu0 0.0
    %1343 = vmatpush1.msra.mxu0 %v393
    %1344 = vmatprep.subr.mxu0 0.0
    %1345 = vmatpush1.msra.mxu0 %v392
    %1346 = vmatprep.subr.mxu0 0.0
    %1347 = vmatpush1.msra.mxu0 %v391
    %1348 = vmatprep.subr.mxu0 0.0
    %1349 = vmatpush1.msra.mxu0 %v390
    %1350 = vmatprep.subr.mxu0 0.0
    %1351 = vmatpush2.msra.mxu0 0.0
    %1352 = vmatprep.subr.mxu0 0.0
    %1353 = vmatpush2.msra.mxu0 0.0
    %1354 = vmatprep.subr.mxu0 0.0
    %1355 = vmatpush2.msra.mxu0 0.0
    %1356 = vmatprep.subr.mxu0 0.0
    %1357 = vmatpush2.msra.mxu0 0.0
    %1358 = vmatprep.subr.mxu0 0.0
    %1359 = vmatpush2.msra.mxu0 0.0
    %1360 = vmatprep.subr.mxu0 0.0
    %1361 = vmatpush2.msra.mxu0 0.0
    %1362 = vmatprep.subr.mxu0 0.0
    %1363 = vmatpush2.msra.mxu0 0.0
    %1364 = vmatprep.subr.mxu0 0.0
    %1365 = vmatpush2.msra.mxu0 0.0
    %1366 = vmatprep.subr.mxu0 0.0
    %1367 = vmatpush2.msra.mxu0 0.0
    %1368 = vmatprep.subr.mxu0 0.0
    %1369 = vmatpush2.msra.mxu0 0.0
    %1370 = vmatprep.subr.mxu0 0.0
    %1371 = vmatpush2.msra.mxu0 0.0
    %1372 = vmatprep.subr.mxu0 0.0
    %1373 = vmatpush2.msra.mxu0 0.0
    %1374 = vmatprep.subr.mxu0 0.0
    %1375 = vmatpush2.msra.mxu0 0.0
    %1376 = vmatprep.subr.mxu0 0.0
    %1377 = vmatpush2.msra.mxu0 0.0
    %1378 = vmatprep.subr.mxu0 0.0
    %1379 = vmatpush2.msra.mxu0 0.0
    %1380 = vmatprep.subr.mxu0 0.0
    %1381 = vmatpush2.msra.mxu0 0.0
    %1382 = vmatprep.mubr.f32.mxu0 0.0
    %1383 = vmatmul.mubr.f32.gmra.mxu0 %v402
    %v1384 = vpop.f32.mrf.mxu0
    %v1385 = vadd.f32 %v1316, %v1384
    %v1386 = vpop.f32.mrf.mxu0
    %1387 = vdwg.mxu0
    %v1388 = vadd.f32 %v376, %v1385
    %v1389 = vxor.u32 %v1388, 2147483648
    %v1390 = vmul.f32 %v1389, 1.442695
    %v1391 = vpow.pop %v1390
    %v1392 = vadd.f32 %v1391, 1.0
    %v1393 = vrcp.pop %v1392
    %v1394 = vmul.f32 1.0, %v1393
    %v1397 = vunpack.c.l.s4 1983009808
    %v1398 = vunpack.c.0.s8 %v1397
    %v1399 = vlaneseq
    %v1400 = vshrl.u32 %v1399, 7
    %v1401 = vsub.s32 %v1398, %v1400
    %v1402 = vrot.slane %v1385, %v1401
    %1403 = vrot.lane.b32.xlu0 %v1402, 64
    %v1404 = vpop.permute.xlu0 %1403
    %v1406 = vmul.f32 %v1394, %v1404
    %1408 = vrot.lane.b32.xlu0 %v1406, 64
    %v1409 = vpop.permute.xlu0 %1408
    %v1411 = vadd.f32 %v376, %v1409
    %v1412 = vtanh.pop %v1411
    %v1413 = vsub.f32 1.0, %v1394
    %1415 = vrot.lane.b32.xlu0 %v1412, 96
    %v1416 = vpop.permute.xlu0 %1415
    %v1418 = vmul.f32 %v1413, %v1416
    %v1419 = vmul.f32 %v1394, 0.0
    %v1420 = vadd.f32 %v1418, %v1419
    %v1423 = vunpack.c.l.s4 1983009808
    %v1424 = vunpack.c.0.s8 %v1423
    %v1425 = vlaneseq
    %v1426 = vshrl.u32 %v1425, 7
    %v1427 = vsub.s32 %v1424, %v1426
    %v1428 = vrot.slane %v1420, %v1427
    %1429 = vrot.lane.b32.xlu0 %v1428, 96
    %v1430 = vpop.permute.xlu0 %1429
    %v1431 = vsel %vm131, %v1430, 0
    %1433 = vmatprep.subr.mxu0 0.0
    %1434 = vmatpush1.msra.mxu0 0.0
    %1435 = vmatprep.subr.mxu0 0.0
    %1436 = vmatpush1.msra.mxu0 0.0
    %1437 = vmatprep.subr.mxu0 0.0
    %1438 = vmatpush1.msra.mxu0 0.0
    %1439 = vmatprep.subr.mxu0 0.0
    %1440 = vmatpush1.msra.mxu0 0.0
    %1441 = vmatprep.subr.mxu0 0.0
    %1442 = vmatpush1.msra.mxu0 0.0
    %1443 = vmatprep.subr.mxu0 0.0
    %1444 = vmatpush1.msra.mxu0 0.0
    %1445 = vmatprep.subr.mxu0 0.0
    %1446 = vmatpush1.msra.mxu0 0.0
    %1447 = vmatprep.subr.mxu0 0.0
    %1448 = vmatpush1.msra.mxu0 0.0
    %1449 = vmatprep.subr.mxu0 0.0
    %1450 = vmatpush1.msra.mxu0 0.0
    %1451 = vmatprep.subr.mxu0 0.0
    %1452 = vmatpush1.msra.mxu0 0.0
    %1453 = vmatprep.subr.mxu0 0.0
    %1454 = vmatpush1.msra.mxu0 0.0
    %1455 = vmatprep.subr.mxu0 0.0
    %1456 = vmatpush1.msra.mxu0 0.0
    %1457 = vmatprep.subr.mxu0 0.0
    %1458 = vmatpush1.msra.mxu0 %v393
    %1459 = vmatprep.subr.mxu0 0.0
    %1460 = vmatpush1.msra.mxu0 %v392
    %1461 = vmatprep.subr.mxu0 0.0
    %1462 = vmatpush1.msra.mxu0 %v391
    %1463 = vmatprep.subr.mxu0 0.0
    %1464 = vmatpush1.msra.mxu0 %v390
    %1465 = vmatprep.subr.mxu0 0.0
    %1466 = vmatpush2.msra.mxu0 0.0
    %1467 = vmatprep.subr.mxu0 0.0
    %1468 = vmatpush2.msra.mxu0 0.0
    %1469 = vmatprep.subr.mxu0 0.0
    %1470 = vmatpush2.msra.mxu0 0.0
    %1471 = vmatprep.subr.mxu0 0.0
    %1472 = vmatpush2.msra.mxu0 0.0
    %1473 = vmatprep.subr.mxu0 0.0
    %1474 = vmatpush2.msra.mxu0 0.0
    %1475 = vmatprep.subr.mxu0 0.0
    %1476 = vmatpush2.msra.mxu0 0.0
    %1477 = vmatprep.subr.mxu0 0.0
    %1478 = vmatpush2.msra.mxu0 0.0
    %1479 = vmatprep.subr.mxu0 0.0
    %1480 = vmatpush2.msra.mxu0 0.0
    %1481 = vmatprep.subr.mxu0 0.0
    %1482 = vmatpush2.msra.mxu0 0.0
    %1483 = vmatprep.subr.mxu0 0.0
    %1484 = vmatpush2.msra.mxu0 0.0
    %1485 = vmatprep.subr.mxu0 0.0
    %1486 = vmatpush2.msra.mxu0 0.0
    %1487 = vmatprep.subr.mxu0 0.0
    %1488 = vmatpush2.msra.mxu0 0.0
    %1489 = vmatprep.subr.mxu0 0.0
    %1490 = vmatpush2.msra.mxu0 0.0
    %1491 = vmatprep.subr.mxu0 0.0
    %1492 = vmatpush2.msra.mxu0 0.0
    %1493 = vmatprep.subr.mxu0 0.0
    %1494 = vmatpush2.msra.mxu0 0.0
    %1495 = vmatprep.subr.mxu0 0.0
    %1496 = vmatpush2.msra.mxu0 0.0
    %1497 = vmatprep.mubr.f32.mxu0 0.0
    %1498 = vmatmul.mubr.f32.gmra.mxu0 %v1431
    %v1499 = vpop.f32.mrf.mxu0
    %v1500 = vadd.f32 %v1316, %v1499
    %v1501 = vpop.f32.mrf.mxu0
    %1502 = vdwg.mxu0
    %v1503 = vadd.f32 %v374, %v1500
    %v1504 = vxor.u32 %v1503, 2147483648
    %v1505 = vmul.f32 %v1504, 1.442695
    %v1506 = vpow.pop %v1505
    %v1507 = vadd.f32 %v1506, 1.0
    %v1508 = vrcp.pop %v1507
    %v1509 = vmul.f32 1.0, %v1508
    %v1512 = vunpack.c.l.s4 1983009808
    %v1513 = vunpack.c.0.s8 %v1512
    %v1514 = vlaneseq
    %v1515 = vshrl.u32 %v1514, 7
    %v1516 = vsub.s32 %v1513, %v1515
    %v1517 = vrot.slane %v1500, %v1516
    %1518 = vrot.lane.b32.xlu0 %v1517, 64
    %v1519 = vpop.permute.xlu0 %1518
    %v1521 = vmul.f32 %v1509, %v1519
    %1523 = vrot.lane.b32.xlu0 %v1521, 64
    %v1524 = vpop.permute.xlu0 %1523
    %v1526 = vadd.f32 %v374, %v1524
    %v1527 = vtanh.pop %v1526
    %v1528 = vsub.f32 1.0, %v1509
    %1530 = vrot.lane.b32.xlu0 %v1527, 96
    %v1531 = vpop.permute.xlu0 %1530
    %v1533 = vmul.f32 %v1528, %v1531
    %v1534 = vmul.f32 %v1509, %v1420
    %v1535 = vadd.f32 %v1533, %v1534
    %v1538 = vunpack.c.l.s4 1983009808
    %v1539 = vunpack.c.0.s8 %v1538
    %v1540 = vlaneseq
    %v1541 = vshrl.u32 %v1540, 7
    %v1542 = vsub.s32 %v1539, %v1541
    %v1543 = vrot.slane %v1535, %v1542
    %1544 = vrot.lane.b32.xlu0 %v1543, 96
    %v1545 = vpop.permute.xlu0 %1544
    %v1546 = vsel %vm131, %v1545, 0
    %1548 = vmatprep.subr.mxu0 0.0
    %1549 = vmatpush1.msra.mxu0 0.0
    %1550 = vmatprep.subr.mxu0 0.0
    %1551 = vmatpush1.msra.mxu0 0.0
    %1552 = vmatprep.subr.mxu0 0.0
    %1553 = vmatpush1.msra.mxu0 0.0
    %1554 = vmatprep.subr.mxu0 0.0
    %1555 = vmatpush1.msra.mxu0 0.0
    %1556 = vmatprep.subr.mxu0 0.0
    %1557 = vmatpush1.msra.mxu0 0.0
    %1558 = vmatprep.subr.mxu0 0.0
    %1559 = vmatpush1.msra.mxu0 0.0
    %1560 = vmatprep.subr.mxu0 0.0
    %1561 = vmatpush1.msra.mxu0 0.0
    %1562 = vmatprep.subr.mxu0 0.0
    %1563 = vmatpush1.msra.mxu0 0.0
    %1564 = vmatprep.subr.mxu0 0.0
    %1565 = vmatpush1.msra.mxu0 0.0
    %1566 = vmatprep.subr.mxu0 0.0
    %1567 = vmatpush1.msra.mxu0 0.0
    %1568 = vmatprep.subr.mxu0 0.0
    %1569 = vmatpush1.msra.mxu0 0.0
    %1570 = vmatprep.subr.mxu0 0.0
    %1571 = vmatpush1.msra.mxu0 0.0
    %1572 = vmatprep.subr.mxu0 0.0
    %1573 = vmatpush1.msra.mxu0 %v393
    %1574 = vmatprep.subr.mxu0 0.0
    %1575 = vmatpush1.msra.mxu0 %v392
    %1576 = vmatprep.subr.mxu0 0.0
    %1577 = vmatpush1.msra.mxu0 %v391
    %1578 = vmatprep.subr.mxu0 0.0
    %1579 = vmatpush1.msra.mxu0 %v390
    %1580 = vmatprep.subr.mxu0 0.0
    %1581 = vmatpush2.msra.mxu0 0.0
    %1582 = vmatprep.subr.mxu0 0.0
    %1583 = vmatpush2.msra.mxu0 0.0
    %1584 = vmatprep.subr.mxu0 0.0
    %1585 = vmatpush2.msra.mxu0 0.0
    %1586 = vmatprep.subr.mxu0 0.0
    %1587 = vmatpush2.msra.mxu0 0.0
    %1588 = vmatprep.subr.mxu0 0.0
    %1589 = vmatpush2.msra.mxu0 0.0
    %1590 = vmatprep.subr.mxu0 0.0
    %1591 = vmatpush2.msra.mxu0 0.0
    %1592 = vmatprep.subr.mxu0 0.0
    %1593 = vmatpush2.msra.mxu0 0.0
    %1594 = vmatprep.subr.mxu0 0.0
    %1595 = vmatpush2.msra.mxu0 0.0
    %1596 = vmatprep.subr.mxu0 0.0
    %1597 = vmatpush2.msra.mxu0 0.0
    %1598 = vmatprep.subr.mxu0 0.0
    %1599 = vmatpush2.msra.mxu0 0.0
    %1600 = vmatprep.subr.mxu0 0.0
    %1601 = vmatpush2.msra.mxu0 0.0
    %1602 = vmatprep.subr.mxu0 0.0
    %1603 = vmatpush2.msra.mxu0 0.0
    %1604 = vmatprep.subr.mxu0 0.0
    %1605 = vmatpush2.msra.mxu0 0.0
    %1606 = vmatprep.subr.mxu0 0.0
    %1607 = vmatpush2.msra.mxu0 0.0
    %1608 = vmatprep.subr.mxu0 0.0
    %1609 = vmatpush2.msra.mxu0 0.0
    %1610 = vmatprep.subr.mxu0 0.0
    %1611 = vmatpush2.msra.mxu0 0.0
    %1612 = vmatprep.mubr.f32.mxu0 0.0
    %1613 = vmatmul.mubr.f32.gmra.mxu0 %v1546
    %v1614 = vpop.f32.mrf.mxu0
    %v1615 = vadd.f32 %v1316, %v1614
    %v1616 = vpop.f32.mrf.mxu0
    %1617 = vdwg.mxu0
    %v1618 = vadd.f32 %v375, %v1615
    %v1619 = vxor.u32 %v1618, 2147483648
    %v1620 = vmul.f32 %v1619, 1.442695
    %v1621 = vpow.pop %v1620
    %v1622 = vadd.f32 %v1621, 1.0
    %v1623 = vrcp.pop %v1622
    %v1624 = vmul.f32 1.0, %v1623
    %v1627 = vunpack.c.l.s4 1983009808
    %v1628 = vunpack.c.0.s8 %v1627
    %v1629 = vlaneseq
    %v1630 = vshrl.u32 %v1629, 7
    %v1631 = vsub.s32 %v1628, %v1630
    %v1632 = vrot.slane %v1615, %v1631
    %1633 = vrot.lane.b32.xlu0 %v1632, 64
    %v1634 = vpop.permute.xlu0 %1633
    %v1636 = vmul.f32 %v1624, %v1634
    %1638 = vrot.lane.b32.xlu0 %v1636, 64
    %v1639 = vpop.permute.xlu0 %1638
    %v1641 = vadd.f32 %v375, %v1639
    %v1642 = vtanh.pop %v1641
    %v1643 = vsub.f32 1.0, %v1624
    %1645 = vrot.lane.b32.xlu0 %v1642, 96
    %v1646 = vpop.permute.xlu0 %1645
    %v1648 = vmul.f32 %v1643, %v1646
    %v1649 = vmul.f32 %v1624, %v1535
    %v1650 = vadd.f32 %v1648, %v1649
    %v1653 = vunpack.c.l.s4 1983009808
    %v1654 = vunpack.c.0.s8 %v1653
    %v1655 = vlaneseq
    %v1656 = vshrl.u32 %v1655, 7
    %v1657 = vsub.s32 %v1654, %v1656
    %v1658 = vrot.slane %v1650, %v1657
    %1659 = vrot.lane.b32.xlu0 %v1658, 96
    %v1660 = vpop.permute.xlu0 %1659
    %v1661 = vsel %vm131, %v1660, 0
    %1663 = vmatprep.subr.mxu0 0.0
    %1664 = vmatpush1.msra.mxu0 0.0
    %1665 = vmatprep.subr.mxu0 0.0
    %1666 = vmatpush1.msra.mxu0 0.0
    %1667 = vmatprep.subr.mxu0 0.0
    %1668 = vmatpush1.msra.mxu0 0.0
    %1669 = vmatprep.subr.mxu0 0.0
    %1670 = vmatpush1.msra.mxu0 0.0
    %1671 = vmatprep.subr.mxu0 0.0
    %1672 = vmatpush1.msra.mxu0 0.0
    %1673 = vmatprep.subr.mxu0 0.0
    %1674 = vmatpush1.msra.mxu0 0.0
    %1675 = vmatprep.subr.mxu0 0.0
    %1676 = vmatpush1.msra.mxu0 0.0
    %1677 = vmatprep.subr.mxu0 0.0
    %1678 = vmatpush1.msra.mxu0 0.0
    %1679 = vmatprep.subr.mxu0 0.0
    %1680 = vmatpush1.msra.mxu0 0.0
    %1681 = vmatprep.subr.mxu0 0.0
    %1682 = vmatpush1.msra.mxu0 0.0
    %1683 = vmatprep.subr.mxu0 0.0
    %1684 = vmatpush1.msra.mxu0 0.0
    %1685 = vmatprep.subr.mxu0 0.0
    %1686 = vmatpush1.msra.mxu0 0.0
    %1687 = vmatprep.subr.mxu0 0.0
    %1688 = vmatpush1.msra.mxu0 %v393
    %1689 = vmatprep.subr.mxu0 0.0
    %1690 = vmatpush1.msra.mxu0 %v392
    %1691 = vmatprep.subr.mxu0 0.0
    %1692 = vmatpush1.msra.mxu0 %v391
    %1693 = vmatprep.subr.mxu0 0.0
    %1694 = vmatpush1.msra.mxu0 %v390
    %1695 = vmatprep.subr.mxu0 0.0
    %1696 = vmatpush2.msra.mxu0 0.0
    %1697 = vmatprep.subr.mxu0 0.0
    %1698 = vmatpush2.msra.mxu0 0.0
    %1699 = vmatprep.subr.mxu0 0.0
    %1700 = vmatpush2.msra.mxu0 0.0
    %1701 = vmatprep.subr.mxu0 0.0
    %1702 = vmatpush2.msra.mxu0 0.0
    %1703 = vmatprep.subr.mxu0 0.0
    %1704 = vmatpush2.msra.mxu0 0.0
    %1705 = vmatprep.subr.mxu0 0.0
    %1706 = vmatpush2.msra.mxu0 0.0
    %1707 = vmatprep.subr.mxu0 0.0
    %1708 = vmatpush2.msra.mxu0 0.0
    %1709 = vmatprep.subr.mxu0 0.0
    %1710 = vmatpush2.msra.mxu0 0.0
    %1711 = vmatprep.subr.mxu0 0.0
    %1712 = vmatpush2.msra.mxu0 0.0
    %1713 = vmatprep.subr.mxu0 0.0
    %1714 = vmatpush2.msra.mxu0 0.0
    %1715 = vmatprep.subr.mxu0 0.0
    %1716 = vmatpush2.msra.mxu0 0.0
    %1717 = vmatprep.subr.mxu0 0.0
    %1718 = vmatpush2.msra.mxu0 0.0
    %1719 = vmatprep.subr.mxu0 0.0
    %1720 = vmatpush2.msra.mxu0 0.0
    %1721 = vmatprep.subr.mxu0 0.0
    %1722 = vmatpush2.msra.mxu0 0.0
    %1723 = vmatprep.subr.mxu0 0.0
    %1724 = vmatpush2.msra.mxu0 0.0
    %1725 = vmatprep.subr.mxu0 0.0
    %1726 = vmatpush2.msra.mxu0 0.0
    %1727 = vmatprep.mubr.f32.mxu0 0.0
    %1728 = vmatmul.mubr.f32.gmra.mxu0 %v1661
    %v1729 = vpop.f32.mrf.mxu0
    %v1730 = vadd.f32 %v1316, %v1729
    %v1731 = vpop.f32.mrf.mxu0
    %1732 = vdwg.mxu0
    %v1733 = vadd.f32 %v367, %v1730
    %v1734 = vxor.u32 %v1733, 2147483648
    %v1735 = vmul.f32 %v1734, 1.442695
    %v1736 = vpow.pop %v1735
    %v1737 = vadd.f32 %v1736, 1.0
    %v1738 = vrcp.pop %v1737
    %v1739 = vmul.f32 1.0, %v1738
    %v1742 = vunpack.c.l.s4 1983009808
    %v1743 = vunpack.c.0.s8 %v1742
    %v1744 = vlaneseq
    %v1745 = vshrl.u32 %v1744, 7
    %v1746 = vsub.s32 %v1743, %v1745
    %v1747 = vrot.slane %v1730, %v1746
    %1748 = vrot.lane.b32.xlu0 %v1747, 64
    %v1749 = vpop.permute.xlu0 %1748
    %v1751 = vmul.f32 %v1739, %v1749
    %1753 = vrot.lane.b32.xlu0 %v1751, 64
    %v1754 = vpop.permute.xlu0 %1753
    %v1756 = vadd.f32 %v367, %v1754
    %v1757 = vtanh.pop %v1756
    %v1758 = vsub.f32 1.0, %v1739
    %1760 = vrot.lane.b32.xlu0 %v1757, 96
    %v1761 = vpop.permute.xlu0 %1760
    %v1763 = vmul.f32 %v1758, %v1761
    %v1764 = vmul.f32 %v1739, %v1650
    %v1765 = vadd.f32 %v1763, %v1764
    %v1768 = vunpack.c.l.s4 1983009808
    %v1769 = vunpack.c.0.s8 %v1768
    %v1770 = vlaneseq
    %v1771 = vshrl.u32 %v1770, 7
    %v1772 = vsub.s32 %v1769, %v1771
    %v1773 = vrot.slane %v1765, %v1772
    %1774 = vrot.lane.b32.xlu0 %v1773, 96
    %v1775 = vpop.permute.xlu0 %1774
    %v1776 = vsel %vm131, %v1775, 0
    %1778 = vmatprep.subr.mxu0 0.0
    %1779 = vmatpush1.msra.mxu0 0.0
    %1780 = vmatprep.subr.mxu0 0.0
    %1781 = vmatpush1.msra.mxu0 0.0
    %1782 = vmatprep.subr.mxu0 0.0
    %1783 = vmatpush1.msra.mxu0 0.0
    %1784 = vmatprep.subr.mxu0 0.0
    %1785 = vmatpush1.msra.mxu0 0.0
    %1786 = vmatprep.subr.mxu0 0.0
    %1787 = vmatpush1.msra.mxu0 0.0
    %1788 = vmatprep.subr.mxu0 0.0
    %1789 = vmatpush1.msra.mxu0 0.0
    %1790 = vmatprep.subr.mxu0 0.0
    %1791 = vmatpush1.msra.mxu0 0.0
    %1792 = vmatprep.subr.mxu0 0.0
    %1793 = vmatpush1.msra.mxu0 0.0
    %1794 = vmatprep.subr.mxu0 0.0
    %1795 = vmatpush1.msra.mxu0 0.0
    %1796 = vmatprep.subr.mxu0 0.0
    %1797 = vmatpush1.msra.mxu0 0.0
    %1798 = vmatprep.subr.mxu0 0.0
    %1799 = vmatpush1.msra.mxu0 0.0
    %1800 = vmatprep.subr.mxu0 0.0
    %1801 = vmatpush1.msra.mxu0 0.0
    %1802 = vmatprep.subr.mxu0 0.0
    %1803 = vmatpush1.msra.mxu0 %v393
    %1804 = vmatprep.subr.mxu0 0.0
    %1805 = vmatpush1.msra.mxu0 %v392
    %1806 = vmatprep.subr.mxu0 0.0
    %1807 = vmatpush1.msra.mxu0 %v391
    %1808 = vmatprep.subr.mxu0 0.0
    %1809 = vmatpush1.msra.mxu0 %v390
    %1810 = vmatprep.subr.mxu0 0.0
    %1811 = vmatpush2.msra.mxu0 0.0
    %1812 = vmatprep.subr.mxu0 0.0
    %1813 = vmatpush2.msra.mxu0 0.0
    %1814 = vmatprep.subr.mxu0 0.0
    %1815 = vmatpush2.msra.mxu0 0.0
    %1816 = vmatprep.subr.mxu0 0.0
    %1817 = vmatpush2.msra.mxu0 0.0
    %1818 = vmatprep.subr.mxu0 0.0
    %1819 = vmatpush2.msra.mxu0 0.0
    %1820 = vmatprep.subr.mxu0 0.0
    %1821 = vmatpush2.msra.mxu0 0.0
    %1822 = vmatprep.subr.mxu0 0.0
    %1823 = vmatpush2.msra.mxu0 0.0
    %1824 = vmatprep.subr.mxu0 0.0
    %1825 = vmatpush2.msra.mxu0 0.0
    %1826 = vmatprep.subr.mxu0 0.0
    %1827 = vmatpush2.msra.mxu0 0.0
    %1828 = vmatprep.subr.mxu0 0.0
    %1829 = vmatpush2.msra.mxu0 0.0
    %1830 = vmatprep.subr.mxu0 0.0
    %1831 = vmatpush2.msra.mxu0 0.0
    %1832 = vmatprep.subr.mxu0 0.0
    %1833 = vmatpush2.msra.mxu0 0.0
    %1834 = vmatprep.subr.mxu0 0.0
    %1835 = vmatpush2.msra.mxu0 0.0
    %1836 = vmatprep.subr.mxu0 0.0
    %1837 = vmatpush2.msra.mxu0 0.0
    %1838 = vmatprep.subr.mxu0 0.0
    %1839 = vmatpush2.msra.mxu0 0.0
    %1840 = vmatprep.subr.mxu0 0.0
    %1841 = vmatpush2.msra.mxu0 0.0
    %1842 = vmatprep.mubr.f32.mxu0 0.0
    %1843 = vmatmul.mubr.f32.gmra.mxu0 %v1776
    %v1844 = vpop.f32.mrf.mxu0
    %v1845 = vadd.f32 %v1316, %v1844
    %v1846 = vpop.f32.mrf.mxu0
    %1847 = vdwg.mxu0
    %v1848 = vadd.f32 %v359, %v1845
    %v1849 = vxor.u32 %v1848, 2147483648
    %v1850 = vmul.f32 %v1849, 1.442695
    %v1851 = vpow.pop %v1850
    %v1852 = vadd.f32 %v1851, 1.0
    %v1853 = vrcp.pop %v1852
    %v1854 = vmul.f32 1.0, %v1853
    %v1857 = vunpack.c.l.s4 1983009808
    %v1858 = vunpack.c.0.s8 %v1857
    %v1859 = vlaneseq
    %v1860 = vshrl.u32 %v1859, 7
    %v1861 = vsub.s32 %v1858, %v1860
    %v1862 = vrot.slane %v1845, %v1861
    %1863 = vrot.lane.b32.xlu0 %v1862, 64
    %v1864 = vpop.permute.xlu0 %1863
    %v1866 = vmul.f32 %v1854, %v1864
    %1868 = vrot.lane.b32.xlu0 %v1866, 64
    %v1869 = vpop.permute.xlu0 %1868
    %v1871 = vadd.f32 %v359, %v1869
    %v1872 = vtanh.pop %v1871
    %v1873 = vsub.f32 1.0, %v1854
    %1875 = vrot.lane.b32.xlu0 %v1872, 96
    %v1876 = vpop.permute.xlu0 %1875
    %v1878 = vmul.f32 %v1873, %v1876
    %v1879 = vmul.f32 %v1854, %v1765
    %v1880 = vadd.f32 %v1878, %v1879
    %v1883 = vunpack.c.l.s4 1983009808
    %v1884 = vunpack.c.0.s8 %v1883
    %v1885 = vlaneseq
    %v1886 = vshrl.u32 %v1885, 7
    %v1887 = vsub.s32 %v1884, %v1886
    %v1888 = vrot.slane %v1880, %v1887
    %1889 = vrot.lane.b32.xlu0 %v1888, 96
    %v1890 = vpop.permute.xlu0 %1889
    %v1891 = vsel %vm131, %v1890, 0
    %1893 = vmatprep.subr.mxu0 0.0
    %1894 = vmatpush1.msra.mxu0 0.0
    %1895 = vmatprep.subr.mxu0 0.0
    %1896 = vmatpush1.msra.mxu0 0.0
    %1897 = vmatprep.subr.mxu0 0.0
    %1898 = vmatpush1.msra.mxu0 0.0
    %1899 = vmatprep.subr.mxu0 0.0
    %1900 = vmatpush1.msra.mxu0 0.0
    %1901 = vmatprep.subr.mxu0 0.0
    %1902 = vmatpush1.msra.mxu0 0.0
    %1903 = vmatprep.subr.mxu0 0.0
    %1904 = vmatpush1.msra.mxu0 0.0
    %1905 = vmatprep.subr.mxu0 0.0
    %1906 = vmatpush1.msra.mxu0 0.0
    %1907 = vmatprep.subr.mxu0 0.0
    %1908 = vmatpush1.msra.mxu0 0.0
    %1909 = vmatprep.subr.mxu0 0.0
    %1910 = vmatpush1.msra.mxu0 0.0
    %1911 = vmatprep.subr.mxu0 0.0
    %1912 = vmatpush1.msra.mxu0 0.0
    %1913 = vmatprep.subr.mxu0 0.0
    %1914 = vmatpush1.msra.mxu0 0.0
    %1915 = vmatprep.subr.mxu0 0.0
    %1916 = vmatpush1.msra.mxu0 0.0
    %1917 = vmatprep.subr.mxu0 0.0
    %1918 = vmatpush1.msra.mxu0 %v393
    %1919 = vmatprep.subr.mxu0 0.0
    %1920 = vmatpush1.msra.mxu0 %v392
    %1921 = vmatprep.subr.mxu0 0.0
    %1922 = vmatpush1.msra.mxu0 %v391
    %1923 = vmatprep.subr.mxu0 0.0
    %1924 = vmatpush1.msra.mxu0 %v390
    %1925 = vmatprep.subr.mxu0 0.0
    %1926 = vmatpush2.msra.mxu0 0.0
    %1927 = vmatprep.subr.mxu0 0.0
    %1928 = vmatpush2.msra.mxu0 0.0
    %1929 = vmatprep.subr.mxu0 0.0
    %1930 = vmatpush2.msra.mxu0 0.0
    %1931 = vmatprep.subr.mxu0 0.0
    %1932 = vmatpush2.msra.mxu0 0.0
    %1933 = vmatprep.subr.mxu0 0.0
    %1934 = vmatpush2.msra.mxu0 0.0
    %1935 = vmatprep.subr.mxu0 0.0
    %1936 = vmatpush2.msra.mxu0 0.0
    %1937 = vmatprep.subr.mxu0 0.0
    %1938 = vmatpush2.msra.mxu0 0.0
    %1939 = vmatprep.subr.mxu0 0.0
    %1940 = vmatpush2.msra.mxu0 0.0
    %1941 = vmatprep.subr.mxu0 0.0
    %1942 = vmatpush2.msra.mxu0 0.0
    %1943 = vmatprep.subr.mxu0 0.0
    %1944 = vmatpush2.msra.mxu0 0.0
    %1945 = vmatprep.subr.mxu0 0.0
    %1946 = vmatpush2.msra.mxu0 0.0
    %1947 = vmatprep.subr.mxu0 0.0
    %1948 = vmatpush2.msra.mxu0 0.0
    %1949 = vmatprep.subr.mxu0 0.0
    %1950 = vmatpush2.msra.mxu0 0.0
    %1951 = vmatprep.subr.mxu0 0.0
    %1952 = vmatpush2.msra.mxu0 0.0
    %1953 = vmatprep.subr.mxu0 0.0
    %1954 = vmatpush2.msra.mxu0 0.0
    %1955 = vmatprep.subr.mxu0 0.0
    %1956 = vmatpush2.msra.mxu0 0.0
    %1957 = vmatprep.mubr.f32.mxu0 0.0
    %1958 = vmatmul.mubr.f32.gmra.mxu0 %v1891
    %v1959 = vpop.f32.mrf.mxu0
    %v1960 = vadd.f32 %v1316, %v1959
    %v1961 = vpop.f32.mrf.mxu0
    %1962 = vdwg.mxu0
    %v1963 = vadd.f32 %v357, %v1960
    %v1964 = vxor.u32 %v1963, 2147483648
    %v1965 = vmul.f32 %v1964, 1.442695
    %v1966 = vpow.pop %v1965
    %v1967 = vadd.f32 %v1966, 1.0
    %v1968 = vrcp.pop %v1967
    %v1969 = vmul.f32 1.0, %v1968
    %v1972 = vunpack.c.l.s4 1983009808
    %v1973 = vunpack.c.0.s8 %v1972
    %v1974 = vlaneseq
    %v1975 = vshrl.u32 %v1974, 7
    %v1976 = vsub.s32 %v1973, %v1975
    %v1977 = vrot.slane %v1960, %v1976
    %1978 = vrot.lane.b32.xlu0 %v1977, 64
    %v1979 = vpop.permute.xlu0 %1978
    %v1981 = vmul.f32 %v1969, %v1979
    %1983 = vrot.lane.b32.xlu0 %v1981, 64
    %v1984 = vpop.permute.xlu0 %1983
    %v1986 = vadd.f32 %v357, %v1984
    %v1987 = vtanh.pop %v1986
    %v1988 = vsub.f32 1.0, %v1969
    %1990 = vrot.lane.b32.xlu0 %v1987, 96
    %v1991 = vpop.permute.xlu0 %1990
    %v1993 = vmul.f32 %v1988, %v1991
    %v1994 = vmul.f32 %v1969, %v1880
    %v1995 = vadd.f32 %v1993, %v1994
    %v1998 = vunpack.c.l.s4 1983009808
    %v1999 = vunpack.c.0.s8 %v1998
    %v2000 = vlaneseq
    %v2001 = vshrl.u32 %v2000, 7
    %v2002 = vsub.s32 %v1999, %v2001
    %v2003 = vrot.slane %v1995, %v2002
    %2004 = vrot.lane.b32.xlu0 %v2003, 96
    %v2005 = vpop.permute.xlu0 %2004
    %v2006 = vsel %vm131, %v2005, 0
    %2008 = vmatprep.subr.mxu0 0.0
    %2009 = vmatpush1.msra.mxu0 0.0
    %2010 = vmatprep.subr.mxu0 0.0
    %2011 = vmatpush1.msra.mxu0 0.0
    %2012 = vmatprep.subr.mxu0 0.0
    %2013 = vmatpush1.msra.mxu0 0.0
    %2014 = vmatprep.subr.mxu0 0.0
    %2015 = vmatpush1.msra.mxu0 0.0
    %2016 = vmatprep.subr.mxu0 0.0
    %2017 = vmatpush1.msra.mxu0 0.0
    %2018 = vmatprep.subr.mxu0 0.0
    %2019 = vmatpush1.msra.mxu0 0.0
    %2020 = vmatprep.subr.mxu0 0.0
    %2021 = vmatpush1.msra.mxu0 0.0
    %2022 = vmatprep.subr.mxu0 0.0
    %2023 = vmatpush1.msra.mxu0 0.0
    %2024 = vmatprep.subr.mxu0 0.0
    %2025 = vmatpush1.msra.mxu0 0.0
    %2026 = vmatprep.subr.mxu0 0.0
    %2027 = vmatpush1.msra.mxu0 0.0
    %2028 = vmatprep.subr.mxu0 0.0
    %2029 = vmatpush1.msra.mxu0 0.0
    %2030 = vmatprep.subr.mxu0 0.0
    %2031 = vmatpush1.msra.mxu0 0.0
    %2032 = vmatprep.subr.mxu0 0.0
    %2033 = vmatpush1.msra.mxu0 %v393
    %2034 = vmatprep.subr.mxu0 0.0
    %2035 = vmatpush1.msra.mxu0 %v392
    %2036 = vmatprep.subr.mxu0 0.0
    %2037 = vmatpush1.msra.mxu0 %v391
    %2038 = vmatprep.subr.mxu0 0.0
    %2039 = vmatpush1.msra.mxu0 %v390
    %2040 = vmatprep.subr.mxu0 0.0
    %2041 = vmatpush2.msra.mxu0 0.0
    %2042 = vmatprep.subr.mxu0 0.0
    %2043 = vmatpush2.msra.mxu0 0.0
    %2044 = vmatprep.subr.mxu0 0.0
    %2045 = vmatpush2.msra.mxu0 0.0
    %2046 = vmatprep.subr.mxu0 0.0
    %2047 = vmatpush2.msra.mxu0 0.0
    %2048 = vmatprep.subr.mxu0 0.0
    %2049 = vmatpush2.msra.mxu0 0.0
    %2050 = vmatprep.subr.mxu0 0.0
    %2051 = vmatpush2.msra.mxu0 0.0
    %2052 = vmatprep.subr.mxu0 0.0
    %2053 = vmatpush2.msra.mxu0 0.0
    %2054 = vmatprep.subr.mxu0 0.0
    %2055 = vmatpush2.msra.mxu0 0.0
    %2056 = vmatprep.subr.mxu0 0.0
    %2057 = vmatpush2.msra.mxu0 0.0
    %2058 = vmatprep.subr.mxu0 0.0
    %2059 = vmatpush2.msra.mxu0 0.0
    %2060 = vmatprep.subr.mxu0 0.0
    %2061 = vmatpush2.msra.mxu0 0.0
    %2062 = vmatprep.subr.mxu0 0.0
    %2063 = vmatpush2.msra.mxu0 0.0
    %2064 = vmatprep.subr.mxu0 0.0
    %2065 = vmatpush2.msra.mxu0 0.0
    %2066 = vmatprep.subr.mxu0 0.0
    %2067 = vmatpush2.msra.mxu0 0.0
    %2068 = vmatprep.subr.mxu0 0.0
    %2069 = vmatpush2.msra.mxu0 0.0
    %2070 = vmatprep.subr.mxu0 0.0
    %2071 = vmatpush2.msra.mxu0 0.0
    %2072 = vmatprep.mubr.f32.mxu0 0.0
    %2073 = vmatmul.mubr.f32.gmra.mxu0 %v2006
    %v2074 = vpop.f32.mrf.mxu0
    %v2075 = vadd.f32 %v1316, %v2074
    %v2076 = vpop.f32.mrf.mxu0
    %2077 = vdwg.mxu0
    %v2078 = vadd.f32 %v358, %v2075
    %v2079 = vxor.u32 %v2078, 2147483648
    %v2080 = vmul.f32 %v2079, 1.442695
    %v2081 = vpow.pop %v2080
    %v2082 = vadd.f32 %v2081, 1.0
    %v2083 = vrcp.pop %v2082
    %v2084 = vmul.f32 1.0, %v2083
    %v2087 = vunpack.c.l.s4 1983009808
    %v2088 = vunpack.c.0.s8 %v2087
    %v2089 = vlaneseq
    %v2090 = vshrl.u32 %v2089, 7
    %v2091 = vsub.s32 %v2088, %v2090
    %v2092 = vrot.slane %v2075, %v2091
    %2093 = vrot.lane.b32.xlu0 %v2092, 64
    %v2094 = vpop.permute.xlu0 %2093
    %v2096 = vmul.f32 %v2084, %v2094
    %2098 = vrot.lane.b32.xlu0 %v2096, 64
    %v2099 = vpop.permute.xlu0 %2098
    %v2101 = vadd.f32 %v358, %v2099
    %v2102 = vtanh.pop %v2101
    %v2103 = vsub.f32 1.0, %v2084
    %2105 = vrot.lane.b32.xlu0 %v2102, 96
    %v2106 = vpop.permute.xlu0 %2105
    %v2108 = vmul.f32 %v2103, %v2106
    %v2109 = vmul.f32 %v2084, %v1995
    %v2110 = vadd.f32 %v2108, %v2109
    %v2113 = vunpack.c.l.s4 1983009808
    %v2114 = vunpack.c.0.s8 %v2113
    %v2115 = vlaneseq
    %v2116 = vshrl.u32 %v2115, 7
    %v2117 = vsub.s32 %v2114, %v2116
    %v2118 = vrot.slane %v2110, %v2117
    %2119 = vrot.lane.b32.xlu0 %v2118, 96
    %v2120 = vpop.permute.xlu0 %2119
    %v2121 = vsel %vm131, %v2120, 0
    %2123 = vmatprep.subr.mxu0 0.0
    %2124 = vmatpush1.msra.mxu0 0.0
    %2125 = vmatprep.subr.mxu0 0.0
    %2126 = vmatpush1.msra.mxu0 0.0
    %2127 = vmatprep.subr.mxu0 0.0
    %2128 = vmatpush1.msra.mxu0 0.0
    %2129 = vmatprep.subr.mxu0 0.0
    %2130 = vmatpush1.msra.mxu0 0.0
    %2131 = vmatprep.subr.mxu0 0.0
    %2132 = vmatpush1.msra.mxu0 0.0
    %2133 = vmatprep.subr.mxu0 0.0
    %2134 = vmatpush1.msra.mxu0 0.0
    %2135 = vmatprep.subr.mxu0 0.0
    %2136 = vmatpush1.msra.mxu0 0.0
    %2137 = vmatprep.subr.mxu0 0.0
    %2138 = vmatpush1.msra.mxu0 0.0
    %2139 = vmatprep.subr.mxu0 0.0
    %2140 = vmatpush1.msra.mxu0 0.0
    %2141 = vmatprep.subr.mxu0 0.0
    %2142 = vmatpush1.msra.mxu0 0.0
    %2143 = vmatprep.subr.mxu0 0.0
    %2144 = vmatpush1.msra.mxu0 0.0
    %2145 = vmatprep.subr.mxu0 0.0
    %2146 = vmatpush1.msra.mxu0 0.0
    %2147 = vmatprep.subr.mxu0 0.0
    %2148 = vmatpush1.msra.mxu0 %v393
    %2149 = vmatprep.subr.mxu0 0.0
    %2150 = vmatpush1.msra.mxu0 %v392
    %2151 = vmatprep.subr.mxu0 0.0
    %2152 = vmatpush1.msra.mxu0 %v391
    %2153 = vmatprep.subr.mxu0 0.0
    %2154 = vmatpush1.msra.mxu0 %v390
    %2155 = vmatprep.subr.mxu0 0.0
    %2156 = vmatpush2.msra.mxu0 0.0
    %2157 = vmatprep.subr.mxu0 0.0
    %2158 = vmatpush2.msra.mxu0 0.0
    %2159 = vmatprep.subr.mxu0 0.0
    %2160 = vmatpush2.msra.mxu0 0.0
    %2161 = vmatprep.subr.mxu0 0.0
    %2162 = vmatpush2.msra.mxu0 0.0
    %2163 = vmatprep.subr.mxu0 0.0
    %2164 = vmatpush2.msra.mxu0 0.0
    %2165 = vmatprep.subr.mxu0 0.0
    %2166 = vmatpush2.msra.mxu0 0.0
    %2167 = vmatprep.subr.mxu0 0.0
    %2168 = vmatpush2.msra.mxu0 0.0
    %2169 = vmatprep.subr.mxu0 0.0
    %2170 = vmatpush2.msra.mxu0 0.0
    %2171 = vmatprep.subr.mxu0 0.0
    %2172 = vmatpush2.msra.mxu0 0.0
    %2173 = vmatprep.subr.mxu0 0.0
    %2174 = vmatpush2.msra.mxu0 0.0
    %2175 = vmatprep.subr.mxu0 0.0
    %2176 = vmatpush2.msra.mxu0 0.0
    %2177 = vmatprep.subr.mxu0 0.0
    %2178 = vmatpush2.msra.mxu0 0.0
    %2179 = vmatprep.subr.mxu0 0.0
    %2180 = vmatpush2.msra.mxu0 0.0
    %2181 = vmatprep.subr.mxu0 0.0
    %2182 = vmatpush2.msra.mxu0 0.0
    %2183 = vmatprep.subr.mxu0 0.0
    %2184 = vmatpush2.msra.mxu0 0.0
    %2185 = vmatprep.subr.mxu0 0.0
    %2186 = vmatpush2.msra.mxu0 0.0
    %2187 = vmatprep.mubr.f32.mxu0 0.0
    %2188 = vmatmul.mubr.f32.gmra.mxu0 %v2121
    %v2189 = vpop.f32.mrf.mxu0
    %v2190 = vadd.f32 %v1316, %v2189
    %v2191 = vpop.f32.mrf.mxu0
    %2192 = vdwg.mxu0
    %v2193 = vadd.f32 %v350, %v2190
    %v2194 = vxor.u32 %v2193, 2147483648
    %v2195 = vmul.f32 %v2194, 1.442695
    %v2196 = vpow.pop %v2195
    %v2197 = vadd.f32 %v2196, 1.0
    %v2198 = vrcp.pop %v2197
    %v2199 = vmul.f32 1.0, %v2198
    %v2202 = vunpack.c.l.s4 1983009808
    %v2203 = vunpack.c.0.s8 %v2202
    %v2204 = vlaneseq
    %v2205 = vshrl.u32 %v2204, 7
    %v2206 = vsub.s32 %v2203, %v2205
    %v2207 = vrot.slane %v2190, %v2206
    %2208 = vrot.lane.b32.xlu0 %v2207, 64
    %v2209 = vpop.permute.xlu0 %2208
    %v2211 = vmul.f32 %v2199, %v2209
    %2213 = vrot.lane.b32.xlu0 %v2211, 64
    %v2214 = vpop.permute.xlu0 %2213
    %v2216 = vadd.f32 %v350, %v2214
    %v2217 = vtanh.pop %v2216
    %v2218 = vsub.f32 1.0, %v2199
    %2220 = vrot.lane.b32.xlu0 %v2217, 96
    %v2221 = vpop.permute.xlu0 %2220
    %v2223 = vmul.f32 %v2218, %v2221
    %v2224 = vmul.f32 %v2199, %v2110
    %v2225 = vadd.f32 %v2223, %v2224
    %v2228 = vunpack.c.l.s4 1983009808
    %v2229 = vunpack.c.0.s8 %v2228
    %v2230 = vlaneseq
    %v2231 = vshrl.u32 %v2230, 7
    %v2232 = vsub.s32 %v2229, %v2231
    %v2233 = vrot.slane %v1311, %v2232
    %2234 = vrot.lane.b32.xlu0 %v2233, 96
    %v2235 = vpop.permute.xlu0 %2234
    %v2244 = vsel %vm131, %v516, %v2225
    %v2245 = vsel %vm131, %v631, %v2110
    %v2246 = vsel %vm131, %v746, %v1995
    %v2247 = vsel %vm131, %v861, %v1880
    %v2248 = vsel %vm131, %v976, %v1765
    %v2249 = vsel %vm131, %v1091, %v1650
    %v2250 = vsel %vm131, %v1206, %v1535
    %v2251 = vsel %vm131, %v2235, %v1420
    %vm2252 = vcmask 517120
    %2253 = vst.msk [vmem:[#allocation7] sm:$0x3] %vm2252, %v2244
    %2254 = vst.msk [vmem:[#allocation7 + $0x2] sm:$0x3] %vm2252, %v2245
    %2255 = vst.msk [vmem:[#allocation7 + $0x4] sm:$0x3] %vm2252, %v2246
    %2256 = vst.msk [vmem:[#allocation7 + $0x6] sm:$0x3] %vm2252, %v2247
    %2257 = vst.msk [vmem:[#allocation7 + $0x8] sm:$0x3] %vm2252, %v2248
    %2258 = vst.msk [vmem:[#allocation7 + $0xa] sm:$0x3] %vm2252, %v2249
    %2259 = vst.msk [vmem:[#allocation7 + $0xc] sm:$0x3] %vm2252, %v2250
    %2260 = vst.msk [vmem:[#allocation7 + $0xe] sm:$0x3] %vm2252, %v2251
    %v2261 = vsel %vm131, %v2235, %v2225
    %v2262 = vld [vmem:[%s9] sm:$0xff]
    %v2263 = vld [vmem:[%s9 + $0x8] sm:$0xff]
    %v2264 = vld [vmem:[%s9 + $0x10] sm:$0xff]
    %v2265 = vld [vmem:[%s9 + $0x18] sm:$0xff]
    %v2266 = vld [vmem:[%s9 + $0x20] sm:$0xff]
    %v2267 = vld [vmem:[%s9 + $0x28] sm:$0xff]
    %v2268 = vld [vmem:[%s9 + $0x30] sm:$0xff]
    %v2269 = vld [vmem:[%s9 + $0x38] sm:$0xff]
    %v2270 = vld [vmem:[%s10] sm:$0x1]
    %v2272 = vlaneseq
    %v2273 = vshrl.u32 %v2272, 7
    %v2274 = vsub.s32 0, %v2273
    %v2275 = vrot.slane %v2270, %v2274
    %vm2277 = vcmask 523264
    %v2279 = vsel %vm2277, %v2261, 0
    %2281 = vmatprep.subr.mxu0 0.0
    %2282 = vmatpush1.msra.mxu0 0.0
    %2283 = vmatprep.subr.mxu0 0.0
    %2284 = vmatpush1.msra.mxu0 0.0
    %2285 = vmatprep.subr.mxu0 0.0
    %2286 = vmatpush1.msra.mxu0 0.0
    %2287 = vmatprep.subr.mxu0 0.0
    %2288 = vmatpush1.msra.mxu0 0.0
    %2289 = vmatprep.subr.mxu0 0.0
    %2290 = vmatpush1.msra.mxu0 0.0
    %2291 = vmatprep.subr.mxu0 0.0
    %2292 = vmatpush1.msra.mxu0 0.0
    %2293 = vmatprep.subr.mxu0 0.0
    %2294 = vmatpush1.msra.mxu0 0.0
    %2295 = vmatprep.subr.mxu0 0.0
    %2296 = vmatpush1.msra.mxu0 0.0
    %2297 = vmatprep.subr.mxu0 0.0
    %2298 = vmatpush1.msra.mxu0 %v2269
    %2299 = vmatprep.subr.mxu0 0.0
    %2300 = vmatpush1.msra.mxu0 %v2268
    %2301 = vmatprep.subr.mxu0 0.0
    %2302 = vmatpush1.msra.mxu0 %v2267
    %2303 = vmatprep.subr.mxu0 0.0
    %2304 = vmatpush1.msra.mxu0 %v2266
    %2305 = vmatprep.subr.mxu0 0.0
    %2306 = vmatpush1.msra.mxu0 %v2265
    %2307 = vmatprep.subr.mxu0 0.0
    %2308 = vmatpush1.msra.mxu0 %v2264
    %2309 = vmatprep.subr.mxu0 0.0
    %2310 = vmatpush1.msra.mxu0 %v2263
    %2311 = vmatprep.subr.mxu0 0.0
    %2312 = vmatpush1.msra.mxu0 %v2262
    %2313 = vmatprep.subr.mxu0 0.0
    %2314 = vmatpush2.msra.mxu0 0.0
    %2315 = vmatprep.subr.mxu0 0.0
    %2316 = vmatpush2.msra.mxu0 0.0
    %2317 = vmatprep.subr.mxu0 0.0
    %2318 = vmatpush2.msra.mxu0 0.0
    %2319 = vmatprep.subr.mxu0 0.0
    %2320 = vmatpush2.msra.mxu0 0.0
    %2321 = vmatprep.subr.mxu0 0.0
    %2322 = vmatpush2.msra.mxu0 0.0
    %2323 = vmatprep.subr.mxu0 0.0
    %2324 = vmatpush2.msra.mxu0 0.0
    %2325 = vmatprep.subr.mxu0 0.0
    %2326 = vmatpush2.msra.mxu0 0.0
    %2327 = vmatprep.subr.mxu0 0.0
    %2328 = vmatpush2.msra.mxu0 0.0
    %2329 = vmatprep.subr.mxu0 0.0
    %2330 = vmatpush2.msra.mxu0 0.0
    %2331 = vmatprep.subr.mxu0 0.0
    %2332 = vmatpush2.msra.mxu0 0.0
    %2333 = vmatprep.subr.mxu0 0.0
    %2334 = vmatpush2.msra.mxu0 0.0
    %2335 = vmatprep.subr.mxu0 0.0
    %2336 = vmatpush2.msra.mxu0 0.0
    %2337 = vmatprep.subr.mxu0 0.0
    %2338 = vmatpush2.msra.mxu0 0.0
    %2339 = vmatprep.subr.mxu0 0.0
    %2340 = vmatpush2.msra.mxu0 0.0
    %2341 = vmatprep.subr.mxu0 0.0
    %2342 = vmatpush2.msra.mxu0 0.0
    %2343 = vmatprep.subr.mxu0 0.0
    %2344 = vmatpush2.msra.mxu0 0.0
    %2345 = vmatprep.mubr.f32.mxu0 0.0
    %2346 = vmatmul.mubr.f32.gmra.mxu0 %v2279
    %v2347 = vpop.f32.mrf.mxu0
    %v2348 = vadd.f32 %v2275, %v2347
    %v2349 = vpop.f32.mrf.mxu0
    %2350 = vdwg.mxu0
    %v2351 = vmax.f32 %v2348, 0.0
    %vm2352 = vcmask 254976
    %2353 = vst.msk [vmem:[#allocation8] sm:$0x3] %vm2352, %v2351
    // Predicated region
    $region54: #{tpu_custom_call.1} parent=1 // pred_check
      _
    $region55: #{tpu_custom_call.1} parent=1 // pred_check_branch
      %2355 = sbr.rel (0) target = $region57
    $region56: #{tpu_custom_call.1} parent=1 // pred_region
      %s2357 = ssub.s32 256, 256
      %2358 = vsyncadd [#allocation4], %s2357
      %s2359 = sshll.u32 [#allocation7], 4
      %s2360 = int_to_ptr.vmem [resolvable:$true] %s2359
      %2365 = dma.vmem_to_hbm [thread:$0]  %s2360, 256, %s11, [#allocation4], 32, 32, 2
    $region57: #{tpu_custom_call.1} parent=1 // pred_fallthru
      _
    // Predicated region
    $region58: #{tpu_custom_call.1} parent=1 // pred_check
      _
    $region59: #{tpu_custom_call.1} parent=1 // pred_check_branch
      %2367 = sbr.rel (0) target = $region61
    $region60: #{tpu_custom_call.1} parent=1 // pred_region
      %s2369 = ssub.s32 32, 32
      %2370 = vsyncadd [#allocation9], %s2369
      %s2372 = sshll.u32 [#allocation8], 4
      %s2373 = int_to_ptr.vmem [resolvable:$true] %s2372
      %2375 = dma.vmem_to_hbm [thread:$0]  %s2373, 32, %s12, [#allocation9]
    $region61: #{tpu_custom_call.1} parent=1 // pred_fallthru
      _
    // Predicated region
    $region62: #{tpu_custom_call.1} parent=1 // pred_check
      _
    $region63: #{tpu_custom_call.1} parent=1 // pred_check_branch
      %2377 = sbr.rel (0) target = $region65
    $region64: #{tpu_custom_call.1} parent=1 // pred_region
      %2378 = dma.done [#allocation4], 256
    $region65: #{tpu_custom_call.1} parent=1 // pred_fallthru
      _
    // Predicated region
    $region66: #{tpu_custom_call.1} parent=1 // pred_check
      _
    $region67: #{tpu_custom_call.1} parent=1 // pred_check_branch
      %2380 = sbr.rel (0) target = $region69
    $region68: #{tpu_custom_call.1} parent=1 // pred_region
      %2381 = dma.done [#allocation9], 32
    $region69: #{tpu_custom_call.1} parent=1 // pred_fallthru
      _
    %2382 = vsyncpa [#allocation3], 1
    %2383 = vsyncpa [#allocation6], 1
    %2384 = vsyncpa [#allocation4], 1
    %2385 = vsyncpa [#allocation9], 1

</llo_original>
